<compile_context>
chip_gen: v5e
topology: v5e:2x2
jax: 0.10.0
libtpu: 0.0.40
codegen_flags: <defaults>
</compile_context>

<pallas_src>
import math
from functools import partial

import jax
import jax.numpy as jnp
from jax.experimental import pallas as pl
from jax.experimental.pallas import tpu as pltpu


def _infini_attn_kernel(x_full_ref, x_q_ref, wq_ref, bq_ref, wkv_ref, bkv_ref,
                        mk_ref, mv_ref, gate_ref, mask_ref, out_ref,
                        kc_ref, vc_ref, *, num_heads, head_dim, seq_len, hidden,
                        mxu_dtype):
    f32 = jnp.float32
    nh, S, dh, H = num_heads, seq_len, head_dim, hidden

    def mx(t):
        # Cast activations for the MXU only; weights were already cast at prepare-params
        # time.  All VPU/EUP math stays f32 (v5e-friendly, keeps softmax precision).
        return t if mxu_dtype is None else t.astype(mxu_dtype)

    # -- First query tile of each sequence: build the memory-projected K/V once into VMEM
    #    scratch; every later query tile reuses it (no recompute, no re-DMA).
    @pl.when(pl.program_id(1) == 0)
    def _():
        x = x_full_ref[0]                                                      # [S, H]
        kv = jnp.dot(mx(x), wkv_ref[...], preferred_element_type=f32) + bkv_ref[...]  # [S, 2H]
        k = kv[:, :H]                                   # lane-aligned slices when H % 128 == 0
        v = kv[:, H:]
        if nh == 1:
            # head_dim == H: one [S,S] @ [S,H] matmul per tensor.
            kc = jnp.dot(mk_ref[0], mx(k), preferred_element_type=f32)         # [S, H]
            vc = jnp.dot(mv_ref[0], mx(v), preferred_element_type=f32)
        else:
            # Degenerate nh == S (head_dim == 1) case allowed by the reference broadcast
            # rules: head-batched contraction (no one-hot select / O(S^3) intermediates).
            kh = jnp.transpose(k.reshape(S, nh, dh), (1, 0, 2))                # [nh, S, dh]
            vh = jnp.transpose(v.reshape(S, nh, dh), (1, 0, 2))
            dn = (((2,), (1,)), ((0,), (0,)))                                  # batch over heads
            kc = jax.lax.dot_general(mk_ref[...], mx(kh), dn,
                                     preferred_element_type=f32).reshape(nh * S, dh)
            vc = jax.lax.dot_general(mv_ref[...], mx(vh), dn,
                                     preferred_element_type=f32).reshape(nh * S, dh)
        kc_ref[...] = kc.astype(kc_ref.dtype)
        vc_ref[...] = vc.astype(vc_ref.dtype)

    # -- Every query tile: projection + attention over the nh*S memory-projected keys.
    xq = x_q_ref[0]                                                            # [TQ, H]
    tq = xq.shape[0]
    q = jnp.dot(mx(xq), wq_ref[...], preferred_element_type=f32) + bq_ref[...]
    q = q * (1.0 / math.sqrt(dh))                                  # fold softmax scale into q once
    q2 = q if nh == 1 else q.reshape(tq * nh, dh)                  # rows ordered (s, h)

    scores = jax.lax.dot_general(mx(q2), kc_ref[...], (((1,), (1,)), ((), ())),
                                 preferred_element_type=f32)                   # [tq*nh, nh*S]
    scores = scores + mask_ref[...]                                            # additive mask
    scores = scores - jnp.max(scores, axis=-1, keepdims=True)
    e = jnp.exp(scores)
    inv = pl.reciprocal(jnp.sum(e, axis=-1, keepdims=True), approx=True)       # EUP slot
    probs = e * inv                                                # dropout == identity (inference)

    ctx = jnp.dot(mx(probs), vc_ref[...], preferred_element_type=f32)          # [tq*nh, dh]
    ctx = ctx.reshape(tq, H)                                       # == permute(0,2,1,3) flattened
    # gate_ref already holds sigmoid(gate) expanded to one scalar per query row (prepare time).
    # TODO(synk): retrieve_from_memory() is an unimplemented stub (returns None) in the
    # reference module; its (1 - gate) branch is treated as a zero contribution here.
    out_ref[0] = (gate_ref[...] * ctx).astype(out_ref.dtype)


def prepare_infini_attention_params(params, *, num_heads, seq_len, mxu_dtype=jnp.bfloat16):
    """One-time (per-parameter-set) preparation, hoisted out of the per-call path.

    Fuses the K/V projection weights, casts all MXU-operand weights to `mxu_dtype`
    (default bf16 — the right choice on v6e/v7x; pass None for pure f32), pre-applies
    sigmoid to the gate and expands it to a per-query-row column.  Biases stay f32.
    """
    H = params["wq"].shape[0]
    wdt = jnp.float32 if mxu_dtype is None else mxu_dtype
    wq = params["wq"].astype(wdt)                                                   # [H, H]
    wkv = jnp.concatenate([params["wk"], params["wv"]], axis=1).astype(wdt)         # [H, 2H]
    bq = params["bq"].reshape(1, H).astype(jnp.float32)
    bkv = jnp.concatenate([params["bk"].reshape(1, H),
                           params["bv"].reshape(1, H)], axis=1).astype(jnp.float32)
    mem_k = params["mem_k"].astype(wdt)                                             # [nh, H, H]
    mem_v = params["mem_v"].astype(wdt)
    gate = jax.nn.sigmoid(params["gate"].astype(jnp.float32)).reshape(num_heads, 1)
    if num_heads == 1:
        gate_col = jnp.broadcast_to(gate, (seq_len, 1))        # scalar gate per sequence row
    else:
        gate_col = gate                                        # num_heads == seq_len case
    return dict(wq=wq, bq=bq, wkv=wkv, bkv=bkv, mem_k=mem_k, mem_v=mem_v,
                gate_col=jnp.asarray(gate_col), mxu_dtype=mxu_dtype)


def _pick_q_tile(S, requested=None):
    if requested is not None:
        assert S % requested == 0 and (requested % 8 == 0 or requested == S), \
            "q_tile must divide seq_len and be a multiple of 8"
        return requested
    for cand in (512, 256, 128, 64, 32, 16, 8):
        if cand <= S and S % cand == 0:
            return cand
    return S


def infini_self_attention(hidden_states, prepared, attention_mask, *, num_heads,
                          q_tile=None, single_buffer_weights=True):
    B, S, H = hidden_states.shape
    dh = H // num_heads
    assert num_heads * dh == H
    # Constraints inherited from the reference PyTorch forward (see header comment):
    assert S == H, "reference memory matmul requires seq_len == hidden_size"
    assert B == 1, "reference 4D@3D matmul broadcast only well-defined for batch == 1"
    assert num_heads in (1, S), "reference gate broadcast requires num_heads in {1, seq_len}"

    dtype = hidden_states.dtype
    mxu_dtype = prepared["mxu_dtype"]
    kv_dtype = jnp.float32 if mxu_dtype is None else mxu_dtype
    wdt = prepared["wq"].dtype

    TQ = _pick_q_tile(S, q_tile)
    nkeys = num_heads * S
    mask2d = attention_mask.reshape(B, nkeys).astype(jnp.float32)

    kernel = partial(_infini_attn_kernel, num_heads=num_heads, head_dim=dh,
                     seq_len=S, hidden=H, mxu_dtype=mxu_dtype)

    def _nbytes(shape, dt):
        n = 1
        for d in shape:
            n *= d
        return n * jnp.dtype(dt).itemsize

    # Rough per-step VMEM footprint (double-buffered blocks + scratch + softmax temporaries),
    # used to set an explicit scoped limit with headroom under v7x's 64 MiB physical VMEM.
    est = (2 * _nbytes((S, H), dtype) + 2 * _nbytes((TQ, H), dtype)            # x blocks
           + 2 * (_nbytes((H, H), wdt) + _nbytes((H, 2 * H), wdt)
                  + 2 * _nbytes((num_heads, H, H), wdt))                       # weight blocks
           + 2 * _nbytes((TQ, H), dtype)                                       # output block
           + 2 * _nbytes((nkeys, dh), kv_dtype)                                # kc/vc scratch
           + 3 * _nbytes((TQ * num_heads, nkeys), jnp.float32))                # scores/probs temps
    vmem_limit = int(min(max(2 * est, 32 << 20), 48 << 20))

    compiler_params = pltpu.CompilerParams(
        # The query-tile axis carries the kc/vc scratch dependency (written at j == 0), so it
        # stays "arbitrary"; the batch axis is "parallel" (shards across v7x's 2 TCs if the
        # reference's B == 1 constraint is ever lifted).
        dimension_semantics=("parallel", "arbitrary"),
        vmem_limit_bytes=vmem_limit,
    )

    operands = (hidden_states, hidden_states, prepared["wq"], prepared["bq"],
                prepared["wkv"], prepared["bkv"], prepared["mem_k"], prepared["mem_v"],
                prepared["gate_col"], mask2d)

    def _build(single_buffer):
        def wspec(shape):
            # Grid-constant weight blocks: the block index never changes, so single-buffer
            # them (halves weight VMEM residency; matters on v7x at realistic H).
            idx = lambda b, j: (0,) * len(shape)
            if single_buffer:
                return pl.BlockSpec(shape, idx, pipeline_mode=pl.Buffered(1))
            return pl.BlockSpec(shape, idx)

        in_specs = [
            pl.BlockSpec((1, S, H), lambda b, j: (b, 0, 0)),       # x (full seq, K/V source)
            pl.BlockSpec((1, TQ, H), lambda b, j: (b, j, 0)),      # x (query tile)
            wspec((H, H)),                                         # W_q
            wspec((1, H)),                                         # b_q
            wspec((H, 2 * H)),                                     # fused W_kv
            wspec((1, 2 * H)),                                     # fused b_kv
            wspec((num_heads, H, H)),                              # memory_keys (stacked)
            wspec((num_heads, H, H)),                              # memory_values (stacked)
            pl.BlockSpec((TQ, 1), lambda b, j: (j, 0)),            # sigmoid(gate) per query row
            pl.BlockSpec((1, nkeys), lambda b, j: (b, 0)),         # additive attention mask
        ]
        return pl.pallas_call(
            kernel,
            out_shape=jax.ShapeDtypeStruct((B, S, H), dtype),
            grid=(B, S // TQ),
            in_specs=in_specs,
            out_specs=pl.BlockSpec((1, TQ, H), lambda b, j: (b, j, 0)),
            scratch_shapes=[pltpu.VMEM((nkeys, dh), kv_dtype),     # kc (memory-projected keys)
                            pltpu.VMEM((nkeys, dh), kv_dtype)],    # vc (memory-projected values)
            compiler_params=compiler_params,
        )

    if single_buffer_weights:
        try:
            out_flat = _build(True)(*operands)
        except Exception:  # pl.Buffered(1) unsupported by this jax/libtpu build -> default bufs
            out_flat = _build(False)(*operands)
    else:
        out_flat = _build(False)(*operands)
    return out_flat.reshape(B, S, num_heads, dh)


def reference_forward(x, params, attention_mask, *, num_heads):
    """Pure-JAX mirror of the PyTorch forward (valid under the same shape constraints)."""
    B, S, H = x.shape
    dh = H // num_heads
    q = x @ params["wq"] + params["bq"]
    k = x @ params["wk"] + params["bk"]
    v = x @ params["wv"] + params["bv"]
    split = lambda t: t.reshape(B, S, num_heads, dh).transpose(0, 2, 1, 3)    # [B,nh,S,dh]
    qh, kh, vh = split(q), split(k), split(v)
    kc = jnp.einsum("hij,bhjd->bhid", params["mem_k"], kh).reshape(B, num_heads * S, dh)
    vc = jnp.einsum("hij,bhjd->bhid", params["mem_v"], vh).reshape(B, num_heads * S, dh)
    scores = jnp.einsum("bhsd,bkd->bhsk", qh, kc) / math.sqrt(dh)             # B == 1
    scores = scores + attention_mask                                          # [B,1,1,nh*S]
    probs = jax.nn.softmax(scores, axis=-1)                                   # dropout == identity
    ctx = jnp.einsum("bhsk,bkd->bhsd", probs, vc).transpose(0, 2, 1, 3)       # [B,S,nh,dh]
    g = jax.nn.sigmoid(params["gate"])                                        # [1,nh,1,1]
    return g * ctx                                                            # (1-g)*retrieve(..)->0


if __name__ == "__main__":
    # S == H (memory matmul), num_heads in {1, S} (gate broadcast) and B == 1 are required by
    # the reference forward; S = H = 128 keeps every last dim lane-dense (multiple of 128).
    B, S, H, NH = 1, 128, 128, 1
    DH = H // NH
    key = jax.random.PRNGKey(0)
    ks = jax.random.split(key, 11)
    f32 = jnp.float32
    rnd = lambda k, shape, s=0.1: jax.random.normal(k, shape, f32) * s

    params = dict(
        wq=rnd(ks[0], (H, H)), bq=rnd(ks[1], (1, H)),
        wk=rnd(ks[2], (H, H)), bk=rnd(ks[3], (1, H)),
        wv=rnd(ks[4], (H, H)), bv=rnd(ks[5], (1, H)),
        mem_k=rnd(ks[6], (NH, H, H)), mem_v=rnd(ks[7], (NH, H, H)),
        gate=rnd(ks[8], (1, NH, 1, 1), 1.0),
    )
    hidden_states = rnd(ks[9], (B, S, H), 1.0)
    attention_mask = rnd(ks[10], (B, 1, 1, NH * S), 1.0)

    ref = reference_forward(hidden_states, params, attention_mask, num_heads=NH)

    # f32 MXU operands: strict parity against the f32 reference.
    prep_f32 = prepare_infini_attention_params(params, num_heads=NH, seq_len=S, mxu_dtype=None)
    out = infini_self_attention(hidden_states, prep_f32, attention_mask, num_heads=NH, q_tile=64)
    out = jax.block_until_ready(out)
    assert out.shape == (B, S, NH, DH), out.shape
    max_err = float(jnp.max(jnp.abs(out - ref)))
    assert max_err < 2e-2, f"f32 kernel/reference mismatch: max abs err = {max_err}"

    # bf16 MXU operands (the prepare-time default; right choice on v6e/v7x): looser bound.
    prep_bf16 = prepare_infini_attention_params(params, num_heads=NH, seq_len=S)
    out_bf16 = infini_self_attention(hidden_states, prep_bf16, attention_mask,
                                     num_heads=NH, q_tile=64)
    out_bf16 = jax.block_until_ready(out_bf16)
    max_err_bf16 = float(jnp.max(jnp.abs(out_bf16 - ref)))
    assert max_err_bf16 < 1e-1, f"bf16 kernel/reference mismatch: max abs err = {max_err_bf16}"

    print("KERNEL_OK")
</pallas_src>

<mosaic_0001>
module attributes {stable_mosaic.version = 11 : i64} {
  func.func @_infini_attn_kernel(%arg0: i32, %arg1: i32, %arg2: memref<1x128x128xf32, #tpu.memory_space<vmem>>, %arg3: memref<1x64x128xf32, #tpu.memory_space<vmem>>, %arg4: memref<128x128xf32, #tpu.memory_space<vmem>>, %arg5: memref<1x128xf32, #tpu.memory_space<vmem>>, %arg6: memref<128x256xf32, #tpu.memory_space<vmem>>, %arg7: memref<1x256xf32, #tpu.memory_space<vmem>>, %arg8: memref<1x128x128xf32, #tpu.memory_space<vmem>>, %arg9: memref<1x128x128xf32, #tpu.memory_space<vmem>>, %arg10: memref<64x1xf32, #tpu.memory_space<vmem>>, %arg11: memref<1x128xf32, #tpu.memory_space<vmem>>, %arg12: memref<1x64x128xf32, #tpu.memory_space<vmem>>, %arg13: memref<128x128xf32, #tpu.memory_space<vmem>>, %arg14: memref<128x128xf32, #tpu.memory_space<vmem>>) attributes {dimension_semantics = [#tpu.dimension_semantics<parallel>, #tpu.dimension_semantics<arbitrary>], iteration_bounds = array<i64: 1, 2>, scalar_prefetch = 0 : i64, scratch_operands = 2 : i64, tpu.core_type = #tpu.core_type<tc>, window_params = [{transform_indices = @transform_0, window_bounds = array<i64: 1, 128, 128>}, {transform_indices = @transform_1, window_bounds = array<i64: 1, 64, 128>}, {pipeline_mode = #tpu.pipeline_mode<synchronous>, transform_indices = @transform_2, window_bounds = array<i64: 128, 128>}, {pipeline_mode = #tpu.pipeline_mode<synchronous>, transform_indices = @transform_3, window_bounds = array<i64: 1, 128>}, {pipeline_mode = #tpu.pipeline_mode<synchronous>, transform_indices = @transform_4, window_bounds = array<i64: 128, 256>}, {pipeline_mode = #tpu.pipeline_mode<synchronous>, transform_indices = @transform_5, window_bounds = array<i64: 1, 256>}, {pipeline_mode = #tpu.pipeline_mode<synchronous>, transform_indices = @transform_6, window_bounds = array<i64: 1, 128, 128>}, {pipeline_mode = #tpu.pipeline_mode<synchronous>, transform_indices = @transform_7, window_bounds = array<i64: 1, 128, 128>}, {transform_indices = @transform_8, window_bounds = array<i64: 64, 1>}, {transform_indices = @transform_9, window_bounds = array<i64: 1, 128>}, {transform_indices = @transform_10, window_bounds = array<i64: 1, 64, 128>}]} {
    %c0_i32 = arith.constant 0 : i32
    %0 = arith.cmpi eq, %arg1, %c0_i32 : i32
    %1 = arith.extui %0 : i1 to i32
    %c0_i32_0 = arith.constant 0 : i32
    %2 = arith.cmpi ne, %1, %c0_i32_0 : i32
    scf.if %2 {
      %c0_23 = arith.constant 0 : index
      %c0_24 = arith.constant 0 : index
      %c0_25 = arith.constant 0 : index
      %35 = vector.load %arg2[%c0_23, %c0_24, %c0_25] : memref<1x128x128xf32, #tpu.memory_space<vmem>>, vector<1x128x128xf32>
      %36 = vector.shape_cast %35 : vector<1x128x128xf32> to vector<128x128xf32>
      %c0_26 = arith.constant 0 : index
      %c0_27 = arith.constant 0 : index
      %37 = vector.load %arg6[%c0_26, %c0_27] : memref<128x256xf32, #tpu.memory_space<vmem>>, vector<128x256xf32>
      %cst_28 = arith.constant dense<0.000000e+00> : vector<128x256xf32>
      %38 = tpu.matmul %36, %37, %cst_28 {dimension_numbers = #tpu.dot_dimension_numbers<[1], [0], [0], [1], [0, 0, 1, 1], [], []>} : vector<128x128xf32>, vector<128x256xf32>, vector<128x256xf32> -> vector<128x256xf32>
      %c0_29 = arith.constant 0 : index
      %c0_30 = arith.constant 0 : index
      %39 = vector.load %arg7[%c0_29, %c0_30] : memref<1x256xf32, #tpu.memory_space<vmem>>, vector<1x256xf32>
      %40 = vector.broadcast %39 : vector<1x256xf32> to vector<128x256xf32>
      %41 = arith.addf %38, %40 : vector<128x256xf32>
      %42 = vector.extract_strided_slice %41 {offsets = [0, 0], sizes = [128, 128], strides = [1, 1]} : vector<128x256xf32> to vector<128x128xf32>
      %43 = vector.extract_strided_slice %41 {offsets = [0, 128], sizes = [128, 128], strides = [1, 1]} : vector<128x256xf32> to vector<128x128xf32>
      %c0_31 = arith.constant 0 : index
      %c0_32 = arith.constant 0 : index
      %c0_33 = arith.constant 0 : index
      %44 = vector.load %arg8[%c0_31, %c0_32, %c0_33] : memref<1x128x128xf32, #tpu.memory_space<vmem>>, vector<1x128x128xf32>
      %45 = vector.shape_cast %44 : vector<1x128x128xf32> to vector<128x128xf32>
      %cst_34 = arith.constant dense<0.000000e+00> : vector<128x128xf32>
      %46 = tpu.matmul %45, %42, %cst_34 {dimension_numbers = #tpu.dot_dimension_numbers<[1], [0], [0], [1], [0, 0, 1, 1], [], []>} : vector<128x128xf32>, vector<128x128xf32>, vector<128x128xf32> -> vector<128x128xf32>
      %c0_35 = arith.constant 0 : index
      %c0_36 = arith.constant 0 : index
      %c0_37 = arith.constant 0 : index
      %47 = vector.load %arg9[%c0_35, %c0_36, %c0_37] : memref<1x128x128xf32, #tpu.memory_space<vmem>>, vector<1x128x128xf32>
      %48 = vector.shape_cast %47 : vector<1x128x128xf32> to vector<128x128xf32>
      %cst_38 = arith.constant dense<0.000000e+00> : vector<128x128xf32>
      %49 = tpu.matmul %48, %43, %cst_38 {dimension_numbers = #tpu.dot_dimension_numbers<[1], [0], [0], [1], [0, 0, 1, 1], [], []>} : vector<128x128xf32>, vector<128x128xf32>, vector<128x128xf32> -> vector<128x128xf32>
      %c0_39 = arith.constant 0 : index
      %c0_40 = arith.constant 0 : index
      %50 = vector.load %arg13[%c0_39, %c0_40] : memref<128x128xf32, #tpu.memory_space<vmem>>, vector<128x128xf32>
      tpu.vector_store %arg13[%c0_39, %c0_40], %46 {strides = array<i32>} : memref<128x128xf32, #tpu.memory_space<vmem>>, vector<128x128xf32>,
      %c0_41 = arith.constant 0 : index
      %c0_42 = arith.constant 0 : index
      %51 = vector.load %arg14[%c0_41, %c0_42] : memref<128x128xf32, #tpu.memory_space<vmem>>, vector<128x128xf32>
      tpu.vector_store %arg14[%c0_41, %c0_42], %49 {strides = array<i32>} : memref<128x128xf32, #tpu.memory_space<vmem>>, vector<128x128xf32>,
    } else {
    }
    %c0 = arith.constant 0 : index
    %c0_1 = arith.constant 0 : index
    %c0_2 = arith.constant 0 : index
    %3 = vector.load %arg3[%c0, %c0_1, %c0_2] : memref<1x64x128xf32, #tpu.memory_space<vmem>>, vector<1x64x128xf32>
    %4 = vector.shape_cast %3 : vector<1x64x128xf32> to vector<64x128xf32>
    %c0_3 = arith.constant 0 : index
    %c0_4 = arith.constant 0 : index
    %5 = vector.load %arg4[%c0_3, %c0_4] : memref<128x128xf32, #tpu.memory_space<vmem>>, vector<128x128xf32>
    %cst = arith.constant dense<0.000000e+00> : vector<64x128xf32>
    %6 = tpu.matmul %4, %5, %cst {dimension_numbers = #tpu.dot_dimension_numbers<[1], [0], [0], [1], [0, 0, 1, 1], [], []>} : vector<64x128xf32>, vector<128x128xf32>, vector<64x128xf32> -> vector<64x128xf32>
    %c0_5 = arith.constant 0 : index
    %c0_6 = arith.constant 0 : index
    %7 = vector.load %arg5[%c0_5, %c0_6] : memref<1x128xf32, #tpu.memory_space<vmem>>, vector<1x128xf32>
    %8 = vector.broadcast %7 : vector<1x128xf32> to vector<64x128xf32>
    %9 = arith.addf %6, %8 : vector<64x128xf32>
    %cst_7 = arith.constant 0.0883883461 : f32
    %10 = vector.broadcast %cst_7 : f32 to vector<64x128xf32>
    %11 = arith.mulf %9, %10 : vector<64x128xf32>
    %c0_8 = arith.constant 0 : index
    %c0_9 = arith.constant 0 : index
    %12 = vector.load %arg13[%c0_8, %c0_9] : memref<128x128xf32, #tpu.memory_space<vmem>>, vector<128x128xf32>
    %cst_10 = arith.constant dense<0.000000e+00> : vector<64x128xf32>
    %13 = tpu.matmul %11, %12, %cst_10 {dimension_numbers = #tpu.dot_dimension_numbers<[1], [1], [0], [0], [0, 0, 1, 0], [], []>} : vector<64x128xf32>, vector<128x128xf32>, vector<64x128xf32> -> vector<64x128xf32>
    %c0_11 = arith.constant 0 : index
    %c0_12 = arith.constant 0 : index
    %14 = vector.load %arg11[%c0_11, %c0_12] : memref<1x128xf32, #tpu.memory_space<vmem>>, vector<1x128xf32>
    %15 = vector.broadcast %14 : vector<1x128xf32> to vector<64x128xf32>
    %16 = arith.addf %13, %15 : vector<64x128xf32>
    %cst_13 = arith.constant dense<0xFF800000> : vector<64xf32>
    %17 = vector.multi_reduction <maximumf>, %16, %cst_13 [1] : vector<64x128xf32> to vector<64xf32>
    %18 = vector.shape_cast %17 : vector<64xf32> to vector<64x1xf32>
    %19 = vector.broadcast %18 : vector<64x1xf32> to vector<64x128xf32>
    %20 = arith.subf %16, %19 : vector<64x128xf32>
    %21 = math.exp %20 : vector<64x128xf32>
    %cst_14 = arith.constant dense<0.000000e+00> : vector<64xf32>
    %22 = vector.multi_reduction <add>, %21, %cst_14 [1] : vector<64x128xf32> to vector<64xf32>
    %23 = vector.shape_cast %22 : vector<64xf32> to vector<64x1xf32>
    %24 = tpu.reciprocal %23 {approx = true} : vector<64x1xf32> -> vector<64x1xf32>
    %25 = vector.broadcast %24 : vector<64x1xf32> to vector<64x128xf32>
    %26 = arith.mulf %21, %25 : vector<64x128xf32>
    %c0_15 = arith.constant 0 : index
    %c0_16 = arith.constant 0 : index
    %27 = vector.load %arg14[%c0_15, %c0_16] : memref<128x128xf32, #tpu.memory_space<vmem>>, vector<128x128xf32>
    %cst_17 = arith.constant dense<0.000000e+00> : vector<64x128xf32>
    %28 = tpu.matmul %26, %27, %cst_17 {dimension_numbers = #tpu.dot_dimension_numbers<[1], [0], [0], [1], [0, 0, 1, 1], [], []>} : vector<64x128xf32>, vector<128x128xf32>, vector<64x128xf32> -> vector<64x128xf32>
    %c0_18 = arith.constant 0 : index
    %c0_19 = arith.constant 0 : index
    %29 = vector.load %arg10[%c0_18, %c0_19] : memref<64x1xf32, #tpu.memory_space<vmem>>, vector<64x1xf32>
    %30 = vector.broadcast %29 : vector<64x1xf32> to vector<64x128xf32>
    %31 = arith.mulf %30, %28 : vector<64x128xf32>
    %c0_20 = arith.constant 0 : index
    %c0_21 = arith.constant 0 : index
    %c0_22 = arith.constant 0 : index
    %32 = vector.load %arg12[%c0_20, %c0_21, %c0_22] : memref<1x64x128xf32, #tpu.memory_space<vmem>>, vector<1x64x128xf32>
    %33 = vector.shape_cast %32 : vector<1x64x128xf32> to vector<64x128xf32>
    %34 = vector.shape_cast %31 : vector<64x128xf32> to vector<1x64x128xf32>
    tpu.vector_store %arg12[%c0_20, %c0_21, %c0_22], %34 {strides = array<i32>} : memref<1x64x128xf32, #tpu.memory_space<vmem>>, vector<1x64x128xf32>,
    return
  }
  func.func @transform_0(%arg0: i32, %arg1: i32) -> (i32, i32, i32) {
    %c0_i32 = arith.constant 0 : i32
    %c0_i32_0 = arith.constant 0 : i32
    %c0_i32_1 = arith.constant 0 : i32
    return %arg0, %c0_i32, %c0_i32_0 : i32, i32, i32
  }
  func.func @transform_1(%arg0: i32, %arg1: i32) -> (i32, i32, i32) {
    %c0_i32 = arith.constant 0 : i32
    %c0_i32_0 = arith.constant 0 : i32
    return %arg0, %arg1, %c0_i32 : i32, i32, i32
  }
  func.func @transform_2(%arg0: i32, %arg1: i32) -> (i32, i32) {
    %c0_i32 = arith.constant 0 : i32
    %c0_i32_0 = arith.constant 0 : i32
    %c0_i32_1 = arith.constant 0 : i32
    return %c0_i32, %c0_i32_0 : i32, i32
  }
  func.func @transform_3(%arg0: i32, %arg1: i32) -> (i32, i32) {
    %c0_i32 = arith.constant 0 : i32
    %c0_i32_0 = arith.constant 0 : i32
    %c0_i32_1 = arith.constant 0 : i32
    return %c0_i32, %c0_i32_0 : i32, i32
  }
  func.func @transform_4(%arg0: i32, %arg1: i32) -> (i32, i32) {
    %c0_i32 = arith.constant 0 : i32
    %c0_i32_0 = arith.constant 0 : i32
    %c0_i32_1 = arith.constant 0 : i32
    return %c0_i32, %c0_i32_0 : i32, i32
  }
  func.func @transform_5(%arg0: i32, %arg1: i32) -> (i32, i32) {
    %c0_i32 = arith.constant 0 : i32
    %c0_i32_0 = arith.constant 0 : i32
    %c0_i32_1 = arith.constant 0 : i32
    return %c0_i32, %c0_i32_0 : i32, i32
  }
  func.func @transform_6(%arg0: i32, %arg1: i32) -> (i32, i32, i32) {
    %c0_i32 = arith.constant 0 : i32
    %c0_i32_0 = arith.constant 0 : i32
    %c0_i32_1 = arith.constant 0 : i32
    %c0_i32_2 = arith.constant 0 : i32
    return %c0_i32, %c0_i32_0, %c0_i32_1 : i32, i32, i32
  }
  func.func @transform_7(%arg0: i32, %arg1: i32) -> (i32, i32, i32) {
    %c0_i32 = arith.constant 0 : i32
    %c0_i32_0 = arith.constant 0 : i32
    %c0_i32_1 = arith.constant 0 : i32
    %c0_i32_2 = arith.constant 0 : i32
    return %c0_i32, %c0_i32_0, %c0_i32_1 : i32, i32, i32
  }
  func.func @transform_8(%arg0: i32, %arg1: i32) -> (i32, i32) {
    %c0_i32 = arith.constant 0 : i32
    %c0_i32_0 = arith.constant 0 : i32
    return %arg1, %c0_i32 : i32, i32
  }
  func.func @transform_9(%arg0: i32, %arg1: i32) -> (i32, i32) {
    %c0_i32 = arith.constant 0 : i32
    %c0_i32_0 = arith.constant 0 : i32
    return %arg0, %c0_i32 : i32, i32
  }
  func.func @transform_10(%arg0: i32, %arg1: i32) -> (i32, i32, i32) {
    %c0_i32 = arith.constant 0 : i32
    %c0_i32_0 = arith.constant 0 : i32
    return %arg0, %arg1, %c0_i32 : i32, i32, i32
  }
}

module attributes {stable_mosaic.version = 11 : i64} {
  func.func @_infini_attn_kernel(%arg0: i32, %arg1: i32, %arg2: memref<1x128x128xf32, #tpu.memory_space<vmem>>, %arg3: memref<1x64x128xf32, #tpu.memory_space<vmem>>, %arg4: memref<128x128xf32, #tpu.memory_space<vmem>>, %arg5: memref<1x128xf32, #tpu.memory_space<vmem>>, %arg6: memref<128x256xf32, #tpu.memory_space<vmem>>, %arg7: memref<1x256xf32, #tpu.memory_space<vmem>>, %arg8: memref<1x128x128xf32, #tpu.memory_space<vmem>>, %arg9: memref<1x128x128xf32, #tpu.memory_space<vmem>>, %arg10: memref<64x1xf32, #tpu.memory_space<vmem>>, %arg11: memref<1x128xf32, #tpu.memory_space<vmem>>, %arg12: memref<1x64x128xf32, #tpu.memory_space<vmem>>, %arg13: memref<128x128xf32, #tpu.memory_space<vmem>>, %arg14: memref<128x128xf32, #tpu.memory_space<vmem>>) attributes {dimension_semantics = [#tpu.dimension_semantics<parallel>, #tpu.dimension_semantics<arbitrary>], iteration_bounds = array<i64: 1, 2>, scalar_prefetch = 0 : i64, scratch_operands = 2 : i64, tpu.core_type = #tpu.core_type<tc>, window_params = [{transform_indices = @transform_0, window_bounds = array<i64: 1, 128, 128>}, {transform_indices = @transform_1, window_bounds = array<i64: 1, 64, 128>}, {pipeline_mode = #tpu.pipeline_mode<synchronous>, transform_indices = @transform_2, window_bounds = array<i64: 128, 128>}, {pipeline_mode = #tpu.pipeline_mode<synchronous>, transform_indices = @transform_3, window_bounds = array<i64: 1, 128>}, {pipeline_mode = #tpu.pipeline_mode<synchronous>, transform_indices = @transform_4, window_bounds = array<i64: 128, 256>}, {pipeline_mode = #tpu.pipeline_mode<synchronous>, transform_indices = @transform_5, window_bounds = array<i64: 1, 256>}, {pipeline_mode = #tpu.pipeline_mode<synchronous>, transform_indices = @transform_6, window_bounds = array<i64: 1, 128, 128>}, {pipeline_mode = #tpu.pipeline_mode<synchronous>, transform_indices = @transform_7, window_bounds = array<i64: 1, 128, 128>}, {transform_indices = @transform_8, window_bounds = array<i64: 64, 1>}, {transform_indices = @transform_9, window_bounds = array<i64: 1, 128>}, {transform_indices = @transform_10, window_bounds = array<i64: 1, 64, 128>}]} {
    %c0_i32 = arith.constant 0 : i32
    %0 = arith.cmpi eq, %arg1, %c0_i32 : i32
    %1 = arith.extui %0 : i1 to i32
    %c0_i32_0 = arith.constant 0 : i32
    %2 = arith.cmpi ne, %1, %c0_i32_0 : i32
    scf.if %2 {
      %c0_23 = arith.constant 0 : index
      %c0_24 = arith.constant 0 : index
      %c0_25 = arith.constant 0 : index
      %35 = vector.load %arg2[%c0_23, %c0_24, %c0_25] : memref<1x128x128xf32, #tpu.memory_space<vmem>>, vector<1x128x128xf32>
      %36 = vector.shape_cast %35 : vector<1x128x128xf32> to vector<128x128xf32>
      %c0_26 = arith.constant 0 : index
      %c0_27 = arith.constant 0 : index
      %37 = vector.load %arg6[%c0_26, %c0_27] : memref<128x256xf32, #tpu.memory_space<vmem>>, vector<128x256xf32>
      %cst_28 = arith.constant dense<0.000000e+00> : vector<128x256xf32>
      %38 = tpu.matmul %36, %37, %cst_28 {dimension_numbers = #tpu.dot_dimension_numbers<[1], [0], [0], [1], [0, 0, 1, 1], [], []>} : vector<128x128xf32>, vector<128x256xf32>, vector<128x256xf32> -> vector<128x256xf32>
      %c0_29 = arith.constant 0 : index
      %c0_30 = arith.constant 0 : index
      %39 = vector.load %arg7[%c0_29, %c0_30] : memref<1x256xf32, #tpu.memory_space<vmem>>, vector<1x256xf32>
      %40 = vector.broadcast %39 : vector<1x256xf32> to vector<128x256xf32>
      %41 = arith.addf %38, %40 : vector<128x256xf32>
      %42 = vector.extract_strided_slice %41 {offsets = [0, 0], sizes = [128, 128], strides = [1, 1]} : vector<128x256xf32> to vector<128x128xf32>
      %43 = vector.extract_strided_slice %41 {offsets = [0, 128], sizes = [128, 128], strides = [1, 1]} : vector<128x256xf32> to vector<128x128xf32>
      %c0_31 = arith.constant 0 : index
      %c0_32 = arith.constant 0 : index
      %c0_33 = arith.constant 0 : index
      %44 = vector.load %arg8[%c0_31, %c0_32, %c0_33] : memref<1x128x128xf32, #tpu.memory_space<vmem>>, vector<1x128x128xf32>
      %45 = vector.shape_cast %44 : vector<1x128x128xf32> to vector<128x128xf32>
      %cst_34 = arith.constant dense<0.000000e+00> : vector<128x128xf32>
      %46 = tpu.matmul %45, %42, %cst_34 {dimension_numbers = #tpu.dot_dimension_numbers<[1], [0], [0], [1], [0, 0, 1, 1], [], []>} : vector<128x128xf32>, vector<128x128xf32>, vector<128x128xf32> -> vector<128x128xf32>
      %c0_35 = arith.constant 0 : index
      %c0_36 = arith.constant 0 : index
      %c0_37 = arith.constant 0 : index
      %47 = vector.load %arg9[%c0_35, %c0_36, %c0_37] : memref<1x128x128xf32, #tpu.memory_space<vmem>>, vector<1x128x128xf32>
      %48 = vector.shape_cast %47 : vector<1x128x128xf32> to vector<128x128xf32>
      %cst_38 = arith.constant dense<0.000000e+00> : vector<128x128xf32>
      %49 = tpu.matmul %48, %43, %cst_38 {dimension_numbers = #tpu.dot_dimension_numbers<[1], [0], [0], [1], [0, 0, 1, 1], [], []>} : vector<128x128xf32>, vector<128x128xf32>, vector<128x128xf32> -> vector<128x128xf32>
      %c0_39 = arith.constant 0 : index
      %c0_40 = arith.constant 0 : index
      %50 = vector.load %arg13[%c0_39, %c0_40] : memref<128x128xf32, #tpu.memory_space<vmem>>, vector<128x128xf32>
      tpu.vector_store %arg13[%c0_39, %c0_40], %46 {strides = array<i32>} : memref<128x128xf32, #tpu.memory_space<vmem>>, vector<128x128xf32>,
      %c0_41 = arith.constant 0 : index
      %c0_42 = arith.constant 0 : index
      %51 = vector.load %arg14[%c0_41, %c0_42] : memref<128x128xf32, #tpu.memory_space<vmem>>, vector<128x128xf32>
      tpu.vector_store %arg14[%c0_41, %c0_42], %49 {strides = array<i32>} : memref<128x128xf32, #tpu.memory_space<vmem>>, vector<128x128xf32>,
    } else {
    }
    %c0 = arith.constant 0 : index
    %c0_1 = arith.constant 0 : index
    %c0_2 = arith.constant 0 : index
    %3 = vector.load %arg3[%c0, %c0_1, %c0_2] : memref<1x64x128xf32, #tpu.memory_space<vmem>>, vector<1x64x128xf32>
    %4 = vector.shape_cast %3 : vector<1x64x128xf32> to vector<64x128xf32>
    %c0_3 = arith.constant 0 : index
    %c0_4 = arith.constant 0 : index
    %5 = vector.load %arg4[%c0_3, %c0_4] : memref<128x128xf32, #tpu.memory_space<vmem>>, vector<128x128xf32>
    %cst = arith.constant dense<0.000000e+00> : vector<64x128xf32>
    %6 = tpu.matmul %4, %5, %cst {dimension_numbers = #tpu.dot_dimension_numbers<[1], [0], [0], [1], [0, 0, 1, 1], [], []>} : vector<64x128xf32>, vector<128x128xf32>, vector<64x128xf32> -> vector<64x128xf32>
    %c0_5 = arith.constant 0 : index
    %c0_6 = arith.constant 0 : index
    %7 = vector.load %arg5[%c0_5, %c0_6] : memref<1x128xf32, #tpu.memory_space<vmem>>, vector<1x128xf32>
    %8 = vector.broadcast %7 : vector<1x128xf32> to vector<64x128xf32>
    %9 = arith.addf %6, %8 : vector<64x128xf32>
    %cst_7 = arith.constant 0.0883883461 : f32
    %10 = vector.broadcast %cst_7 : f32 to vector<64x128xf32>
    %11 = arith.mulf %9, %10 : vector<64x128xf32>
    %c0_8 = arith.constant 0 : index
    %c0_9 = arith.constant 0 : index
    %12 = vector.load %arg13[%c0_8, %c0_9] : memref<128x128xf32, #tpu.memory_space<vmem>>, vector<128x128xf32>
    %cst_10 = arith.constant dense<0.000000e+00> : vector<64x128xf32>
    %13 = tpu.matmul %11, %12, %cst_10 {dimension_numbers = #tpu.dot_dimension_numbers<[1], [1], [0], [0], [0, 0, 1, 0], [], []>} : vector<64x128xf32>, vector<128x128xf32>, vector<64x128xf32> -> vector<64x128xf32>
    %c0_11 = arith.constant 0 : index
    %c0_12 = arith.constant 0 : index
    %14 = vector.load %arg11[%c0_11, %c0_12] : memref<1x128xf32, #tpu.memory_space<vmem>>, vector<1x128xf32>
    %15 = vector.broadcast %14 : vector<1x128xf32> to vector<64x128xf32>
    %16 = arith.addf %13, %15 : vector<64x128xf32>
    %cst_13 = arith.constant dense<0xFF800000> : vector<64xf32>
    %17 = vector.multi_reduction <maximumf>, %16, %cst_13 [1] : vector<64x128xf32> to vector<64xf32>
    %18 = vector.shape_cast %17 : vector<64xf32> to vector<64x1xf32>
    %19 = vector.broadcast %18 : vector<64x1xf32> to vector<64x128xf32>
    %20 = arith.subf %16, %19 : vector<64x128xf32>
    %21 = math.exp %20 : vector<64x128xf32>
    %cst_14 = arith.constant dense<0.000000e+00> : vector<64xf32>
    %22 = vector.multi_reduction <add>, %21, %cst_14 [1] : vector<64x128xf32> to vector<64xf32>
    %23 = vector.shape_cast %22 : vector<64xf32> to vector<64x1xf32>
    %24 = tpu.reciprocal %23 {approx = true} : vector<64x1xf32> -> vector<64x1xf32>
    %25 = vector.broadcast %24 : vector<64x1xf32> to vector<64x128xf32>
    %26 = arith.mulf %21, %25 : vector<64x128xf32>
    %c0_15 = arith.constant 0 : index
    %c0_16 = arith.constant 0 : index
    %27 = vector.load %arg14[%c0_15, %c0_16] : memref<128x128xf32, #tpu.memory_space<vmem>>, vector<128x128xf32>
    %cst_17 = arith.constant dense<0.000000e+00> : vector<64x128xf32>
    %28 = tpu.matmul %26, %27, %cst_17 {dimension_numbers = #tpu.dot_dimension_numbers<[1], [0], [0], [1], [0, 0, 1, 1], [], []>} : vector<64x128xf32>, vector<128x128xf32>, vector<64x128xf32> -> vector<64x128xf32>
    %c0_18 = arith.constant 0 : index
    %c0_19 = arith.constant 0 : index
    %29 = vector.load %arg10[%c0_18, %c0_19] : memref<64x1xf32, #tpu.memory_space<vmem>>, vector<64x1xf32>
    %30 = vector.broadcast %29 : vector<64x1xf32> to vector<64x128xf32>
    %31 = arith.mulf %30, %28 : vector<64x128xf32>
    %c0_20 = arith.constant 0 : index
    %c0_21 = arith.constant 0 : index
    %c0_22 = arith.constant 0 : index
    %32 = vector.load %arg12[%c0_20, %c0_21, %c0_22] : memref<1x64x128xf32, #tpu.memory_space<vmem>>, vector<1x64x128xf32>
    %33 = vector.shape_cast %32 : vector<1x64x128xf32> to vector<64x128xf32>
    %34 = vector.shape_cast %31 : vector<64x128xf32> to vector<1x64x128xf32>
    tpu.vector_store %arg12[%c0_20, %c0_21, %c0_22], %34 {strides = array<i32>} : memref<1x64x128xf32, #tpu.memory_space<vmem>>, vector<1x64x128xf32>,
    return
  }
  func.func @transform_0(%arg0: i32, %arg1: i32) -> (i32, i32, i32) {
    %c0_i32 = arith.constant 0 : i32
    %c0_i32_0 = arith.constant 0 : i32
    %c0_i32_1 = arith.constant 0 : i32
    return %arg0, %c0_i32, %c0_i32_0 : i32, i32, i32
  }
  func.func @transform_1(%arg0: i32, %arg1: i32) -> (i32, i32, i32) {
    %c0_i32 = arith.constant 0 : i32
    %c0_i32_0 = arith.constant 0 : i32
    return %arg0, %arg1, %c0_i32 : i32, i32, i32
  }
  func.func @transform_2(%arg0: i32, %arg1: i32) -> (i32, i32) {
    %c0_i32 = arith.constant 0 : i32
    %c0_i32_0 = arith.constant 0 : i32
    %c0_i32_1 = arith.constant 0 : i32
    return %c0_i32, %c0_i32_0 : i32, i32
  }
  func.func @transform_3(%arg0: i32, %arg1: i32) -> (i32, i32) {
    %c0_i32 = arith.constant 0 : i32
    %c0_i32_0 = arith.constant 0 : i32
    %c0_i32_1 = arith.constant 0 : i32
    return %c0_i32, %c0_i32_0 : i32, i32
  }
  func.func @transform_4(%arg0: i32, %arg1: i32) -> (i32, i32) {
    %c0_i32 = arith.constant 0 : i32
    %c0_i32_0 = arith.constant 0 : i32
    %c0_i32_1 = arith.constant 0 : i32
    return %c0_i32, %c0_i32_0 : i32, i32
  }
  func.func @transform_5(%arg0: i32, %arg1: i32) -> (i32, i32) {
    %c0_i32 = arith.constant 0 : i32
    %c0_i32_0 = arith.constant 0 : i32
    %c0_i32_1 = arith.constant 0 : i32
    return %c0_i32, %c0_i32_0 : i32, i32
  }
  func.func @transform_6(%arg0: i32, %arg1: i32) -> (i32, i32, i32) {
    %c0_i32 = arith.constant 0 : i32
    %c0_i32_0 = arith.constant 0 : i32
    %c0_i32_1 = arith.constant 0 : i32
    %c0_i32_2 = arith.constant 0 : i32
    return %c0_i32, %c0_i32_0, %c0_i32_1 : i32, i32, i32
  }
  func.func @transform_7(%arg0: i32, %arg1: i32) -> (i32, i32, i32) {
    %c0_i32 = arith.constant 0 : i32
    %c0_i32_0 = arith.constant 0 : i32
    %c0_i32_1 = arith.constant 0 : i32
    %c0_i32_2 = arith.constant 0 : i32
    return %c0_i32, %c0_i32_0, %c0_i32_1 : i32, i32, i32
  }
  func.func @transform_8(%arg0: i32, %arg1: i32) -> (i32, i32) {
    %c0_i32 = arith.constant 0 : i32
    %c0_i32_0 = arith.constant 0 : i32
    return %arg1, %c0_i32 : i32, i32
  }
  func.func @transform_9(%arg0: i32, %arg1: i32) -> (i32, i32) {
    %c0_i32 = arith.constant 0 : i32
    %c0_i32_0 = arith.constant 0 : i32
    return %arg0, %c0_i32 : i32, i32
  }
  func.func @transform_10(%arg0: i32, %arg1: i32) -> (i32, i32, i32) {
    %c0_i32 = arith.constant 0 : i32
    %c0_i32_0 = arith.constant 0 : i32
    return %arg0, %arg1, %c0_i32 : i32, i32, i32
  }
}

</mosaic_0001>

<llo_original>
// kernel: tpu_custom_call.1
$region0: #{tpu_custom_call.1}
  #allocation0 [shape = 'u32[]', space=smem, size = 0x4, offset = 0x4, fixed_abs, tag = 'smem constant byte address 0x4 - core index']
  #allocation1 [shape = 'u32[72,128]{1,0:T(1,128)}', space=vmem, size = 0x9000, scoped, tag = 'internal scratch']
  #allocation2 [shape = 'f32[128,128]{1,0:T(8,128)}', space=vmem, size = 0x10000, scoped, tag = 'scratch operand']
  #allocation3 [shape = 'f32[128,128]{1,0:T(8,128)}', space=vmem, size = 0x10000, scoped, tag = 'scratch operand']
  %s0 = inlined_call_operand.vmem [shape: f32[1,128,128], index: 0, kind: input, shape index: {}]
  %s1 = inlined_call_operand.hbm [shape: f32[1,128,128], index: 1, kind: input, shape index: {}]
  %s2 = inlined_call_operand.hbm [shape: f32[128,128], index: 2, kind: input, shape index: {}]
  %s3 = inlined_call_operand.vmem [shape: f32[1,128], index: 3, kind: input, shape index: {}]
  %s4 = inlined_call_operand.hbm [shape: f32[128,256], index: 4, kind: input, shape index: {}]
  %s5 = inlined_call_operand.vmem [shape: f32[1,256], index: 5, kind: input, shape index: {}]
  %s6 = inlined_call_operand.hbm [shape: f32[1,128,128], index: 6, kind: input, shape index: {}]
  %s7 = inlined_call_operand.hbm [shape: f32[1,128,128], index: 7, kind: input, shape index: {}]
  %s8 = inlined_call_operand.vmem [shape: f32[128,1], index: 8, kind: input, shape index: {}]
  %s9 = inlined_call_operand.vmem [shape: f32[1,128], index: 9, kind: input, shape index: {}]
  %s10 = inlined_call_operand.hbm [shape: f32[1,128,128], index: 10, kind: output, shape index: {}]
  %s11 = sld [smem:[#allocation0]]
  $region97: #{tpu_custom_call.1} parent=0
    _
  %s13 = ssub.s32 1, %s11
  %s14 = scalar_select 0, %s13, %s11
  $region1: #{tpu_custom_call.1} parent=0
    #allocation4 [shape = 'u8[65536]{0}', space=vmem, size = 0x10000, scoped, tag = 'input window, operand 1']
    #allocation5 [shape = 's32[2]{0}', space=sflag, size = 0x8, scoped, tag = 'scoped memory for tpu_custom_call.1']
    #allocation6 [shape = 's32[2]{0}', space=sflag, size = 0x8, scoped, tag = 'scoped memory for tpu_custom_call.1']
    #allocation7 [shape = 'u8[65536]{0}', space=vmem, size = 0x10000, scoped, tag = 'input window, operand 2, single buffered']
    #allocation8 [shape = 's32[1]{0}', space=sflag, size = 0x4, scoped, tag = 'scoped memory for tpu_custom_call.1']
    #allocation9 [shape = 'u8[131072]{0}', space=vmem, size = 0x20000, scoped, tag = 'input window, operand 4, single buffered']
    #allocation10 [shape = 'u8[65536]{0}', space=vmem, size = 0x10000, scoped, tag = 'input window, operand 6, single buffered']
    #allocation11 [shape = 's32[1]{0}', space=sflag, size = 0x4, scoped, tag = 'scoped memory for tpu_custom_call.1']
    #allocation12 [shape = 'u8[65536]{0}', space=vmem, size = 0x10000, scoped, tag = 'input window, operand 7, single buffered']
    #allocation13 [shape = 'u8[65536]{0}', space=vmem, size = 0x10000, scoped, tag = 'output window, operand 0']
    %15 = vsyncpa [#allocation5], 0
    %s16 = scalar_lea.sflag [#allocation5], 1
    %17 = vsyncpa %s16, 0
    %18 = vsyncpa [#allocation8], 0
    %19 = vsyncpa [#allocation11], 0
    %20 = vsyncpa [#allocation6], 0
    %s21 = scalar_lea.sflag [#allocation6], 1
    %22 = vsyncpa %s21, 0
    loop: start=0, step=1, limit=4
    $region2: #{tpu_custom_call.1} parent=1 // loop_pre_header
      _
    $region3: #{tpu_custom_call.1} parent=1 // loop_header
      %s24 = sphi 0, %s28
      %p25 = scmp.ge.s32.totalorder %s24, 4
      %s31 = sphi 0, %s43
      %s32 = sphi 0, %s39
      %s33 = sphi 0, %s31
      %s34 = sphi 0, %s32
      %s35 = sphi 0, %s33
      %s36 = sphi 0, %s34
      %s46 = sphi 0, %s48
      %s49 = sphi 0, %s46
      %s50 = sphi 0, %s49
      %s66 = sphi 0, %s50
      %s74 = sphi 0, %s76
      %s77 = sphi 0, %s74
      %s78 = sphi 0, %s77
      %s94 = sphi 0, %s78
      %s98 = sphi 0, %s98
      %s100 = sphi 0, %s98
      %s101 = sphi 0, %s100
      %s115 = sphi 0, %s101
      %s119 = sphi 0, %s119
      %s121 = sphi 0, %s119
      %s122 = sphi 0, %s121
      %s136 = sphi 0, %s122
      %s140 = sphi 0, %s140
      %s142 = sphi 0, %s140
      %s143 = sphi 0, %s142
      %s157 = sphi 0, %s143
      %s161 = sphi 0, %s161
      %s163 = sphi 0, %s161
      %s164 = sphi 0, %s163
      %s178 = sphi 0, %s164
      %s182 = sphi 0, %s182
      %s184 = sphi 0, %s182
      %s185 = sphi 0, %s184
      %s199 = sphi 0, %s185
      %s203 = sphi 0, %s203
      %s205 = sphi 0, %s203
      %s206 = sphi 0, %s205
      %s220 = sphi 0, %s206
      %s226 = sphi 0, %s228
      %s229 = sphi 0, %s226
      %s230 = sphi 0, %s229
      %s246 = sphi 0, %s230
      %s252 = sphi 0, %s254
      %s255 = sphi 0, %s252
      %s256 = sphi 0, %s255
      %s272 = sphi 0, %s256
      %s280 = sphi 0, %s282
      %s283 = sphi 0, %s280
      %s284 = sphi 0, %s283
      %s300 = sphi 0, %s284
    $region4: #{tpu_custom_call.1} parent=1 // loop_header_branch
      %27 = sbr.rel (%p25) target = $region8
    $region5: #{tpu_custom_call.1} parent=1 // loop_body
      %s29 = ssub.s32 %s24, 1
      %s30 = ssub.s32 %s24, 2
      %s37 = sadd.s32 1, %s32
      %p38 = scmp.ge.s32.totalorder %s37, 2
      %s39 = scalar_select %p38, 0, %s37
      %s40 = sadd.s32 1, %s31
      %s41 = scalar_select %p38, %s40, %s31
      %p42 = scmp.ge.s32.totalorder %s41, 1
      %s43 = scalar_select %p42, 0, %s41
      %s44 = ssub.s32 %s31, %s43
      %p45 = scmp.eq.s32.totalorder %s44, 0
      %s47 = sadd.s32 %s46, 1
      %s48 = scalar_select %p45, %s46, %s47
      %p51 = pneg %p45
      %p52 = scmp.eq.s32.totalorder %s24, 1
      %p53 = por %p51, %p52
      %p54 = scmp.ne.s32.totalorder %s46, %s49
      %p55 = scmp.eq.s32.totalorder %s24, 0
      %p56 = por %p54, %p55
      %p57 = scmp.ne.s32.totalorder %s46, %s49
      %p58 = scmp.eq.s32.totalorder %s29, 1
      %p59 = por %p57, %p58
      %p60 = scmp.ne.s32.totalorder %s49, %s50
      %p61 = scmp.eq.s32.totalorder %s29, 0
      %p62 = por %p60, %p61
      %p63 = scmp.ne.s32.totalorder %s49, %s50
      %p64 = scmp.eq.s32.totalorder %s30, 1
      %p65 = por %p63, %p64
      %p67 = scmp.ne.s32.totalorder %s50, %s66
      %p68 = scmp.eq.s32.totalorder %s30, 0
      %p69 = por %p67, %p68
      %s70 = ssub.s32 %s31, %s43
      %s71 = ssub.s32 %s32, %s39
      %s72 = sor.u32 %s70, %s71
      %p73 = scmp.eq.s32.totalorder %s72, 0
      %s75 = sadd.s32 %s74, 1
      %s76 = scalar_select %p73, %s74, %s75
      %p79 = pneg %p73
      %p80 = scmp.eq.s32.totalorder %s24, 1
      %p81 = por %p79, %p80
      %p82 = scmp.ne.s32.totalorder %s74, %s77
      %p83 = scmp.eq.s32.totalorder %s24, 0
      %p84 = por %p82, %p83
      %p85 = scmp.ne.s32.totalorder %s74, %s77
      %p86 = scmp.eq.s32.totalorder %s29, 1
      %p87 = por %p85, %p86
      %p88 = scmp.ne.s32.totalorder %s77, %s78
      %p89 = scmp.eq.s32.totalorder %s29, 0
      %p90 = por %p88, %p89
      %p91 = scmp.ne.s32.totalorder %s77, %s78
      %p92 = scmp.eq.s32.totalorder %s30, 1
      %p93 = por %p91, %p92
      %p95 = scmp.ne.s32.totalorder %s78, %s94
      %p96 = scmp.eq.s32.totalorder %s30, 0
      %p97 = por %p95, %p96
      %s99 = sadd.s32 %s98, 1
      %p102 = scmp.eq.s32.totalorder %s24, 1
      %p103 = scmp.ne.s32.totalorder %s98, %s100
      %p104 = scmp.eq.s32.totalorder %s24, 0
      %p105 = por %p103, %p104
      %p106 = scmp.ne.s32.totalorder %s98, %s100
      %p107 = scmp.eq.s32.totalorder %s29, 1
      %p108 = por %p106, %p107
      %p109 = scmp.ne.s32.totalorder %s100, %s101
      %p110 = scmp.eq.s32.totalorder %s29, 0
      %p111 = por %p109, %p110
      %p112 = scmp.ne.s32.totalorder %s100, %s101
      %p113 = scmp.eq.s32.totalorder %s30, 1
      %p114 = por %p112, %p113
      %p116 = scmp.ne.s32.totalorder %s101, %s115
      %p117 = scmp.eq.s32.totalorder %s30, 0
      %p118 = por %p116, %p117
      %s120 = sadd.s32 %s119, 1
      %p123 = scmp.eq.s32.totalorder %s24, 1
      %p124 = scmp.ne.s32.totalorder %s119, %s121
      %p125 = scmp.eq.s32.totalorder %s24, 0
      %p126 = por %p124, %p125
      %p127 = scmp.ne.s32.totalorder %s119, %s121
      %p128 = scmp.eq.s32.totalorder %s29, 1
      %p129 = por %p127, %p128
      %p130 = scmp.ne.s32.totalorder %s121, %s122
      %p131 = scmp.eq.s32.totalorder %s29, 0
      %p132 = por %p130, %p131
      %p133 = scmp.ne.s32.totalorder %s121, %s122
      %p134 = scmp.eq.s32.totalorder %s30, 1
      %p135 = por %p133, %p134
      %p137 = scmp.ne.s32.totalorder %s122, %s136
      %p138 = scmp.eq.s32.totalorder %s30, 0
      %p139 = por %p137, %p138
      %s141 = sadd.s32 %s140, 1
      %p144 = scmp.eq.s32.totalorder %s24, 1
      %p145 = scmp.ne.s32.totalorder %s140, %s142
      %p146 = scmp.eq.s32.totalorder %s24, 0
      %p147 = por %p145, %p146
      %p148 = scmp.ne.s32.totalorder %s140, %s142
      %p149 = scmp.eq.s32.totalorder %s29, 1
      %p150 = por %p148, %p149
      %p151 = scmp.ne.s32.totalorder %s142, %s143
      %p152 = scmp.eq.s32.totalorder %s29, 0
      %p153 = por %p151, %p152
      %p154 = scmp.ne.s32.totalorder %s142, %s143
      %p155 = scmp.eq.s32.totalorder %s30, 1
      %p156 = por %p154, %p155
      %p158 = scmp.ne.s32.totalorder %s143, %s157
      %p159 = scmp.eq.s32.totalorder %s30, 0
      %p160 = por %p158, %p159
      %s162 = sadd.s32 %s161, 1
      %p165 = scmp.eq.s32.totalorder %s24, 1
      %p166 = scmp.ne.s32.totalorder %s161, %s163
      %p167 = scmp.eq.s32.totalorder %s24, 0
      %p168 = por %p166, %p167
      %p169 = scmp.ne.s32.totalorder %s161, %s163
      %p170 = scmp.eq.s32.totalorder %s29, 1
      %p171 = por %p169, %p170
      %p172 = scmp.ne.s32.totalorder %s163, %s164
      %p173 = scmp.eq.s32.totalorder %s29, 0
      %p174 = por %p172, %p173
      %p175 = scmp.ne.s32.totalorder %s163, %s164
      %p176 = scmp.eq.s32.totalorder %s30, 1
      %p177 = por %p175, %p176
      %p179 = scmp.ne.s32.totalorder %s164, %s178
      %p180 = scmp.eq.s32.totalorder %s30, 0
      %p181 = por %p179, %p180
      %s183 = sadd.s32 %s182, 1
      %p186 = scmp.eq.s32.totalorder %s24, 1
      %p187 = scmp.ne.s32.totalorder %s182, %s184
      %p188 = scmp.eq.s32.totalorder %s24, 0
      %p189 = por %p187, %p188
      %p190 = scmp.ne.s32.totalorder %s182, %s184
      %p191 = scmp.eq.s32.totalorder %s29, 1
      %p192 = por %p190, %p191
      %p193 = scmp.ne.s32.totalorder %s184, %s185
      %p194 = scmp.eq.s32.totalorder %s29, 0
      %p195 = por %p193, %p194
      %p196 = scmp.ne.s32.totalorder %s184, %s185
      %p197 = scmp.eq.s32.totalorder %s30, 1
      %p198 = por %p196, %p197
      %p200 = scmp.ne.s32.totalorder %s185, %s199
      %p201 = scmp.eq.s32.totalorder %s30, 0
      %p202 = por %p200, %p201
      %s204 = sadd.s32 %s203, 1
      %p207 = scmp.eq.s32.totalorder %s24, 1
      %p208 = scmp.ne.s32.totalorder %s203, %s205
      %p209 = scmp.eq.s32.totalorder %s24, 0
      %p210 = por %p208, %p209
      %p211 = scmp.ne.s32.totalorder %s203, %s205
      %p212 = scmp.eq.s32.totalorder %s29, 1
      %p213 = por %p211, %p212
      %p214 = scmp.ne.s32.totalorder %s205, %s206
      %p215 = scmp.eq.s32.totalorder %s29, 0
      %p216 = por %p214, %p215
      %p217 = scmp.ne.s32.totalorder %s205, %s206
      %p218 = scmp.eq.s32.totalorder %s30, 1
      %p219 = por %p217, %p218
      %p221 = scmp.ne.s32.totalorder %s206, %s220
      %p222 = scmp.eq.s32.totalorder %s30, 0
      %p223 = por %p221, %p222
      %s224 = ssub.s32 %s32, %s39
      %p225 = scmp.eq.s32.totalorder %s224, 0
      %s227 = sadd.s32 %s226, 1
      %s228 = scalar_select %p225, %s226, %s227
      %p231 = pneg %p225
      %p232 = scmp.eq.s32.totalorder %s24, 1
      %p233 = por %p231, %p232
      %p234 = scmp.ne.s32.totalorder %s226, %s229
      %p235 = scmp.eq.s32.totalorder %s24, 0
      %p236 = por %p234, %p235
      %p237 = scmp.ne.s32.totalorder %s226, %s229
      %p238 = scmp.eq.s32.totalorder %s29, 1
      %p239 = por %p237, %p238
      %p240 = scmp.ne.s32.totalorder %s229, %s230
      %p241 = scmp.eq.s32.totalorder %s29, 0
      %p242 = por %p240, %p241
      %p243 = scmp.ne.s32.totalorder %s229, %s230
      %p244 = scmp.eq.s32.totalorder %s30, 1
      %p245 = por %p243, %p244
      %p247 = scmp.ne.s32.totalorder %s230, %s246
      %p248 = scmp.eq.s32.totalorder %s30, 0
      %p249 = por %p247, %p248
      %s250 = ssub.s32 %s31, %s43
      %p251 = scmp.eq.s32.totalorder %s250, 0
      %s253 = sadd.s32 %s252, 1
      %s254 = scalar_select %p251, %s252, %s253
      %p257 = pneg %p251
      %p258 = scmp.eq.s32.totalorder %s24, 1
      %p259 = por %p257, %p258
      %p260 = scmp.ne.s32.totalorder %s252, %s255
      %p261 = scmp.eq.s32.totalorder %s24, 0
      %p262 = por %p260, %p261
      %p263 = scmp.ne.s32.totalorder %s252, %s255
      %p264 = scmp.eq.s32.totalorder %s29, 1
      %p265 = por %p263, %p264
      %p266 = scmp.ne.s32.totalorder %s255, %s256
      %p267 = scmp.eq.s32.totalorder %s29, 0
      %p268 = por %p266, %p267
      %p269 = scmp.ne.s32.totalorder %s255, %s256
      %p270 = scmp.eq.s32.totalorder %s30, 1
      %p271 = por %p269, %p270
      %p273 = scmp.ne.s32.totalorder %s256, %s272
      %p274 = scmp.eq.s32.totalorder %s30, 0
      %p275 = por %p273, %p274
      %s276 = ssub.s32 %s31, %s43
      %s277 = ssub.s32 %s32, %s39
      %s278 = sor.u32 %s276, %s277
      %p279 = scmp.eq.s32.totalorder %s278, 0
      %s281 = sadd.s32 %s280, 1
      %s282 = scalar_select %p279, %s280, %s281
      %p285 = pneg %p279
      %p286 = scmp.eq.s32.totalorder %s24, 1
      %p287 = por %p285, %p286
      %p288 = scmp.ne.s32.totalorder %s280, %s283
      %p289 = scmp.eq.s32.totalorder %s24, 0
      %p290 = por %p288, %p289
      %p291 = scmp.ne.s32.totalorder %s280, %s283
      %p292 = scmp.eq.s32.totalorder %s29, 1
      %p293 = por %p291, %p292
      %p294 = scmp.ne.s32.totalorder %s283, %s284
      %p295 = scmp.eq.s32.totalorder %s29, 0
      %p296 = por %p294, %p295
      %p297 = scmp.ne.s32.totalorder %s283, %s284
      %p298 = scmp.eq.s32.totalorder %s30, 1
      %p299 = por %p297, %p298
      %p301 = scmp.ne.s32.totalorder %s284, %s300
      %p302 = scmp.eq.s32.totalorder %s30, 0
      %p303 = por %p301, %p302
      %p304 = scmp.le.s32.totalorder 1, %s24
      %p305 = scmp.lt.s32.totalorder %s24, 3
      %p306 = pnand %p304, %p305
      %p307 = pneg %p306
      // Predicated region
      $region9: #{tpu_custom_call.1} parent=5 // pred_check
        _
      $region10: #{tpu_custom_call.1} parent=5 // pred_check_branch
        %309 = sbr.rel (%p306) target = $region12
      $region11: #{tpu_custom_call.1} parent=5 // pred_region
        %s310 = ssub.s32 %s24, 1
        // Predicated region
        $region13: #{tpu_custom_call.1} parent=11 // pred_check
          %p311 = pneg %p62
        $region14: #{tpu_custom_call.1} parent=11 // pred_check_branch
          %313 = sbr.rel (%p311) target = $region16
        $region15: #{tpu_custom_call.1} parent=11 // pred_region
          %p314 = scmp.lt.s32.totalorder %s33, 0
          %s315 = scalar_select %p314, %s33, 0
          %s316 = smul.addr %s315, 16
          %s317 = smul.addr %s316, 8
          %s318 = scalar_lea.vmem %s0, %s317
        $region16: #{tpu_custom_call.1} parent=11 // pred_fallthru
          _
        // Predicated region
        $region17: #{tpu_custom_call.1} parent=11 // pred_check
          %p319 = pneg %p111
        $region18: #{tpu_custom_call.1} parent=11 // pred_check_branch
          %321 = sbr.rel (%p319) target = $region20
        $region19: #{tpu_custom_call.1} parent=11 // pred_region
          %323 = vsyncadd [#allocation8], 0
          %s324 = sshll.u32 %s2, 4
          %s325 = int_to_ptr.hbm [resolvable:$true] %s324
          %s326 = sshll.u32 [#allocation7], 4
          %s327 = int_to_ptr.vmem [resolvable:$true] %s326
          %332 = dma.hbm_to_vmem [thread:$0]  %s325, 2048, %s327, [#allocation8], 128, 128, 8
        $region20: #{tpu_custom_call.1} parent=11 // pred_fallthru
          _
        // Predicated region
        $region21: #{tpu_custom_call.1} parent=11 // pred_check
          %p333 = pneg %p132
        $region22: #{tpu_custom_call.1} parent=11 // pred_check_branch
          %335 = sbr.rel (%p333) target = $region24
        $region23: #{tpu_custom_call.1} parent=11 // pred_region
          _
        $region24: #{tpu_custom_call.1} parent=11 // pred_fallthru
          _
        // Predicated region
        $region25: #{tpu_custom_call.1} parent=11 // pred_check
          %p336 = pneg %p153
        $region26: #{tpu_custom_call.1} parent=11 // pred_check_branch
          %338 = sbr.rel (%p336) target = $region28
        $region27: #{tpu_custom_call.1} parent=11 // pred_region
          %340 = vsyncadd [#allocation8], 0
          %s341 = sshll.u32 %s4, 4
          %s342 = int_to_ptr.hbm [resolvable:$true] %s341
          %s343 = sshll.u32 [#allocation9], 4
          %s344 = int_to_ptr.vmem [resolvable:$true] %s343
          %349 = dma.hbm_to_vmem [thread:$0]  %s342, 4096, %s344, [#allocation8], 256, 256, 16
        $region28: #{tpu_custom_call.1} parent=11 // pred_fallthru
          _
        // Predicated region
        $region29: #{tpu_custom_call.1} parent=11 // pred_check
          %p350 = pneg %p174
        $region30: #{tpu_custom_call.1} parent=11 // pred_check_branch
          %352 = sbr.rel (%p350) target = $region32
        $region31: #{tpu_custom_call.1} parent=11 // pred_region
          _
        $region32: #{tpu_custom_call.1} parent=11 // pred_fallthru
          _
        // Predicated region
        $region33: #{tpu_custom_call.1} parent=11 // pred_check
          %p353 = pneg %p195
        $region34: #{tpu_custom_call.1} parent=11 // pred_check_branch
          %355 = sbr.rel (%p353) target = $region36
        $region35: #{tpu_custom_call.1} parent=11 // pred_region
          %357 = vsyncadd [#allocation11], 0
          %s358 = sshll.u32 %s6, 4
          %s359 = int_to_ptr.hbm [resolvable:$true] %s358
          %s360 = sshll.u32 [#allocation10], 4
          %s361 = int_to_ptr.vmem [resolvable:$true] %s360
          %366 = dma.hbm_to_vmem [thread:$0]  %s359, 2048, %s361, [#allocation11], 128, 128, 8
        $region36: #{tpu_custom_call.1} parent=11 // pred_fallthru
          _
        // Predicated region
        $region37: #{tpu_custom_call.1} parent=11 // pred_check
          %p367 = pneg %p216
        $region38: #{tpu_custom_call.1} parent=11 // pred_check_branch
          %369 = sbr.rel (%p367) target = $region40
        $region39: #{tpu_custom_call.1} parent=11 // pred_region
          %371 = vsyncadd [#allocation11], 0
          %s372 = sshll.u32 %s7, 4
          %s373 = int_to_ptr.hbm [resolvable:$true] %s372
          %s374 = sshll.u32 [#allocation12], 4
          %s375 = int_to_ptr.vmem [resolvable:$true] %s374
          %380 = dma.hbm_to_vmem [thread:$0]  %s373, 2048, %s375, [#allocation11], 128, 128, 8
        $region40: #{tpu_custom_call.1} parent=11 // pred_fallthru
          _
        // Predicated region
        $region41: #{tpu_custom_call.1} parent=11 // pred_check
          %p381 = pneg %p268
        $region42: #{tpu_custom_call.1} parent=11 // pred_check_branch
          %383 = sbr.rel (%p381) target = $region44
        $region43: #{tpu_custom_call.1} parent=11 // pred_region
          %p384 = scmp.lt.s32.totalorder %s33, 0
          %s385 = scalar_select %p384, %s33, 0
          %s386 = scalar_lea.vmem %s9, %s385
        $region44: #{tpu_custom_call.1} parent=11 // pred_fallthru
          _
      $region12: #{tpu_custom_call.1} parent=5 // pred_fallthru
        _
      %p387 = scmp.lt.s32.totalorder %s24, 2
      // Predicated region
      $region45: #{tpu_custom_call.1} parent=5 // pred_check
        %p388 = pneg %p387
      $region46: #{tpu_custom_call.1} parent=5 // pred_check_branch
        %390 = sbr.rel (%p388) target = $region48
      $region47: #{tpu_custom_call.1} parent=5 // pred_region
        // Predicated region
        $region49: #{tpu_custom_call.1} parent=47 // pred_check
          %p391 = pneg %p84
        $region50: #{tpu_custom_call.1} parent=47 // pred_check_branch
          %393 = sbr.rel (%p391) target = $region52
        $region51: #{tpu_custom_call.1} parent=47 // pred_region
          %s394 = sand.u32 %s74, 1
          %s395 = scalar_lea.sflag [#allocation5], %s394
          %s396 = sand.u32 %s74, 1
          %s397 = smul.addr %s396, 64
          %s398 = scalar_lea.vmem [#allocation4], %s397
          %s399 = smul.u32 8, %s32
          %401 = vsyncadd %s395, 0
          %s402 = smul.addr %s31, 16
          %s403 = sadd.s32 %s399, %s402
          %s404 = smul.addr %s403, 8
          %s405 = scalar_lea.hbm %s1, %s404
          %s406 = sshll.u32 %s405, 4
          %s407 = int_to_ptr.hbm [resolvable:$true] %s406
          %s408 = sshll.u32 %s398, 4
          %s409 = int_to_ptr.vmem [resolvable:$true] %s408
          %414 = dma.hbm_to_vmem [thread:$0]  %s407, 1024, %s409, %s395, 128, 128, 8
        $region52: #{tpu_custom_call.1} parent=47 // pred_fallthru
          _
        // Predicated region
        $region53: #{tpu_custom_call.1} parent=47 // pred_check
          %p415 = pneg %p236
        $region54: #{tpu_custom_call.1} parent=47 // pred_check_branch
          %417 = sbr.rel (%p415) target = $region56
        $region55: #{tpu_custom_call.1} parent=47 // pred_region
          %s418 = smul.u32 8, %s32
          %p419 = scmp.lt.s32.totalorder %s418, 15
          %s420 = scalar_select %p419, %s418, 15
          %s421 = smul.addr %s420, 8
          %s422 = scalar_lea.vmem %s8, %s421
          %s423 = smul.u32 8, %s32
        $region56: #{tpu_custom_call.1} parent=47 // pred_fallthru
          _
      $region48: #{tpu_custom_call.1} parent=5 // pred_fallthru
        _
      %p424 = scmp.le.s32.totalorder 1, %s24
      %p425 = scmp.lt.s32.totalorder %s24, 3
      %p426 = pnand %p424, %p425
      %p427 = pneg %p426
      // Predicated region
      $region57: #{tpu_custom_call.1} parent=5 // pred_check
        _
      $region58: #{tpu_custom_call.1} parent=5 // pred_check_branch
        %429 = sbr.rel (%p426) target = $region60
      $region59: #{tpu_custom_call.1} parent=5 // pred_region
        %s430 = ssub.s32 %s24, 1
        %s431 = sand.u32 %s77, 1
        %s432 = scalar_lea.sflag [#allocation5], %s431
        %s433 = sand.u32 %s77, 1
        %s434 = smul.addr %s433, 64
        %s435 = scalar_lea.vmem [#allocation4], %s434
        // Predicated region
        $region61: #{tpu_custom_call.1} parent=59 // pred_check
          %p436 = pneg %p90
        $region62: #{tpu_custom_call.1} parent=59 // pred_check_branch
          %438 = sbr.rel (%p436) target = $region64
        $region63: #{tpu_custom_call.1} parent=59 // pred_region
          %440 = dma.done %s432, 1024
        $region64: #{tpu_custom_call.1} parent=59 // pred_fallthru
          _
        // Predicated region
        $region65: #{tpu_custom_call.1} parent=59 // pred_check
          %p441 = pneg %p111
        $region66: #{tpu_custom_call.1} parent=59 // pred_check_branch
          %443 = sbr.rel (%p441) target = $region68
        $region67: #{tpu_custom_call.1} parent=59 // pred_region
          %445 = dma.done [#allocation8], 2048
        $region68: #{tpu_custom_call.1} parent=59 // pred_fallthru
          _
        // Predicated region
        $region69: #{tpu_custom_call.1} parent=59 // pred_check
          %p446 = pneg %p153
        $region70: #{tpu_custom_call.1} parent=59 // pred_check_branch
          %448 = sbr.rel (%p446) target = $region72
        $region71: #{tpu_custom_call.1} parent=59 // pred_region
          %450 = dma.done [#allocation8], 4096
        $region72: #{tpu_custom_call.1} parent=59 // pred_fallthru
          _
        // Predicated region
        $region73: #{tpu_custom_call.1} parent=59 // pred_check
          %p451 = pneg %p195
        $region74: #{tpu_custom_call.1} parent=59 // pred_check_branch
          %453 = sbr.rel (%p451) target = $region76
        $region75: #{tpu_custom_call.1} parent=59 // pred_region
          %455 = dma.done [#allocation11], 2048
        $region76: #{tpu_custom_call.1} parent=59 // pred_fallthru
          _
        // Predicated region
        $region77: #{tpu_custom_call.1} parent=59 // pred_check
          %p456 = pneg %p216
        $region78: #{tpu_custom_call.1} parent=59 // pred_check_branch
          %458 = sbr.rel (%p456) target = $region80
        $region79: #{tpu_custom_call.1} parent=59 // pred_region
          %460 = dma.done [#allocation11], 2048
        $region80: #{tpu_custom_call.1} parent=59 // pred_fallthru
          _
        %p461 = scmp.lt.s32.totalorder %s33, 0
        %s462 = scalar_select %p461, %s33, 0
        %s463 = smul.addr %s462, 16
        %s464 = smul.addr %s463, 8
        %s465 = scalar_lea.vmem %s0, %s464
        %p466 = pneg %p62
        %p467 = pneg %p59
        %s468 = sand.u32 %s77, 1
        %s469 = scalar_lea.sflag [#allocation5], %s468
        %s470 = sand.u32 %s77, 1
        %s471 = smul.addr %s470, 64
        %s472 = scalar_lea.vmem [#allocation4], %s471
        %p473 = pneg %p90
        %p474 = pneg %p87
        %p475 = pneg %p111
        %p476 = pneg %p108
        %p477 = pneg %p132
        %p478 = pneg %p129
        %p479 = pneg %p153
        %p480 = pneg %p150
        %p481 = pneg %p174
        %p482 = pneg %p171
        %p483 = pneg %p195
        %p484 = pneg %p192
        %p485 = pneg %p216
        %p486 = pneg %p213
        %s487 = smul.u32 8, %s34
        %p488 = scmp.lt.s32.totalorder %s487, 15
        %s489 = scalar_select %p488, %s487, 15
        %s490 = smul.addr %s489, 8
        %s491 = scalar_lea.vmem %s8, %s490
        %p492 = pneg %p242
        %p493 = pneg %p239
        %p494 = scmp.lt.s32.totalorder %s33, 0
        %s495 = scalar_select %p494, %s33, 0
        %s496 = scalar_lea.vmem %s9, %s495
        %p497 = pneg %p268
        %p498 = pneg %p265
        %p499 = pneg %p296
        %p500 = pneg %p293
        %s501 = sand.u32 %s283, 1
        %s502 = scalar_lea.sflag [#allocation6], %s501
        %s503 = sand.u32 %s283, 1
        %s504 = smul.addr %s503, 64
        %s505 = scalar_lea.vmem [#allocation13], %s504
        %p506 = scmp.lt.s32.totalorder %s33, 0
        %s507 = scalar_select %p506, %s33, 0
        %s508 = smul.addr %s507, 16
        %s509 = smul.addr %s508, 8
        %s510 = scalar_lea.vmem %s0, %s509
        %s511 = smul.u32 8, %s34
        %s512 = smul.u32 8, %s34
        %p513 = scmp.lt.s32.totalorder %s512, 15
        %s514 = scalar_select %p513, %s512, 15
        %s515 = smul.addr %s514, 8
        %s516 = scalar_lea.vmem %s8, %s515
        %s517 = smul.u32 8, %s34
        %p518 = scmp.lt.s32.totalorder %s33, 0
        %s519 = scalar_select %p518, %s33, 0
        %s520 = scalar_lea.vmem %s9, %s519
        %s521 = smul.u32 8, %s34
        %p522 = scmp.eq.s32.totalorder %s34, 0
        // Predicated region
        $region81: #{tpu_custom_call.1} parent=59 // pred_check
          %p523 = pneg %p522
        $region82: #{tpu_custom_call.1} parent=59 // pred_check_branch
          %525 = sbr.rel (%p523) target = $region84
        $region83: #{tpu_custom_call.1} parent=59 // pred_region
          %v526 = vld [vmem:[%s510] sm:$0xff]
          %v527 = vld [vmem:[%s510 + $0x8] sm:$0xff]
          %v528 = vld [vmem:[%s510 + $0x10] sm:$0xff]
          %v529 = vld [vmem:[%s510 + $0x18] sm:$0xff]
          %v530 = vld [vmem:[%s510 + $0x20] sm:$0xff]
          %v531 = vld [vmem:[%s510 + $0x28] sm:$0xff]
          %v532 = vld [vmem:[%s510 + $0x30] sm:$0xff]
          %v533 = vld [vmem:[%s510 + $0x38] sm:$0xff]
          %v534 = vld [vmem:[%s510 + $0x40] sm:$0xff]
          %v535 = vld [vmem:[%s510 + $0x48] sm:$0xff]
          %v536 = vld [vmem:[%s510 + $0x50] sm:$0xff]
          %v537 = vld [vmem:[%s510 + $0x58] sm:$0xff]
          %v538 = vld [vmem:[%s510 + $0x60] sm:$0xff]
          %v539 = vld [vmem:[%s510 + $0x68] sm:$0xff]
          %v540 = vld [vmem:[%s510 + $0x70] sm:$0xff]
          %v541 = vld [vmem:[%s510 + $0x78] sm:$0xff]
          %v542 = vld [vmem:[#allocation9] sm:$0xff]
          %v543 = vld [vmem:[#allocation9 + $0x8] sm:$0xff]
          %v544 = vld [vmem:[#allocation9 + $0x10] sm:$0xff]
          %v545 = vld [vmem:[#allocation9 + $0x18] sm:$0xff]
          %v546 = vld [vmem:[#allocation9 + $0x20] sm:$0xff]
          %v547 = vld [vmem:[#allocation9 + $0x28] sm:$0xff]
          %v548 = vld [vmem:[#allocation9 + $0x30] sm:$0xff]
          %v549 = vld [vmem:[#allocation9 + $0x38] sm:$0xff]
          %v550 = vld [vmem:[#allocation9 + $0x40] sm:$0xff]
          %v551 = vld [vmem:[#allocation9 + $0x48] sm:$0xff]
          %v552 = vld [vmem:[#allocation9 + $0x50] sm:$0xff]
          %v553 = vld [vmem:[#allocation9 + $0x58] sm:$0xff]
          %v554 = vld [vmem:[#allocation9 + $0x60] sm:$0xff]
          %v555 = vld [vmem:[#allocation9 + $0x68] sm:$0xff]
          %v556 = vld [vmem:[#allocation9 + $0x70] sm:$0xff]
          %v557 = vld [vmem:[#allocation9 + $0x78] sm:$0xff]
          %v558 = vld [vmem:[#allocation9 + $0x80] sm:$0xff]
          %v559 = vld [vmem:[#allocation9 + $0x88] sm:$0xff]
          %v560 = vld [vmem:[#allocation9 + $0x90] sm:$0xff]
          %v561 = vld [vmem:[#allocation9 + $0x98] sm:$0xff]
          %v562 = vld [vmem:[#allocation9 + $0xa0] sm:$0xff]
          %v563 = vld [vmem:[#allocation9 + $0xa8] sm:$0xff]
          %v564 = vld [vmem:[#allocation9 + $0xb0] sm:$0xff]
          %v565 = vld [vmem:[#allocation9 + $0xb8] sm:$0xff]
          %v566 = vld [vmem:[#allocation9 + $0xc0] sm:$0xff]
          %v567 = vld [vmem:[#allocation9 + $0xc8] sm:$0xff]
          %v568 = vld [vmem:[#allocation9 + $0xd0] sm:$0xff]
          %v569 = vld [vmem:[#allocation9 + $0xd8] sm:$0xff]
          %v570 = vld [vmem:[#allocation9 + $0xe0] sm:$0xff]
          %v571 = vld [vmem:[#allocation9 + $0xe8] sm:$0xff]
          %v572 = vld [vmem:[#allocation9 + $0xf0] sm:$0xff]
          %v573 = vld [vmem:[#allocation9 + $0xf8] sm:$0xff]
          %v574 = vld [vmem:[%s5] sm:$0x3]
          %v576 = vperm.slane %v574, 0
          %v577 = vperm.slane %v574, 1
          %580 = vmatpush.msra.mxu0 %v572
          %581 = vmatpush.msra.mxu0 %v570
          %582 = vmatpush.msra.mxu0 %v568
          %583 = vmatpush.msra.mxu0 %v566
          %584 = vmatpush.msra.mxu0 %v564
          %585 = vmatpush.msra.mxu0 %v562
          %586 = vmatpush.msra.mxu0 %v560
          %587 = vmatpush.msra.mxu0 %v558
          %588 = vmatpush.msra.mxu0 %v556
          %589 = vmatpush.msra.mxu0 %v554
          %590 = vmatpush.msra.mxu0 %v552
          %591 = vmatpush.msra.mxu0 %v550
          %592 = vmatpush.msra.mxu0 %v548
          %593 = vmatpush.msra.mxu0 %v546
          %594 = vmatpush.msra.mxu0 %v544
          %595 = vmatpush.msra.mxu0 %v542
          %596 = vmatmul.f32.gmra.mxu0 %v526
          %v597 = vpop.f32.mrf.mxu0
          %v598 = vadd.f32 %v576, %v597
          %599 = vmatmul.f32.gmra.mxu0 %v527
          %v600 = vpop.f32.mrf.mxu0
          %v601 = vadd.f32 %v576, %v600
          %602 = vmatmul.f32.gmra.mxu0 %v528
          %v603 = vpop.f32.mrf.mxu0
          %v604 = vadd.f32 %v576, %v603
          %605 = vmatmul.f32.gmra.mxu0 %v529
          %v606 = vpop.f32.mrf.mxu0
          %v607 = vadd.f32 %v576, %v606
          %608 = vmatmul.f32.gmra.mxu0 %v530
          %v609 = vpop.f32.mrf.mxu0
          %v610 = vadd.f32 %v576, %v609
          %611 = vmatmul.f32.gmra.mxu0 %v531
          %v612 = vpop.f32.mrf.mxu0
          %v613 = vadd.f32 %v576, %v612
          %614 = vmatmul.f32.gmra.mxu0 %v532
          %v615 = vpop.f32.mrf.mxu0
          %v616 = vadd.f32 %v576, %v615
          %617 = vmatmul.f32.gmra.mxu0 %v533
          %v618 = vpop.f32.mrf.mxu0
          %v619 = vadd.f32 %v576, %v618
          %620 = vmatmul.f32.gmra.mxu0 %v534
          %v621 = vpop.f32.mrf.mxu0
          %v622 = vadd.f32 %v576, %v621
          %623 = vmatmul.f32.gmra.mxu0 %v535
          %v624 = vpop.f32.mrf.mxu0
          %v625 = vadd.f32 %v576, %v624
          %626 = vmatmul.f32.gmra.mxu0 %v536
          %v627 = vpop.f32.mrf.mxu0
          %v628 = vadd.f32 %v576, %v627
          %629 = vmatmul.f32.gmra.mxu0 %v537
          %v630 = vpop.f32.mrf.mxu0
          %v631 = vadd.f32 %v576, %v630
          %632 = vmatmul.f32.gmra.mxu0 %v538
          %v633 = vpop.f32.mrf.mxu0
          %v634 = vadd.f32 %v576, %v633
          %635 = vmatmul.f32.gmra.mxu0 %v539
          %v636 = vpop.f32.mrf.mxu0
          %v637 = vadd.f32 %v576, %v636
          %638 = vmatmul.f32.gmra.mxu0 %v540
          %v639 = vpop.f32.mrf.mxu0
          %v640 = vadd.f32 %v576, %v639
          %641 = vmatmul.f32.gmra.mxu0 %v541
          %v642 = vpop.f32.mrf.mxu0
          %v643 = vadd.f32 %v576, %v642
          %644 = vdwg.mxu0
          %645 = vmatpush.msra.mxu0 %v573
          %646 = vmatpush.msra.mxu0 %v571
          %647 = vmatpush.msra.mxu0 %v569
          %648 = vmatpush.msra.mxu0 %v567
          %649 = vmatpush.msra.mxu0 %v565
          %650 = vmatpush.msra.mxu0 %v563
          %651 = vmatpush.msra.mxu0 %v561
          %652 = vmatpush.msra.mxu0 %v559
          %653 = vmatpush.msra.mxu0 %v557
          %654 = vmatpush.msra.mxu0 %v555
          %655 = vmatpush.msra.mxu0 %v553
          %656 = vmatpush.msra.mxu0 %v551
          %657 = vmatpush.msra.mxu0 %v549
          %658 = vmatpush.msra.mxu0 %v547
          %659 = vmatpush.msra.mxu0 %v545
          %660 = vmatpush.msra.mxu0 %v543
          %661 = vmatmul.f32.gmra.mxu0 %v526
          %v662 = vpop.f32.mrf.mxu0
          %v663 = vadd.f32 %v577, %v662
          %664 = vmatmul.f32.gmra.mxu0 %v527
          %v665 = vpop.f32.mrf.mxu0
          %v666 = vadd.f32 %v577, %v665
          %667 = vmatmul.f32.gmra.mxu0 %v528
          %v668 = vpop.f32.mrf.mxu0
          %v669 = vadd.f32 %v577, %v668
          %670 = vmatmul.f32.gmra.mxu0 %v529
          %v671 = vpop.f32.mrf.mxu0
          %v672 = vadd.f32 %v577, %v671
          %673 = vmatmul.f32.gmra.mxu0 %v530
          %v674 = vpop.f32.mrf.mxu0
          %v675 = vadd.f32 %v577, %v674
          %676 = vmatmul.f32.gmra.mxu0 %v531
          %v677 = vpop.f32.mrf.mxu0
          %v678 = vadd.f32 %v577, %v677
          %679 = vmatmul.f32.gmra.mxu0 %v532
          %v680 = vpop.f32.mrf.mxu0
          %v681 = vadd.f32 %v577, %v680
          %682 = vmatmul.f32.gmra.mxu0 %v533
          %v683 = vpop.f32.mrf.mxu0
          %v684 = vadd.f32 %v577, %v683
          %685 = vmatmul.f32.gmra.mxu0 %v534
          %v686 = vpop.f32.mrf.mxu0
          %v687 = vadd.f32 %v577, %v686
          %688 = vmatmul.f32.gmra.mxu0 %v535
          %v689 = vpop.f32.mrf.mxu0
          %v690 = vadd.f32 %v577, %v689
          %691 = vmatmul.f32.gmra.mxu0 %v536
          %v692 = vpop.f32.mrf.mxu0
          %v693 = vadd.f32 %v577, %v692
          %694 = vmatmul.f32.gmra.mxu0 %v537
          %v695 = vpop.f32.mrf.mxu0
          %v696 = vadd.f32 %v577, %v695
          %697 = vmatmul.f32.gmra.mxu0 %v538
          %v698 = vpop.f32.mrf.mxu0
          %v699 = vadd.f32 %v577, %v698
          %700 = vmatmul.f32.gmra.mxu0 %v539
          %v701 = vpop.f32.mrf.mxu0
          %v702 = vadd.f32 %v577, %v701
          %703 = vmatmul.f32.gmra.mxu0 %v540
          %v704 = vpop.f32.mrf.mxu0
          %v705 = vadd.f32 %v577, %v704
          %706 = vmatmul.f32.gmra.mxu0 %v541
          %v707 = vpop.f32.mrf.mxu0
          %v708 = vadd.f32 %v577, %v707
          %709 = vdwg.mxu0
          %v710 = vld [vmem:[#allocation10] sm:$0xff]
          %v711 = vld [vmem:[#allocation10 + $0x8] sm:$0xff]
          %v712 = vld [vmem:[#allocation10 + $0x10] sm:$0xff]
          %v713 = vld [vmem:[#allocation10 + $0x18] sm:$0xff]
          %v714 = vld [vmem:[#allocation10 + $0x20] sm:$0xff]
          %v715 = vld [vmem:[#allocation10 + $0x28] sm:$0xff]
          %v716 = vld [vmem:[#allocation10 + $0x30] sm:$0xff]
          %v717 = vld [vmem:[#allocation10 + $0x38] sm:$0xff]
          %v718 = vld [vmem:[#allocation10 + $0x40] sm:$0xff]
          %v719 = vld [vmem:[#allocation10 + $0x48] sm:$0xff]
          %v720 = vld [vmem:[#allocation10 + $0x50] sm:$0xff]
          %v721 = vld [vmem:[#allocation10 + $0x58] sm:$0xff]
          %v722 = vld [vmem:[#allocation10 + $0x60] sm:$0xff]
          %v723 = vld [vmem:[#allocation10 + $0x68] sm:$0xff]
          %v724 = vld [vmem:[#allocation10 + $0x70] sm:$0xff]
          %v725 = vld [vmem:[#allocation10 + $0x78] sm:$0xff]
          %726 = vmatpush.msra.mxu0 %v643
          %727 = vmatpush.msra.mxu0 %v640
          %728 = vmatpush.msra.mxu0 %v637
          %729 = vmatpush.msra.mxu0 %v634
          %730 = vmatpush.msra.mxu0 %v631
          %731 = vmatpush.msra.mxu0 %v628
          %732 = vmatpush.msra.mxu0 %v625
          %733 = vmatpush.msra.mxu0 %v622
          %734 = vmatpush.msra.mxu0 %v619
          %735 = vmatpush.msra.mxu0 %v616
          %736 = vmatpush.msra.mxu0 %v613
          %737 = vmatpush.msra.mxu0 %v610
          %738 = vmatpush.msra.mxu0 %v607
          %739 = vmatpush.msra.mxu0 %v604
          %740 = vmatpush.msra.mxu0 %v601
          %741 = vmatpush.msra.mxu0 %v598
          %742 = vmatmul.f32.gmra.mxu0 %v710
          %v743 = vpop.f32.mrf.mxu0
          %v744 = vadd.f32 0.0, %v743
          %745 = vmatmul.f32.gmra.mxu0 %v711
          %v746 = vpop.f32.mrf.mxu0
          %v747 = vadd.f32 0.0, %v746
          %748 = vmatmul.f32.gmra.mxu0 %v712
          %v749 = vpop.f32.mrf.mxu0
          %v750 = vadd.f32 0.0, %v749
          %751 = vmatmul.f32.gmra.mxu0 %v713
          %v752 = vpop.f32.mrf.mxu0
          %v753 = vadd.f32 0.0, %v752
          %754 = vmatmul.f32.gmra.mxu0 %v714
          %v755 = vpop.f32.mrf.mxu0
          %v756 = vadd.f32 0.0, %v755
          %757 = vmatmul.f32.gmra.mxu0 %v715
          %v758 = vpop.f32.mrf.mxu0
          %v759 = vadd.f32 0.0, %v758
          %760 = vmatmul.f32.gmra.mxu0 %v716
          %v761 = vpop.f32.mrf.mxu0
          %v762 = vadd.f32 0.0, %v761
          %763 = vmatmul.f32.gmra.mxu0 %v717
          %v764 = vpop.f32.mrf.mxu0
          %v765 = vadd.f32 0.0, %v764
          %766 = vmatmul.f32.gmra.mxu0 %v718
          %v767 = vpop.f32.mrf.mxu0
          %v768 = vadd.f32 0.0, %v767
          %769 = vmatmul.f32.gmra.mxu0 %v719
          %v770 = vpop.f32.mrf.mxu0
          %v771 = vadd.f32 0.0, %v770
          %772 = vmatmul.f32.gmra.mxu0 %v720
          %v773 = vpop.f32.mrf.mxu0
          %v774 = vadd.f32 0.0, %v773
          %775 = vmatmul.f32.gmra.mxu0 %v721
          %v776 = vpop.f32.mrf.mxu0
          %v777 = vadd.f32 0.0, %v776
          %778 = vmatmul.f32.gmra.mxu0 %v722
          %v779 = vpop.f32.mrf.mxu0
          %v780 = vadd.f32 0.0, %v779
          %781 = vmatmul.f32.gmra.mxu0 %v723
          %v782 = vpop.f32.mrf.mxu0
          %v783 = vadd.f32 0.0, %v782
          %784 = vmatmul.f32.gmra.mxu0 %v724
          %v785 = vpop.f32.mrf.mxu0
          %v786 = vadd.f32 0.0, %v785
          %787 = vmatmul.f32.gmra.mxu0 %v725
          %v788 = vpop.f32.mrf.mxu0
          %v789 = vadd.f32 0.0, %v788
          %790 = vdwg.mxu0
          %v791 = vld [vmem:[#allocation12] sm:$0xff]
          %v792 = vld [vmem:[#allocation12 + $0x8] sm:$0xff]
          %v793 = vld [vmem:[#allocation12 + $0x10] sm:$0xff]
          %v794 = vld [vmem:[#allocation12 + $0x18] sm:$0xff]
          %v795 = vld [vmem:[#allocation12 + $0x20] sm:$0xff]
          %v796 = vld [vmem:[#allocation12 + $0x28] sm:$0xff]
          %v797 = vld [vmem:[#allocation12 + $0x30] sm:$0xff]
          %v798 = vld [vmem:[#allocation12 + $0x38] sm:$0xff]
          %v799 = vld [vmem:[#allocation12 + $0x40] sm:$0xff]
          %v800 = vld [vmem:[#allocation12 + $0x48] sm:$0xff]
          %v801 = vld [vmem:[#allocation12 + $0x50] sm:$0xff]
          %v802 = vld [vmem:[#allocation12 + $0x58] sm:$0xff]
          %v803 = vld [vmem:[#allocation12 + $0x60] sm:$0xff]
          %v804 = vld [vmem:[#allocation12 + $0x68] sm:$0xff]
          %v805 = vld [vmem:[#allocation12 + $0x70] sm:$0xff]
          %v806 = vld [vmem:[#allocation12 + $0x78] sm:$0xff]
          %807 = vmatpush.msra.mxu0 %v708
          %808 = vmatpush.msra.mxu0 %v705
          %809 = vmatpush.msra.mxu0 %v702
          %810 = vmatpush.msra.mxu0 %v699
          %811 = vmatpush.msra.mxu0 %v696
          %812 = vmatpush.msra.mxu0 %v693
          %813 = vmatpush.msra.mxu0 %v690
          %814 = vmatpush.msra.mxu0 %v687
          %815 = vmatpush.msra.mxu0 %v684
          %816 = vmatpush.msra.mxu0 %v681
          %817 = vmatpush.msra.mxu0 %v678
          %818 = vmatpush.msra.mxu0 %v675
          %819 = vmatpush.msra.mxu0 %v672
          %820 = vmatpush.msra.mxu0 %v669
          %821 = vmatpush.msra.mxu0 %v666
          %822 = vmatpush.msra.mxu0 %v663
          %823 = vmatmul.f32.gmra.mxu0 %v791
          %v824 = vpop.f32.mrf.mxu0
          %v825 = vadd.f32 0.0, %v824
          %826 = vmatmul.f32.gmra.mxu0 %v792
          %v827 = vpop.f32.mrf.mxu0
          %v828 = vadd.f32 0.0, %v827
          %829 = vmatmul.f32.gmra.mxu0 %v793
          %v830 = vpop.f32.mrf.mxu0
          %v831 = vadd.f32 0.0, %v830
          %832 = vmatmul.f32.gmra.mxu0 %v794
          %v833 = vpop.f32.mrf.mxu0
          %v834 = vadd.f32 0.0, %v833
          %835 = vmatmul.f32.gmra.mxu0 %v795
          %v836 = vpop.f32.mrf.mxu0
          %v837 = vadd.f32 0.0, %v836
          %838 = vmatmul.f32.gmra.mxu0 %v796
          %v839 = vpop.f32.mrf.mxu0
          %v840 = vadd.f32 0.0, %v839
          %841 = vmatmul.f32.gmra.mxu0 %v797
          %v842 = vpop.f32.mrf.mxu0
          %v843 = vadd.f32 0.0, %v842
          %844 = vmatmul.f32.gmra.mxu0 %v798
          %v845 = vpop.f32.mrf.mxu0
          %v846 = vadd.f32 0.0, %v845
          %847 = vmatmul.f32.gmra.mxu0 %v799
          %v848 = vpop.f32.mrf.mxu0
          %v849 = vadd.f32 0.0, %v848
          %850 = vmatmul.f32.gmra.mxu0 %v800
          %v851 = vpop.f32.mrf.mxu0
          %v852 = vadd.f32 0.0, %v851
          %853 = vmatmul.f32.gmra.mxu0 %v801
          %v854 = vpop.f32.mrf.mxu0
          %v855 = vadd.f32 0.0, %v854
          %856 = vmatmul.f32.gmra.mxu0 %v802
          %v857 = vpop.f32.mrf.mxu0
          %v858 = vadd.f32 0.0, %v857
          %859 = vmatmul.f32.gmra.mxu0 %v803
          %v860 = vpop.f32.mrf.mxu0
          %v861 = vadd.f32 0.0, %v860
          %862 = vmatmul.f32.gmra.mxu0 %v804
          %v863 = vpop.f32.mrf.mxu0
          %v864 = vadd.f32 0.0, %v863
          %865 = vmatmul.f32.gmra.mxu0 %v805
          %v866 = vpop.f32.mrf.mxu0
          %v867 = vadd.f32 0.0, %v866
          %868 = vmatmul.f32.gmra.mxu0 %v806
          %v869 = vpop.f32.mrf.mxu0
          %v870 = vadd.f32 0.0, %v869
          %871 = vdwg.mxu0
          %872 = vst [vmem:[#allocation2] sm:$0xff] %v744
          %873 = vst [vmem:[#allocation2 + $0x8] sm:$0xff] %v747
          %874 = vst [vmem:[#allocation2 + $0x10] sm:$0xff] %v750
          %875 = vst [vmem:[#allocation2 + $0x18] sm:$0xff] %v753
          %876 = vst [vmem:[#allocation2 + $0x20] sm:$0xff] %v756
          %877 = vst [vmem:[#allocation2 + $0x28] sm:$0xff] %v759
          %878 = vst [vmem:[#allocation2 + $0x30] sm:$0xff] %v762
          %879 = vst [vmem:[#allocation2 + $0x38] sm:$0xff] %v765
          %880 = vst [vmem:[#allocation2 + $0x40] sm:$0xff] %v768
          %881 = vst [vmem:[#allocation2 + $0x48] sm:$0xff] %v771
          %882 = vst [vmem:[#allocation2 + $0x50] sm:$0xff] %v774
          %883 = vst [vmem:[#allocation2 + $0x58] sm:$0xff] %v777
          %884 = vst [vmem:[#allocation2 + $0x60] sm:$0xff] %v780
          %885 = vst [vmem:[#allocation2 + $0x68] sm:$0xff] %v783
          %886 = vst [vmem:[#allocation2 + $0x70] sm:$0xff] %v786
          %887 = vst [vmem:[#allocation2 + $0x78] sm:$0xff] %v789
          %888 = vst [vmem:[#allocation3] sm:$0xff] %v825
          %889 = vst [vmem:[#allocation3 + $0x8] sm:$0xff] %v828
          %890 = vst [vmem:[#allocation3 + $0x10] sm:$0xff] %v831
          %891 = vst [vmem:[#allocation3 + $0x18] sm:$0xff] %v834
          %892 = vst [vmem:[#allocation3 + $0x20] sm:$0xff] %v837
          %893 = vst [vmem:[#allocation3 + $0x28] sm:$0xff] %v840
          %894 = vst [vmem:[#allocation3 + $0x30] sm:$0xff] %v843
          %895 = vst [vmem:[#allocation3 + $0x38] sm:$0xff] %v846
          %896 = vst [vmem:[#allocation3 + $0x40] sm:$0xff] %v849
          %897 = vst [vmem:[#allocation3 + $0x48] sm:$0xff] %v852
          %898 = vst [vmem:[#allocation3 + $0x50] sm:$0xff] %v855
          %899 = vst [vmem:[#allocation3 + $0x58] sm:$0xff] %v858
          %900 = vst [vmem:[#allocation3 + $0x60] sm:$0xff] %v861
          %901 = vst [vmem:[#allocation3 + $0x68] sm:$0xff] %v864
          %902 = vst [vmem:[#allocation3 + $0x70] sm:$0xff] %v867
          %903 = vst [vmem:[#allocation3 + $0x78] sm:$0xff] %v870
        $region84: #{tpu_custom_call.1} parent=59 // pred_fallthru
          _
        %v904 = vld [vmem:[%s435] sm:$0xff]
        %v905 = vld [vmem:[%s435 + $0x8] sm:$0xff]
        %v906 = vld [vmem:[%s435 + $0x10] sm:$0xff]
        %v907 = vld [vmem:[%s435 + $0x18] sm:$0xff]
        %v908 = vld [vmem:[%s435 + $0x20] sm:$0xff]
        %v909 = vld [vmem:[%s435 + $0x28] sm:$0xff]
        %v910 = vld [vmem:[%s435 + $0x30] sm:$0xff]
        %v911 = vld [vmem:[%s435 + $0x38] sm:$0xff]
        %v912 = vld [vmem:[#allocation7] sm:$0xff]
        %v913 = vld [vmem:[#allocation7 + $0x8] sm:$0xff]
        %v914 = vld [vmem:[#allocation7 + $0x10] sm:$0xff]
        %v915 = vld [vmem:[#allocation7 + $0x18] sm:$0xff]
        %v916 = vld [vmem:[#allocation7 + $0x20] sm:$0xff]
        %v917 = vld [vmem:[#allocation7 + $0x28] sm:$0xff]
        %v918 = vld [vmem:[#allocation7 + $0x30] sm:$0xff]
        %v919 = vld [vmem:[#allocation7 + $0x38] sm:$0xff]
        %v920 = vld [vmem:[#allocation7 + $0x40] sm:$0xff]
        %v921 = vld [vmem:[#allocation7 + $0x48] sm:$0xff]
        %v922 = vld [vmem:[#allocation7 + $0x50] sm:$0xff]
        %v923 = vld [vmem:[#allocation7 + $0x58] sm:$0xff]
        %v924 = vld [vmem:[#allocation7 + $0x60] sm:$0xff]
        %v925 = vld [vmem:[#allocation7 + $0x68] sm:$0xff]
        %v926 = vld [vmem:[#allocation7 + $0x70] sm:$0xff]
        %v927 = vld [vmem:[#allocation7 + $0x78] sm:$0xff]
        %v928 = vld [vmem:[%s3] sm:$0x1]
        %v930 = vperm.slane %v928, 0
        %932 = vmatpush.msra.mxu0 %v927
        %933 = vmatpush.msra.mxu0 %v926
        %934 = vmatpush.msra.mxu0 %v925
        %935 = vmatpush.msra.mxu0 %v924
        %936 = vmatpush.msra.mxu0 %v923
        %937 = vmatpush.msra.mxu0 %v922
        %938 = vmatpush.msra.mxu0 %v921
        %939 = vmatpush.msra.mxu0 %v920
        %940 = vmatpush.msra.mxu0 %v919
        %941 = vmatpush.msra.mxu0 %v918
        %942 = vmatpush.msra.mxu0 %v917
        %943 = vmatpush.msra.mxu0 %v916
        %944 = vmatpush.msra.mxu0 %v915
        %945 = vmatpush.msra.mxu0 %v914
        %946 = vmatpush.msra.mxu0 %v913
        %947 = vmatpush.msra.mxu0 %v912
        %948 = vmatmul.f32.gmra.mxu0 %v904
        %v949 = vpop.f32.mrf.mxu0
        %v950 = vadd.f32 %v930, %v949
        %951 = vmatmul.f32.gmra.mxu0 %v905
        %v952 = vpop.f32.mrf.mxu0
        %v953 = vadd.f32 %v930, %v952
        %954 = vmatmul.f32.gmra.mxu0 %v906
        %v955 = vpop.f32.mrf.mxu0
        %v956 = vadd.f32 %v930, %v955
        %957 = vmatmul.f32.gmra.mxu0 %v907
        %v958 = vpop.f32.mrf.mxu0
        %v959 = vadd.f32 %v930, %v958
        %960 = vmatmul.f32.gmra.mxu0 %v908
        %v961 = vpop.f32.mrf.mxu0
        %v962 = vadd.f32 %v930, %v961
        %963 = vmatmul.f32.gmra.mxu0 %v909
        %v964 = vpop.f32.mrf.mxu0
        %v965 = vadd.f32 %v930, %v964
        %966 = vmatmul.f32.gmra.mxu0 %v910
        %v967 = vpop.f32.mrf.mxu0
        %v968 = vadd.f32 %v930, %v967
        %969 = vmatmul.f32.gmra.mxu0 %v911
        %v970 = vpop.f32.mrf.mxu0
        %v971 = vadd.f32 %v930, %v970
        %972 = vdwg.mxu0
        %v973 = vmul.f32 %v950, 0.088388346
        %v974 = vmul.f32 %v953, 0.088388346
        %v975 = vmul.f32 %v956, 0.088388346
        %v976 = vmul.f32 %v959, 0.088388346
        %v977 = vmul.f32 %v962, 0.088388346
        %v978 = vmul.f32 %v965, 0.088388346
        %v979 = vmul.f32 %v968, 0.088388346
        %v980 = vmul.f32 %v971, 0.088388346
        %v981 = vld [vmem:[#allocation2] sm:$0xff]
        %v982 = vld [vmem:[#allocation2 + $0x8] sm:$0xff]
        %v983 = vld [vmem:[#allocation2 + $0x10] sm:$0xff]
        %v984 = vld [vmem:[#allocation2 + $0x18] sm:$0xff]
        %v985 = vld [vmem:[#allocation2 + $0x20] sm:$0xff]
        %v986 = vld [vmem:[#allocation2 + $0x28] sm:$0xff]
        %v987 = vld [vmem:[#allocation2 + $0x30] sm:$0xff]
        %v988 = vld [vmem:[#allocation2 + $0x38] sm:$0xff]
        %v989 = vld [vmem:[#allocation2 + $0x40] sm:$0xff]
        %v990 = vld [vmem:[#allocation2 + $0x48] sm:$0xff]
        %v991 = vld [vmem:[#allocation2 + $0x50] sm:$0xff]
        %v992 = vld [vmem:[#allocation2 + $0x58] sm:$0xff]
        %v993 = vld [vmem:[#allocation2 + $0x60] sm:$0xff]
        %v994 = vld [vmem:[#allocation2 + $0x68] sm:$0xff]
        %v995 = vld [vmem:[#allocation2 + $0x70] sm:$0xff]
        %v996 = vld [vmem:[#allocation2 + $0x78] sm:$0xff]
        %v997 = vld [vmem:[%s520] sm:$0x1]
        %v999 = vperm.slane %v997, 0
        %1001 = vmatpush.xpose.msra.mxu0 %v996
        %1002 = vmatpush.xpose.msra.mxu0 %v995
        %1003 = vmatpush.xpose.msra.mxu0 %v994
        %1004 = vmatpush.xpose.msra.mxu0 %v993
        %1005 = vmatpush.xpose.msra.mxu0 %v992
        %1006 = vmatpush.xpose.msra.mxu0 %v991
        %1007 = vmatpush.xpose.msra.mxu0 %v990
        %1008 = vmatpush.xpose.msra.mxu0 %v989
        %1009 = vmatpush.xpose.msra.mxu0 %v988
        %1010 = vmatpush.xpose.msra.mxu0 %v987
        %1011 = vmatpush.xpose.msra.mxu0 %v986
        %1012 = vmatpush.xpose.msra.mxu0 %v985
        %1013 = vmatpush.xpose.msra.mxu0 %v984
        %1014 = vmatpush.xpose.msra.mxu0 %v983
        %1015 = vmatpush.xpose.msra.mxu0 %v982
        %1016 = vmatpush.xpose.msra.mxu0 %v981
        %1017 = vmatmul.f32.gmra.mxu0 %v973
        %v1018 = vpop.f32.mrf.mxu0
        %v1019 = vadd.f32 %v999, %v1018
        %1020 = vmatmul.f32.gmra.mxu0 %v974
        %v1021 = vpop.f32.mrf.mxu0
        %v1022 = vadd.f32 %v999, %v1021
        %1023 = vmatmul.f32.gmra.mxu0 %v975
        %v1024 = vpop.f32.mrf.mxu0
        %v1025 = vadd.f32 %v999, %v1024
        %1026 = vmatmul.f32.gmra.mxu0 %v976
        %v1027 = vpop.f32.mrf.mxu0
        %v1028 = vadd.f32 %v999, %v1027
        %1029 = vmatmul.f32.gmra.mxu0 %v977
        %v1030 = vpop.f32.mrf.mxu0
        %v1031 = vadd.f32 %v999, %v1030
        %1032 = vmatmul.f32.gmra.mxu0 %v978
        %v1033 = vpop.f32.mrf.mxu0
        %v1034 = vadd.f32 %v999, %v1033
        %1035 = vmatmul.f32.gmra.mxu0 %v979
        %v1036 = vpop.f32.mrf.mxu0
        %v1037 = vadd.f32 %v999, %v1036
        %1038 = vmatmul.f32.gmra.mxu0 %v980
        %v1039 = vpop.f32.mrf.mxu0
        %v1040 = vadd.f32 %v999, %v1039
        %1041 = vdwg.mxu0
        %1042 = vmax.xlane.f32.xlu0 %v1019
        %v1043 = vpop.xlane.xlu0 %1042
        %1044 = vmax.xlane.f32.xlu0 %v1022
        %v1045 = vpop.xlane.xlu0 %1044
        %1046 = vmax.xlane.f32.xlu0 %v1025
        %v1047 = vpop.xlane.xlu0 %1046
        %1048 = vmax.xlane.f32.xlu0 %v1028
        %v1049 = vpop.xlane.xlu0 %1048
        %1050 = vmax.xlane.f32.xlu0 %v1031
        %v1051 = vpop.xlane.xlu0 %1050
        %1052 = vmax.xlane.f32.xlu0 %v1034
        %v1053 = vpop.xlane.xlu0 %1052
        %1054 = vmax.xlane.f32.xlu0 %v1037
        %v1055 = vpop.xlane.xlu0 %1054
        %1056 = vmax.xlane.f32.xlu0 %v1040
        %v1057 = vpop.xlane.xlu0 %1056
        %v1058 = vsub.f32 %v1019, %v1043
        %v1059 = vsub.f32 %v1022, %v1045
        %v1060 = vsub.f32 %v1025, %v1047
        %v1061 = vsub.f32 %v1028, %v1049
        %v1062 = vsub.f32 %v1031, %v1051
        %v1063 = vsub.f32 %v1034, %v1053
        %v1064 = vsub.f32 %v1037, %v1055
        %v1065 = vsub.f32 %v1040, %v1057
        %v1066 = vmul.f32 %v1058, 1.442695
        %v1067 = vpow.pop %v1066
        %v1068 = vmul.f32 %v1059, 1.442695
        %v1069 = vpow.pop %v1068
        %v1070 = vmul.f32 %v1060, 1.442695
        %v1071 = vpow.pop %v1070
        %v1072 = vmul.f32 %v1061, 1.442695
        %v1073 = vpow.pop %v1072
        %v1074 = vmul.f32 %v1062, 1.442695
        %v1075 = vpow.pop %v1074
        %v1076 = vmul.f32 %v1063, 1.442695
        %v1077 = vpow.pop %v1076
        %v1078 = vmul.f32 %v1064, 1.442695
        %v1079 = vpow.pop %v1078
        %v1080 = vmul.f32 %v1065, 1.442695
        %v1081 = vpow.pop %v1080
        %1082 = vadd.xlane.f32.xlu0 %v1067
        %v1083 = vpop.xlane.xlu0 %1082
        %1084 = vadd.xlane.f32.xlu0 %v1069
        %v1085 = vpop.xlane.xlu0 %1084
        %1086 = vadd.xlane.f32.xlu0 %v1071
        %v1087 = vpop.xlane.xlu0 %1086
        %1088 = vadd.xlane.f32.xlu0 %v1073
        %v1089 = vpop.xlane.xlu0 %1088
        %1090 = vadd.xlane.f32.xlu0 %v1075
        %v1091 = vpop.xlane.xlu0 %1090
        %1092 = vadd.xlane.f32.xlu0 %v1077
        %v1093 = vpop.xlane.xlu0 %1092
        %1094 = vadd.xlane.f32.xlu0 %v1079
        %v1095 = vpop.xlane.xlu0 %1094
        %1096 = vadd.xlane.f32.xlu0 %v1081
        %v1097 = vpop.xlane.xlu0 %1096
        %v1098 = vrcp.pop %v1083
        %v1099 = vrcp.pop %v1085
        %v1100 = vrcp.pop %v1087
        %v1101 = vrcp.pop %v1089
        %v1102 = vrcp.pop %v1091
        %v1103 = vrcp.pop %v1093
        %v1104 = vrcp.pop %v1095
        %v1105 = vrcp.pop %v1097
        %v1106 = vmul.f32 %v1067, %v1098
        %v1107 = vmul.f32 %v1069, %v1099
        %v1108 = vmul.f32 %v1071, %v1100
        %v1109 = vmul.f32 %v1073, %v1101
        %v1110 = vmul.f32 %v1075, %v1102
        %v1111 = vmul.f32 %v1077, %v1103
        %v1112 = vmul.f32 %v1079, %v1104
        %v1113 = vmul.f32 %v1081, %v1105
        %v1114 = vld [vmem:[#allocation3] sm:$0xff]
        %v1115 = vld [vmem:[#allocation3 + $0x8] sm:$0xff]
        %v1116 = vld [vmem:[#allocation3 + $0x10] sm:$0xff]
        %v1117 = vld [vmem:[#allocation3 + $0x18] sm:$0xff]
        %v1118 = vld [vmem:[#allocation3 + $0x20] sm:$0xff]
        %v1119 = vld [vmem:[#allocation3 + $0x28] sm:$0xff]
        %v1120 = vld [vmem:[#allocation3 + $0x30] sm:$0xff]
        %v1121 = vld [vmem:[#allocation3 + $0x38] sm:$0xff]
        %v1122 = vld [vmem:[#allocation3 + $0x40] sm:$0xff]
        %v1123 = vld [vmem:[#allocation3 + $0x48] sm:$0xff]
        %v1124 = vld [vmem:[#allocation3 + $0x50] sm:$0xff]
        %v1125 = vld [vmem:[#allocation3 + $0x58] sm:$0xff]
        %v1126 = vld [vmem:[#allocation3 + $0x60] sm:$0xff]
        %v1127 = vld [vmem:[#allocation3 + $0x68] sm:$0xff]
        %v1128 = vld [vmem:[#allocation3 + $0x70] sm:$0xff]
        %v1129 = vld [vmem:[#allocation3 + $0x78] sm:$0xff]
        %1130 = vmatpush.msra.mxu0 %v1129
        %1131 = vmatpush.msra.mxu0 %v1128
        %1132 = vmatpush.msra.mxu0 %v1127
        %1133 = vmatpush.msra.mxu0 %v1126
        %1134 = vmatpush.msra.mxu0 %v1125
        %1135 = vmatpush.msra.mxu0 %v1124
        %1136 = vmatpush.msra.mxu0 %v1123
        %1137 = vmatpush.msra.mxu0 %v1122
        %1138 = vmatpush.msra.mxu0 %v1121
        %1139 = vmatpush.msra.mxu0 %v1120
        %1140 = vmatpush.msra.mxu0 %v1119
        %1141 = vmatpush.msra.mxu0 %v1118
        %1142 = vmatpush.msra.mxu0 %v1117
        %1143 = vmatpush.msra.mxu0 %v1116
        %1144 = vmatpush.msra.mxu0 %v1115
        %1145 = vmatpush.msra.mxu0 %v1114
        %1146 = vmatmul.f32.gmra.mxu0 %v1106
        %v1147 = vpop.f32.mrf.mxu0
        %v1148 = vadd.f32 0.0, %v1147
        %1149 = vmatmul.f32.gmra.mxu0 %v1107
        %v1150 = vpop.f32.mrf.mxu0
        %v1151 = vadd.f32 0.0, %v1150
        %1152 = vmatmul.f32.gmra.mxu0 %v1108
        %v1153 = vpop.f32.mrf.mxu0
        %v1154 = vadd.f32 0.0, %v1153
        %1155 = vmatmul.f32.gmra.mxu0 %v1109
        %v1156 = vpop.f32.mrf.mxu0
        %v1157 = vadd.f32 0.0, %v1156
        %1158 = vmatmul.f32.gmra.mxu0 %v1110
        %v1159 = vpop.f32.mrf.mxu0
        %v1160 = vadd.f32 0.0, %v1159
        %1161 = vmatmul.f32.gmra.mxu0 %v1111
        %v1162 = vpop.f32.mrf.mxu0
        %v1163 = vadd.f32 0.0, %v1162
        %1164 = vmatmul.f32.gmra.mxu0 %v1112
        %v1165 = vpop.f32.mrf.mxu0
        %v1166 = vadd.f32 0.0, %v1165
        %1167 = vmatmul.f32.gmra.mxu0 %v1113
        %v1168 = vpop.f32.mrf.mxu0
        %v1169 = vadd.f32 0.0, %v1168
        %1170 = vdwg.mxu0
        %v1171 = vld [vmem:[%s516] sm:$0xff]
        %v1172 = vld [vmem:[%s516 + $0x8] sm:$0xff]
        %v1173 = vld [vmem:[%s516 + $0x10] sm:$0xff]
        %v1174 = vld [vmem:[%s516 + $0x18] sm:$0xff]
        %v1175 = vld [vmem:[%s516 + $0x20] sm:$0xff]
        %v1176 = vld [vmem:[%s516 + $0x28] sm:$0xff]
        %v1177 = vld [vmem:[%s516 + $0x30] sm:$0xff]
        %v1178 = vld [vmem:[%s516 + $0x38] sm:$0xff]
        %1180 = vset.pattern.permute.xlu0 0
        %1181 = vperm.xlu0 %1180, %v1171
        %v1182 = vpop.permute.xlu0 %1181
        %1185 = vset.pattern.permute.xlu0 0
        %1186 = vperm.xlu0 %1185, %v1172
        %v1187 = vpop.permute.xlu0 %1186
        %1190 = vset.pattern.permute.xlu0 0
        %1191 = vperm.xlu0 %1190, %v1173
        %v1192 = vpop.permute.xlu0 %1191
        %1195 = vset.pattern.permute.xlu0 0
        %1196 = vperm.xlu0 %1195, %v1174
        %v1197 = vpop.permute.xlu0 %1196
        %1200 = vset.pattern.permute.xlu0 0
        %1201 = vperm.xlu0 %1200, %v1175
        %v1202 = vpop.permute.xlu0 %1201
        %1205 = vset.pattern.permute.xlu0 0
        %1206 = vperm.xlu0 %1205, %v1176
        %v1207 = vpop.permute.xlu0 %1206
        %1210 = vset.pattern.permute.xlu0 0
        %1211 = vperm.xlu0 %1210, %v1177
        %v1212 = vpop.permute.xlu0 %1211
        %1215 = vset.pattern.permute.xlu0 0
        %1216 = vperm.xlu0 %1215, %v1178
        %v1217 = vpop.permute.xlu0 %1216
        %v1219 = vmul.f32 %v1182, %v1148
        %v1220 = vmul.f32 %v1187, %v1151
        %v1221 = vmul.f32 %v1192, %v1154
        %v1222 = vmul.f32 %v1197, %v1157
        %v1223 = vmul.f32 %v1202, %v1160
        %v1224 = vmul.f32 %v1207, %v1163
        %v1225 = vmul.f32 %v1212, %v1166
        %v1226 = vmul.f32 %v1217, %v1169
        %1227 = vst [vmem:[%s505] sm:$0xff] %v1219
        %1228 = vst [vmem:[%s505 + $0x8] sm:$0xff] %v1220
        %1229 = vst [vmem:[%s505 + $0x10] sm:$0xff] %v1221
        %1230 = vst [vmem:[%s505 + $0x18] sm:$0xff] %v1222
        %1231 = vst [vmem:[%s505 + $0x20] sm:$0xff] %v1223
        %1232 = vst [vmem:[%s505 + $0x28] sm:$0xff] %v1224
        %1233 = vst [vmem:[%s505 + $0x30] sm:$0xff] %v1225
        %1234 = vst [vmem:[%s505 + $0x38] sm:$0xff] %v1226
        %s1235 = sand.u32 %s283, 1
        %s1236 = scalar_lea.sflag [#allocation6], %s1235
        %s1237 = sand.u32 %s283, 1
        %s1238 = smul.addr %s1237, 64
        %s1239 = scalar_lea.vmem [#allocation13], %s1238
        // Predicated region
        $region85: #{tpu_custom_call.1} parent=59 // pred_check
          %p1240 = pneg %p293
        $region86: #{tpu_custom_call.1} parent=59 // pred_check_branch
          %1242 = sbr.rel (%p1240) target = $region88
        $region87: #{tpu_custom_call.1} parent=59 // pred_region
          %s1243 = smul.u32 8, %s34
          %1245 = vsyncadd %s1236, 0
          %s1246 = smul.addr %s33, 16
          %s1247 = sadd.s32 %s1243, %s1246
          %s1248 = smul.addr %s1247, 8
          %s1249 = scalar_lea.hbm %s10, %s1248
          %s1250 = sshll.u32 %s1239, 4
          %s1251 = int_to_ptr.vmem [resolvable:$true] %s1250
          %s1252 = sshll.u32 %s1249, 4
          %s1253 = int_to_ptr.hbm [resolvable:$true] %s1252
          %1258 = dma.vmem_to_hbm [thread:$0]  %s1251, 1024, %s1253, %s1236, 128, 128, 8
        $region88: #{tpu_custom_call.1} parent=59 // pred_fallthru
          _
      $region60: #{tpu_custom_call.1} parent=5 // pred_fallthru
        _
      %p1259 = scmp.le.s32.totalorder 2, %s24
      // Predicated region
      $region89: #{tpu_custom_call.1} parent=5 // pred_check
        %p1260 = pneg %p1259
      $region90: #{tpu_custom_call.1} parent=5 // pred_check_branch
        %1262 = sbr.rel (%p1260) target = $region92
      $region91: #{tpu_custom_call.1} parent=5 // pred_region
        %s1263 = ssub.s32 %s24, 2
        // Predicated region
        $region93: #{tpu_custom_call.1} parent=91 // pred_check
          %p1264 = pneg %p299
        $region94: #{tpu_custom_call.1} parent=91 // pred_check_branch
          %1266 = sbr.rel (%p1264) target = $region96
        $region95: #{tpu_custom_call.1} parent=91 // pred_region
          %s1267 = sand.u32 %s284, 1
          %s1268 = scalar_lea.sflag [#allocation6], %s1267
          %s1269 = sand.u32 %s284, 1
          %s1270 = smul.addr %s1269, 64
          %s1271 = scalar_lea.vmem [#allocation13], %s1270
          %1273 = dma.done %s1268, 1024
        $region96: #{tpu_custom_call.1} parent=91 // pred_fallthru
          _
      $region92: #{tpu_custom_call.1} parent=5 // pred_fallthru
        _
    $region6: #{tpu_custom_call.1} parent=1 // loop_footer
      %s28 = sadd.s32 1, %s24
    $region7: #{tpu_custom_call.1} parent=1 // loop_footer_branch
      %23 = sbr.rel target = $region3
    $region8: #{tpu_custom_call.1} parent=1 // loop_exit
      _
    %1274 = vsyncpa [#allocation5], 1
    %s1275 = scalar_lea.sflag [#allocation5], 1
    %1276 = vsyncpa %s1275, 1
    %1277 = vsyncpa [#allocation8], 1
    %1278 = vsyncpa [#allocation11], 1
    %1279 = vsyncpa [#allocation6], 1
    %s1280 = scalar_lea.sflag [#allocation6], 1
    %1281 = vsyncpa %s1280, 1

// kernel: tpu_custom_call.1
$region0: #{tpu_custom_call.1}
  #allocation0 [shape = 'u32[]', space=smem, size = 0x4, offset = 0x4, fixed_abs, tag = 'smem constant byte address 0x4 - core index']
  #allocation1 [shape = 'u32[72,128]{1,0:T(1,128)}', space=vmem, size = 0x9000, scoped, tag = 'internal scratch']
  #allocation2 [shape = 'f32[128,128]{1,0:T(8,128)}', space=vmem, size = 0x10000, scoped, tag = 'scratch operand']
  #allocation3 [shape = 'f32[128,128]{1,0:T(8,128)}', space=vmem, size = 0x10000, scoped, tag = 'scratch operand']
  %s0 = inlined_call_operand.vmem [shape: f32[1,128,128], index: 0, kind: input, shape index: {}]
  %s1 = inlined_call_operand.hbm [shape: f32[1,128,128], index: 1, kind: input, shape index: {}]
  %s2 = inlined_call_operand.hbm [shape: f32[128,128], index: 2, kind: input, shape index: {}]
  %s3 = inlined_call_operand.vmem [shape: f32[1,128], index: 3, kind: input, shape index: {}]
  %s4 = inlined_call_operand.hbm [shape: f32[128,256], index: 4, kind: input, shape index: {}]
  %s5 = inlined_call_operand.vmem [shape: f32[1,256], index: 5, kind: input, shape index: {}]
  %s6 = inlined_call_operand.hbm [shape: f32[1,128,128], index: 6, kind: input, shape index: {}]
  %s7 = inlined_call_operand.hbm [shape: f32[1,128,128], index: 7, kind: input, shape index: {}]
  %s8 = inlined_call_operand.vmem [shape: f32[128,1], index: 8, kind: input, shape index: {}]
  %s9 = inlined_call_operand.vmem [shape: f32[1,128], index: 9, kind: input, shape index: {}]
  %s10 = inlined_call_operand.hbm [shape: f32[1,128,128], index: 10, kind: output, shape index: {}]
  %s11 = sld [smem:[#allocation0]]
  $region97: #{tpu_custom_call.1} parent=0
    _
  %s13 = ssub.s32 1, %s11
  %s14 = scalar_select 0, %s13, %s11
  $region1: #{tpu_custom_call.1} parent=0
    #allocation4 [shape = 'u8[65536]{0}', space=vmem, size = 0x10000, scoped, tag = 'input window, operand 1']
    #allocation5 [shape = 's32[2]{0}', space=sflag, size = 0x8, scoped, tag = 'scoped memory for tpu_custom_call.1']
    #allocation6 [shape = 's32[2]{0}', space=sflag, size = 0x8, scoped, tag = 'scoped memory for tpu_custom_call.1']
    #allocation7 [shape = 'u8[65536]{0}', space=vmem, size = 0x10000, scoped, tag = 'input window, operand 2, single buffered']
    #allocation8 [shape = 's32[1]{0}', space=sflag, size = 0x4, scoped, tag = 'scoped memory for tpu_custom_call.1']
    #allocation9 [shape = 'u8[131072]{0}', space=vmem, size = 0x20000, scoped, tag = 'input window, operand 4, single buffered']
    #allocation10 [shape = 'u8[65536]{0}', space=vmem, size = 0x10000, scoped, tag = 'input window, operand 6, single buffered']
    #allocation11 [shape = 's32[1]{0}', space=sflag, size = 0x4, scoped, tag = 'scoped memory for tpu_custom_call.1']
    #allocation12 [shape = 'u8[65536]{0}', space=vmem, size = 0x10000, scoped, tag = 'input window, operand 7, single buffered']
    #allocation13 [shape = 'u8[65536]{0}', space=vmem, size = 0x10000, scoped, tag = 'output window, operand 0']
    %15 = vsyncpa [#allocation5], 0
    %s16 = scalar_lea.sflag [#allocation5], 1
    %17 = vsyncpa %s16, 0
    %18 = vsyncpa [#allocation8], 0
    %19 = vsyncpa [#allocation11], 0
    %20 = vsyncpa [#allocation6], 0
    %s21 = scalar_lea.sflag [#allocation6], 1
    %22 = vsyncpa %s21, 0
    loop: start=0, step=1, limit=4
    $region2: #{tpu_custom_call.1} parent=1 // loop_pre_header
      _
    $region3: #{tpu_custom_call.1} parent=1 // loop_header
      %s24 = sphi 0, %s28
      %p25 = scmp.ge.s32.totalorder %s24, 4
      %s31 = sphi 0, %s43
      %s32 = sphi 0, %s39
      %s33 = sphi 0, %s31
      %s34 = sphi 0, %s32
      %s35 = sphi 0, %s33
      %s36 = sphi 0, %s34
      %s46 = sphi 0, %s48
      %s49 = sphi 0, %s46
      %s50 = sphi 0, %s49
      %s66 = sphi 0, %s50
      %s74 = sphi 0, %s76
      %s77 = sphi 0, %s74
      %s78 = sphi 0, %s77
      %s94 = sphi 0, %s78
      %s98 = sphi 0, %s98
      %s100 = sphi 0, %s98
      %s101 = sphi 0, %s100
      %s115 = sphi 0, %s101
      %s119 = sphi 0, %s119
      %s121 = sphi 0, %s119
      %s122 = sphi 0, %s121
      %s136 = sphi 0, %s122
      %s140 = sphi 0, %s140
      %s142 = sphi 0, %s140
      %s143 = sphi 0, %s142
      %s157 = sphi 0, %s143
      %s161 = sphi 0, %s161
      %s163 = sphi 0, %s161
      %s164 = sphi 0, %s163
      %s178 = sphi 0, %s164
      %s182 = sphi 0, %s182
      %s184 = sphi 0, %s182
      %s185 = sphi 0, %s184
      %s199 = sphi 0, %s185
      %s203 = sphi 0, %s203
      %s205 = sphi 0, %s203
      %s206 = sphi 0, %s205
      %s220 = sphi 0, %s206
      %s226 = sphi 0, %s228
      %s229 = sphi 0, %s226
      %s230 = sphi 0, %s229
      %s246 = sphi 0, %s230
      %s252 = sphi 0, %s254
      %s255 = sphi 0, %s252
      %s256 = sphi 0, %s255
      %s272 = sphi 0, %s256
      %s280 = sphi 0, %s282
      %s283 = sphi 0, %s280
      %s284 = sphi 0, %s283
      %s300 = sphi 0, %s284
    $region4: #{tpu_custom_call.1} parent=1 // loop_header_branch
      %27 = sbr.rel (%p25) target = $region8
    $region5: #{tpu_custom_call.1} parent=1 // loop_body
      %s29 = ssub.s32 %s24, 1
      %s30 = ssub.s32 %s24, 2
      %s37 = sadd.s32 1, %s32
      %p38 = scmp.ge.s32.totalorder %s37, 2
      %s39 = scalar_select %p38, 0, %s37
      %s40 = sadd.s32 1, %s31
      %s41 = scalar_select %p38, %s40, %s31
      %p42 = scmp.ge.s32.totalorder %s41, 1
      %s43 = scalar_select %p42, 0, %s41
      %s44 = ssub.s32 %s31, %s43
      %p45 = scmp.eq.s32.totalorder %s44, 0
      %s47 = sadd.s32 %s46, 1
      %s48 = scalar_select %p45, %s46, %s47
      %p51 = pneg %p45
      %p52 = scmp.eq.s32.totalorder %s24, 1
      %p53 = por %p51, %p52
      %p54 = scmp.ne.s32.totalorder %s46, %s49
      %p55 = scmp.eq.s32.totalorder %s24, 0
      %p56 = por %p54, %p55
      %p57 = scmp.ne.s32.totalorder %s46, %s49
      %p58 = scmp.eq.s32.totalorder %s29, 1
      %p59 = por %p57, %p58
      %p60 = scmp.ne.s32.totalorder %s49, %s50
      %p61 = scmp.eq.s32.totalorder %s29, 0
      %p62 = por %p60, %p61
      %p63 = scmp.ne.s32.totalorder %s49, %s50
      %p64 = scmp.eq.s32.totalorder %s30, 1
      %p65 = por %p63, %p64
      %p67 = scmp.ne.s32.totalorder %s50, %s66
      %p68 = scmp.eq.s32.totalorder %s30, 0
      %p69 = por %p67, %p68
      %s70 = ssub.s32 %s31, %s43
      %s71 = ssub.s32 %s32, %s39
      %s72 = sor.u32 %s70, %s71
      %p73 = scmp.eq.s32.totalorder %s72, 0
      %s75 = sadd.s32 %s74, 1
      %s76 = scalar_select %p73, %s74, %s75
      %p79 = pneg %p73
      %p80 = scmp.eq.s32.totalorder %s24, 1
      %p81 = por %p79, %p80
      %p82 = scmp.ne.s32.totalorder %s74, %s77
      %p83 = scmp.eq.s32.totalorder %s24, 0
      %p84 = por %p82, %p83
      %p85 = scmp.ne.s32.totalorder %s74, %s77
      %p86 = scmp.eq.s32.totalorder %s29, 1
      %p87 = por %p85, %p86
      %p88 = scmp.ne.s32.totalorder %s77, %s78
      %p89 = scmp.eq.s32.totalorder %s29, 0
      %p90 = por %p88, %p89
      %p91 = scmp.ne.s32.totalorder %s77, %s78
      %p92 = scmp.eq.s32.totalorder %s30, 1
      %p93 = por %p91, %p92
      %p95 = scmp.ne.s32.totalorder %s78, %s94
      %p96 = scmp.eq.s32.totalorder %s30, 0
      %p97 = por %p95, %p96
      %s99 = sadd.s32 %s98, 1
      %p102 = scmp.eq.s32.totalorder %s24, 1
      %p103 = scmp.ne.s32.totalorder %s98, %s100
      %p104 = scmp.eq.s32.totalorder %s24, 0
      %p105 = por %p103, %p104
      %p106 = scmp.ne.s32.totalorder %s98, %s100
      %p107 = scmp.eq.s32.totalorder %s29, 1
      %p108 = por %p106, %p107
      %p109 = scmp.ne.s32.totalorder %s100, %s101
      %p110 = scmp.eq.s32.totalorder %s29, 0
      %p111 = por %p109, %p110
      %p112 = scmp.ne.s32.totalorder %s100, %s101
      %p113 = scmp.eq.s32.totalorder %s30, 1
      %p114 = por %p112, %p113
      %p116 = scmp.ne.s32.totalorder %s101, %s115
      %p117 = scmp.eq.s32.totalorder %s30, 0
      %p118 = por %p116, %p117
      %s120 = sadd.s32 %s119, 1
      %p123 = scmp.eq.s32.totalorder %s24, 1
      %p124 = scmp.ne.s32.totalorder %s119, %s121
      %p125 = scmp.eq.s32.totalorder %s24, 0
      %p126 = por %p124, %p125
      %p127 = scmp.ne.s32.totalorder %s119, %s121
      %p128 = scmp.eq.s32.totalorder %s29, 1
      %p129 = por %p127, %p128
      %p130 = scmp.ne.s32.totalorder %s121, %s122
      %p131 = scmp.eq.s32.totalorder %s29, 0
      %p132 = por %p130, %p131
      %p133 = scmp.ne.s32.totalorder %s121, %s122
      %p134 = scmp.eq.s32.totalorder %s30, 1
      %p135 = por %p133, %p134
      %p137 = scmp.ne.s32.totalorder %s122, %s136
      %p138 = scmp.eq.s32.totalorder %s30, 0
      %p139 = por %p137, %p138
      %s141 = sadd.s32 %s140, 1
      %p144 = scmp.eq.s32.totalorder %s24, 1
      %p145 = scmp.ne.s32.totalorder %s140, %s142
      %p146 = scmp.eq.s32.totalorder %s24, 0
      %p147 = por %p145, %p146
      %p148 = scmp.ne.s32.totalorder %s140, %s142
      %p149 = scmp.eq.s32.totalorder %s29, 1
      %p150 = por %p148, %p149
      %p151 = scmp.ne.s32.totalorder %s142, %s143
      %p152 = scmp.eq.s32.totalorder %s29, 0
      %p153 = por %p151, %p152
      %p154 = scmp.ne.s32.totalorder %s142, %s143
      %p155 = scmp.eq.s32.totalorder %s30, 1
      %p156 = por %p154, %p155
      %p158 = scmp.ne.s32.totalorder %s143, %s157
      %p159 = scmp.eq.s32.totalorder %s30, 0
      %p160 = por %p158, %p159
      %s162 = sadd.s32 %s161, 1
      %p165 = scmp.eq.s32.totalorder %s24, 1
      %p166 = scmp.ne.s32.totalorder %s161, %s163
      %p167 = scmp.eq.s32.totalorder %s24, 0
      %p168 = por %p166, %p167
      %p169 = scmp.ne.s32.totalorder %s161, %s163
      %p170 = scmp.eq.s32.totalorder %s29, 1
      %p171 = por %p169, %p170
      %p172 = scmp.ne.s32.totalorder %s163, %s164
      %p173 = scmp.eq.s32.totalorder %s29, 0
      %p174 = por %p172, %p173
      %p175 = scmp.ne.s32.totalorder %s163, %s164
      %p176 = scmp.eq.s32.totalorder %s30, 1
      %p177 = por %p175, %p176
      %p179 = scmp.ne.s32.totalorder %s164, %s178
      %p180 = scmp.eq.s32.totalorder %s30, 0
      %p181 = por %p179, %p180
      %s183 = sadd.s32 %s182, 1
      %p186 = scmp.eq.s32.totalorder %s24, 1
      %p187 = scmp.ne.s32.totalorder %s182, %s184
      %p188 = scmp.eq.s32.totalorder %s24, 0
      %p189 = por %p187, %p188
      %p190 = scmp.ne.s32.totalorder %s182, %s184
      %p191 = scmp.eq.s32.totalorder %s29, 1
      %p192 = por %p190, %p191
      %p193 = scmp.ne.s32.totalorder %s184, %s185
      %p194 = scmp.eq.s32.totalorder %s29, 0
      %p195 = por %p193, %p194
      %p196 = scmp.ne.s32.totalorder %s184, %s185
      %p197 = scmp.eq.s32.totalorder %s30, 1
      %p198 = por %p196, %p197
      %p200 = scmp.ne.s32.totalorder %s185, %s199
      %p201 = scmp.eq.s32.totalorder %s30, 0
      %p202 = por %p200, %p201
      %s204 = sadd.s32 %s203, 1
      %p207 = scmp.eq.s32.totalorder %s24, 1
      %p208 = scmp.ne.s32.totalorder %s203, %s205
      %p209 = scmp.eq.s32.totalorder %s24, 0
      %p210 = por %p208, %p209
      %p211 = scmp.ne.s32.totalorder %s203, %s205
      %p212 = scmp.eq.s32.totalorder %s29, 1
      %p213 = por %p211, %p212
      %p214 = scmp.ne.s32.totalorder %s205, %s206
      %p215 = scmp.eq.s32.totalorder %s29, 0
      %p216 = por %p214, %p215
      %p217 = scmp.ne.s32.totalorder %s205, %s206
      %p218 = scmp.eq.s32.totalorder %s30, 1
      %p219 = por %p217, %p218
      %p221 = scmp.ne.s32.totalorder %s206, %s220
      %p222 = scmp.eq.s32.totalorder %s30, 0
      %p223 = por %p221, %p222
      %s224 = ssub.s32 %s32, %s39
      %p225 = scmp.eq.s32.totalorder %s224, 0
      %s227 = sadd.s32 %s226, 1
      %s228 = scalar_select %p225, %s226, %s227
      %p231 = pneg %p225
      %p232 = scmp.eq.s32.totalorder %s24, 1
      %p233 = por %p231, %p232
      %p234 = scmp.ne.s32.totalorder %s226, %s229
      %p235 = scmp.eq.s32.totalorder %s24, 0
      %p236 = por %p234, %p235
      %p237 = scmp.ne.s32.totalorder %s226, %s229
      %p238 = scmp.eq.s32.totalorder %s29, 1
      %p239 = por %p237, %p238
      %p240 = scmp.ne.s32.totalorder %s229, %s230
      %p241 = scmp.eq.s32.totalorder %s29, 0
      %p242 = por %p240, %p241
      %p243 = scmp.ne.s32.totalorder %s229, %s230
      %p244 = scmp.eq.s32.totalorder %s30, 1
      %p245 = por %p243, %p244
      %p247 = scmp.ne.s32.totalorder %s230, %s246
      %p248 = scmp.eq.s32.totalorder %s30, 0
      %p249 = por %p247, %p248
      %s250 = ssub.s32 %s31, %s43
      %p251 = scmp.eq.s32.totalorder %s250, 0
      %s253 = sadd.s32 %s252, 1
      %s254 = scalar_select %p251, %s252, %s253
      %p257 = pneg %p251
      %p258 = scmp.eq.s32.totalorder %s24, 1
      %p259 = por %p257, %p258
      %p260 = scmp.ne.s32.totalorder %s252, %s255
      %p261 = scmp.eq.s32.totalorder %s24, 0
      %p262 = por %p260, %p261
      %p263 = scmp.ne.s32.totalorder %s252, %s255
      %p264 = scmp.eq.s32.totalorder %s29, 1
      %p265 = por %p263, %p264
      %p266 = scmp.ne.s32.totalorder %s255, %s256
      %p267 = scmp.eq.s32.totalorder %s29, 0
      %p268 = por %p266, %p267
      %p269 = scmp.ne.s32.totalorder %s255, %s256
      %p270 = scmp.eq.s32.totalorder %s30, 1
      %p271 = por %p269, %p270
      %p273 = scmp.ne.s32.totalorder %s256, %s272
      %p274 = scmp.eq.s32.totalorder %s30, 0
      %p275 = por %p273, %p274
      %s276 = ssub.s32 %s31, %s43
      %s277 = ssub.s32 %s32, %s39
      %s278 = sor.u32 %s276, %s277
      %p279 = scmp.eq.s32.totalorder %s278, 0
      %s281 = sadd.s32 %s280, 1
      %s282 = scalar_select %p279, %s280, %s281
      %p285 = pneg %p279
      %p286 = scmp.eq.s32.totalorder %s24, 1
      %p287 = por %p285, %p286
      %p288 = scmp.ne.s32.totalorder %s280, %s283
      %p289 = scmp.eq.s32.totalorder %s24, 0
      %p290 = por %p288, %p289
      %p291 = scmp.ne.s32.totalorder %s280, %s283
      %p292 = scmp.eq.s32.totalorder %s29, 1
      %p293 = por %p291, %p292
      %p294 = scmp.ne.s32.totalorder %s283, %s284
      %p295 = scmp.eq.s32.totalorder %s29, 0
      %p296 = por %p294, %p295
      %p297 = scmp.ne.s32.totalorder %s283, %s284
      %p298 = scmp.eq.s32.totalorder %s30, 1
      %p299 = por %p297, %p298
      %p301 = scmp.ne.s32.totalorder %s284, %s300
      %p302 = scmp.eq.s32.totalorder %s30, 0
      %p303 = por %p301, %p302
      %p304 = scmp.le.s32.totalorder 1, %s24
      %p305 = scmp.lt.s32.totalorder %s24, 3
      %p306 = pnand %p304, %p305
      %p307 = pneg %p306
      // Predicated region
      $region9: #{tpu_custom_call.1} parent=5 // pred_check
        _
      $region10: #{tpu_custom_call.1} parent=5 // pred_check_branch
        %309 = sbr.rel (%p306) target = $region12
      $region11: #{tpu_custom_call.1} parent=5 // pred_region
        %s310 = ssub.s32 %s24, 1
        // Predicated region
        $region13: #{tpu_custom_call.1} parent=11 // pred_check
          %p311 = pneg %p62
        $region14: #{tpu_custom_call.1} parent=11 // pred_check_branch
          %313 = sbr.rel (%p311) target = $region16
        $region15: #{tpu_custom_call.1} parent=11 // pred_region
          %p314 = scmp.lt.s32.totalorder %s33, 0
          %s315 = scalar_select %p314, %s33, 0
          %s316 = smul.addr %s315, 16
          %s317 = smul.addr %s316, 8
          %s318 = scalar_lea.vmem %s0, %s317
        $region16: #{tpu_custom_call.1} parent=11 // pred_fallthru
          _
        // Predicated region
        $region17: #{tpu_custom_call.1} parent=11 // pred_check
          %p319 = pneg %p111
        $region18: #{tpu_custom_call.1} parent=11 // pred_check_branch
          %321 = sbr.rel (%p319) target = $region20
        $region19: #{tpu_custom_call.1} parent=11 // pred_region
          %323 = vsyncadd [#allocation8], 0
          %s324 = sshll.u32 %s2, 4
          %s325 = int_to_ptr.hbm [resolvable:$true] %s324
          %s326 = sshll.u32 [#allocation7], 4
          %s327 = int_to_ptr.vmem [resolvable:$true] %s326
          %332 = dma.hbm_to_vmem [thread:$0]  %s325, 2048, %s327, [#allocation8], 128, 128, 8
        $region20: #{tpu_custom_call.1} parent=11 // pred_fallthru
          _
        // Predicated region
        $region21: #{tpu_custom_call.1} parent=11 // pred_check
          %p333 = pneg %p132
        $region22: #{tpu_custom_call.1} parent=11 // pred_check_branch
          %335 = sbr.rel (%p333) target = $region24
        $region23: #{tpu_custom_call.1} parent=11 // pred_region
          _
        $region24: #{tpu_custom_call.1} parent=11 // pred_fallthru
          _
        // Predicated region
        $region25: #{tpu_custom_call.1} parent=11 // pred_check
          %p336 = pneg %p153
        $region26: #{tpu_custom_call.1} parent=11 // pred_check_branch
          %338 = sbr.rel (%p336) target = $region28
        $region27: #{tpu_custom_call.1} parent=11 // pred_region
          %340 = vsyncadd [#allocation8], 0
          %s341 = sshll.u32 %s4, 4
          %s342 = int_to_ptr.hbm [resolvable:$true] %s341
          %s343 = sshll.u32 [#allocation9], 4
          %s344 = int_to_ptr.vmem [resolvable:$true] %s343
          %349 = dma.hbm_to_vmem [thread:$0]  %s342, 4096, %s344, [#allocation8], 256, 256, 16
        $region28: #{tpu_custom_call.1} parent=11 // pred_fallthru
          _
        // Predicated region
        $region29: #{tpu_custom_call.1} parent=11 // pred_check
          %p350 = pneg %p174
        $region30: #{tpu_custom_call.1} parent=11 // pred_check_branch
          %352 = sbr.rel (%p350) target = $region32
        $region31: #{tpu_custom_call.1} parent=11 // pred_region
          _
        $region32: #{tpu_custom_call.1} parent=11 // pred_fallthru
          _
        // Predicated region
        $region33: #{tpu_custom_call.1} parent=11 // pred_check
          %p353 = pneg %p195
        $region34: #{tpu_custom_call.1} parent=11 // pred_check_branch
          %355 = sbr.rel (%p353) target = $region36
        $region35: #{tpu_custom_call.1} parent=11 // pred_region
          %357 = vsyncadd [#allocation11], 0
          %s358 = sshll.u32 %s6, 4
          %s359 = int_to_ptr.hbm [resolvable:$true] %s358
          %s360 = sshll.u32 [#allocation10], 4
          %s361 = int_to_ptr.vmem [resolvable:$true] %s360
          %366 = dma.hbm_to_vmem [thread:$0]  %s359, 2048, %s361, [#allocation11], 128, 128, 8
        $region36: #{tpu_custom_call.1} parent=11 // pred_fallthru
          _
        // Predicated region
        $region37: #{tpu_custom_call.1} parent=11 // pred_check
          %p367 = pneg %p216
        $region38: #{tpu_custom_call.1} parent=11 // pred_check_branch
          %369 = sbr.rel (%p367) target = $region40
        $region39: #{tpu_custom_call.1} parent=11 // pred_region
          %371 = vsyncadd [#allocation11], 0
          %s372 = sshll.u32 %s7, 4
          %s373 = int_to_ptr.hbm [resolvable:$true] %s372
          %s374 = sshll.u32 [#allocation12], 4
          %s375 = int_to_ptr.vmem [resolvable:$true] %s374
          %380 = dma.hbm_to_vmem [thread:$0]  %s373, 2048, %s375, [#allocation11], 128, 128, 8
        $region40: #{tpu_custom_call.1} parent=11 // pred_fallthru
          _
        // Predicated region
        $region41: #{tpu_custom_call.1} parent=11 // pred_check
          %p381 = pneg %p268
        $region42: #{tpu_custom_call.1} parent=11 // pred_check_branch
          %383 = sbr.rel (%p381) target = $region44
        $region43: #{tpu_custom_call.1} parent=11 // pred_region
          %p384 = scmp.lt.s32.totalorder %s33, 0
          %s385 = scalar_select %p384, %s33, 0
          %s386 = scalar_lea.vmem %s9, %s385
        $region44: #{tpu_custom_call.1} parent=11 // pred_fallthru
          _
      $region12: #{tpu_custom_call.1} parent=5 // pred_fallthru
        _
      %p387 = scmp.lt.s32.totalorder %s24, 2
      // Predicated region
      $region45: #{tpu_custom_call.1} parent=5 // pred_check
        %p388 = pneg %p387
      $region46: #{tpu_custom_call.1} parent=5 // pred_check_branch
        %390 = sbr.rel (%p388) target = $region48
      $region47: #{tpu_custom_call.1} parent=5 // pred_region
        // Predicated region
        $region49: #{tpu_custom_call.1} parent=47 // pred_check
          %p391 = pneg %p84
        $region50: #{tpu_custom_call.1} parent=47 // pred_check_branch
          %393 = sbr.rel (%p391) target = $region52
        $region51: #{tpu_custom_call.1} parent=47 // pred_region
          %s394 = sand.u32 %s74, 1
          %s395 = scalar_lea.sflag [#allocation5], %s394
          %s396 = sand.u32 %s74, 1
          %s397 = smul.addr %s396, 64
          %s398 = scalar_lea.vmem [#allocation4], %s397
          %s399 = smul.u32 8, %s32
          %401 = vsyncadd %s395, 0
          %s402 = smul.addr %s31, 16
          %s403 = sadd.s32 %s399, %s402
          %s404 = smul.addr %s403, 8
          %s405 = scalar_lea.hbm %s1, %s404
          %s406 = sshll.u32 %s405, 4
          %s407 = int_to_ptr.hbm [resolvable:$true] %s406
          %s408 = sshll.u32 %s398, 4
          %s409 = int_to_ptr.vmem [resolvable:$true] %s408
          %414 = dma.hbm_to_vmem [thread:$0]  %s407, 1024, %s409, %s395, 128, 128, 8
        $region52: #{tpu_custom_call.1} parent=47 // pred_fallthru
          _
        // Predicated region
        $region53: #{tpu_custom_call.1} parent=47 // pred_check
          %p415 = pneg %p236
        $region54: #{tpu_custom_call.1} parent=47 // pred_check_branch
          %417 = sbr.rel (%p415) target = $region56
        $region55: #{tpu_custom_call.1} parent=47 // pred_region
          %s418 = smul.u32 8, %s32
          %p419 = scmp.lt.s32.totalorder %s418, 15
          %s420 = scalar_select %p419, %s418, 15
          %s421 = smul.addr %s420, 8
          %s422 = scalar_lea.vmem %s8, %s421
          %s423 = smul.u32 8, %s32
        $region56: #{tpu_custom_call.1} parent=47 // pred_fallthru
          _
      $region48: #{tpu_custom_call.1} parent=5 // pred_fallthru
        _
      %p424 = scmp.le.s32.totalorder 1, %s24
      %p425 = scmp.lt.s32.totalorder %s24, 3
      %p426 = pnand %p424, %p425
      %p427 = pneg %p426
      // Predicated region
      $region57: #{tpu_custom_call.1} parent=5 // pred_check
        _
      $region58: #{tpu_custom_call.1} parent=5 // pred_check_branch
        %429 = sbr.rel (%p426) target = $region60
      $region59: #{tpu_custom_call.1} parent=5 // pred_region
        %s430 = ssub.s32 %s24, 1
        %s431 = sand.u32 %s77, 1
        %s432 = scalar_lea.sflag [#allocation5], %s431
        %s433 = sand.u32 %s77, 1
        %s434 = smul.addr %s433, 64
        %s435 = scalar_lea.vmem [#allocation4], %s434
        // Predicated region
        $region61: #{tpu_custom_call.1} parent=59 // pred_check
          %p436 = pneg %p90
        $region62: #{tpu_custom_call.1} parent=59 // pred_check_branch
          %438 = sbr.rel (%p436) target = $region64
        $region63: #{tpu_custom_call.1} parent=59 // pred_region
          %440 = dma.done %s432, 1024
        $region64: #{tpu_custom_call.1} parent=59 // pred_fallthru
          _
        // Predicated region
        $region65: #{tpu_custom_call.1} parent=59 // pred_check
          %p441 = pneg %p111
        $region66: #{tpu_custom_call.1} parent=59 // pred_check_branch
          %443 = sbr.rel (%p441) target = $region68
        $region67: #{tpu_custom_call.1} parent=59 // pred_region
          %445 = dma.done [#allocation8], 2048
        $region68: #{tpu_custom_call.1} parent=59 // pred_fallthru
          _
        // Predicated region
        $region69: #{tpu_custom_call.1} parent=59 // pred_check
          %p446 = pneg %p153
        $region70: #{tpu_custom_call.1} parent=59 // pred_check_branch
          %448 = sbr.rel (%p446) target = $region72
        $region71: #{tpu_custom_call.1} parent=59 // pred_region
          %450 = dma.done [#allocation8], 4096
        $region72: #{tpu_custom_call.1} parent=59 // pred_fallthru
          _
        // Predicated region
        $region73: #{tpu_custom_call.1} parent=59 // pred_check
          %p451 = pneg %p195
        $region74: #{tpu_custom_call.1} parent=59 // pred_check_branch
          %453 = sbr.rel (%p451) target = $region76
        $region75: #{tpu_custom_call.1} parent=59 // pred_region
          %455 = dma.done [#allocation11], 2048
        $region76: #{tpu_custom_call.1} parent=59 // pred_fallthru
          _
        // Predicated region
        $region77: #{tpu_custom_call.1} parent=59 // pred_check
          %p456 = pneg %p216
        $region78: #{tpu_custom_call.1} parent=59 // pred_check_branch
          %458 = sbr.rel (%p456) target = $region80
        $region79: #{tpu_custom_call.1} parent=59 // pred_region
          %460 = dma.done [#allocation11], 2048
        $region80: #{tpu_custom_call.1} parent=59 // pred_fallthru
          _
        %p461 = scmp.lt.s32.totalorder %s33, 0
        %s462 = scalar_select %p461, %s33, 0
        %s463 = smul.addr %s462, 16
        %s464 = smul.addr %s463, 8
        %s465 = scalar_lea.vmem %s0, %s464
        %p466 = pneg %p62
        %p467 = pneg %p59
        %s468 = sand.u32 %s77, 1
        %s469 = scalar_lea.sflag [#allocation5], %s468
        %s470 = sand.u32 %s77, 1
        %s471 = smul.addr %s470, 64
        %s472 = scalar_lea.vmem [#allocation4], %s471
        %p473 = pneg %p90
        %p474 = pneg %p87
        %p475 = pneg %p111
        %p476 = pneg %p108
        %p477 = pneg %p132
        %p478 = pneg %p129
        %p479 = pneg %p153
        %p480 = pneg %p150
        %p481 = pneg %p174
        %p482 = pneg %p171
        %p483 = pneg %p195
        %p484 = pneg %p192
        %p485 = pneg %p216
        %p486 = pneg %p213
        %s487 = smul.u32 8, %s34
        %p488 = scmp.lt.s32.totalorder %s487, 15
        %s489 = scalar_select %p488, %s487, 15
        %s490 = smul.addr %s489, 8
        %s491 = scalar_lea.vmem %s8, %s490
        %p492 = pneg %p242
        %p493 = pneg %p239
        %p494 = scmp.lt.s32.totalorder %s33, 0
        %s495 = scalar_select %p494, %s33, 0
        %s496 = scalar_lea.vmem %s9, %s495
        %p497 = pneg %p268
        %p498 = pneg %p265
        %p499 = pneg %p296
        %p500 = pneg %p293
        %s501 = sand.u32 %s283, 1
        %s502 = scalar_lea.sflag [#allocation6], %s501
        %s503 = sand.u32 %s283, 1
        %s504 = smul.addr %s503, 64
        %s505 = scalar_lea.vmem [#allocation13], %s504
        %p506 = scmp.lt.s32.totalorder %s33, 0
        %s507 = scalar_select %p506, %s33, 0
        %s508 = smul.addr %s507, 16
        %s509 = smul.addr %s508, 8
        %s510 = scalar_lea.vmem %s0, %s509
        %s511 = smul.u32 8, %s34
        %s512 = smul.u32 8, %s34
        %p513 = scmp.lt.s32.totalorder %s512, 15
        %s514 = scalar_select %p513, %s512, 15
        %s515 = smul.addr %s514, 8
        %s516 = scalar_lea.vmem %s8, %s515
        %s517 = smul.u32 8, %s34
        %p518 = scmp.lt.s32.totalorder %s33, 0
        %s519 = scalar_select %p518, %s33, 0
        %s520 = scalar_lea.vmem %s9, %s519
        %s521 = smul.u32 8, %s34
        %p522 = scmp.eq.s32.totalorder %s34, 0
        // Predicated region
        $region81: #{tpu_custom_call.1} parent=59 // pred_check
          %p523 = pneg %p522
        $region82: #{tpu_custom_call.1} parent=59 // pred_check_branch
          %525 = sbr.rel (%p523) target = $region84
        $region83: #{tpu_custom_call.1} parent=59 // pred_region
          %v526 = vld [vmem:[%s510] sm:$0xff]
          %v527 = vld [vmem:[%s510 + $0x8] sm:$0xff]
          %v528 = vld [vmem:[%s510 + $0x10] sm:$0xff]
          %v529 = vld [vmem:[%s510 + $0x18] sm:$0xff]
          %v530 = vld [vmem:[%s510 + $0x20] sm:$0xff]
          %v531 = vld [vmem:[%s510 + $0x28] sm:$0xff]
          %v532 = vld [vmem:[%s510 + $0x30] sm:$0xff]
          %v533 = vld [vmem:[%s510 + $0x38] sm:$0xff]
          %v534 = vld [vmem:[%s510 + $0x40] sm:$0xff]
          %v535 = vld [vmem:[%s510 + $0x48] sm:$0xff]
          %v536 = vld [vmem:[%s510 + $0x50] sm:$0xff]
          %v537 = vld [vmem:[%s510 + $0x58] sm:$0xff]
          %v538 = vld [vmem:[%s510 + $0x60] sm:$0xff]
          %v539 = vld [vmem:[%s510 + $0x68] sm:$0xff]
          %v540 = vld [vmem:[%s510 + $0x70] sm:$0xff]
          %v541 = vld [vmem:[%s510 + $0x78] sm:$0xff]
          %v542 = vld [vmem:[#allocation9] sm:$0xff]
          %v543 = vld [vmem:[#allocation9 + $0x8] sm:$0xff]
          %v544 = vld [vmem:[#allocation9 + $0x10] sm:$0xff]
          %v545 = vld [vmem:[#allocation9 + $0x18] sm:$0xff]
          %v546 = vld [vmem:[#allocation9 + $0x20] sm:$0xff]
          %v547 = vld [vmem:[#allocation9 + $0x28] sm:$0xff]
          %v548 = vld [vmem:[#allocation9 + $0x30] sm:$0xff]
          %v549 = vld [vmem:[#allocation9 + $0x38] sm:$0xff]
          %v550 = vld [vmem:[#allocation9 + $0x40] sm:$0xff]
          %v551 = vld [vmem:[#allocation9 + $0x48] sm:$0xff]
          %v552 = vld [vmem:[#allocation9 + $0x50] sm:$0xff]
          %v553 = vld [vmem:[#allocation9 + $0x58] sm:$0xff]
          %v554 = vld [vmem:[#allocation9 + $0x60] sm:$0xff]
          %v555 = vld [vmem:[#allocation9 + $0x68] sm:$0xff]
          %v556 = vld [vmem:[#allocation9 + $0x70] sm:$0xff]
          %v557 = vld [vmem:[#allocation9 + $0x78] sm:$0xff]
          %v558 = vld [vmem:[#allocation9 + $0x80] sm:$0xff]
          %v559 = vld [vmem:[#allocation9 + $0x88] sm:$0xff]
          %v560 = vld [vmem:[#allocation9 + $0x90] sm:$0xff]
          %v561 = vld [vmem:[#allocation9 + $0x98] sm:$0xff]
          %v562 = vld [vmem:[#allocation9 + $0xa0] sm:$0xff]
          %v563 = vld [vmem:[#allocation9 + $0xa8] sm:$0xff]
          %v564 = vld [vmem:[#allocation9 + $0xb0] sm:$0xff]
          %v565 = vld [vmem:[#allocation9 + $0xb8] sm:$0xff]
          %v566 = vld [vmem:[#allocation9 + $0xc0] sm:$0xff]
          %v567 = vld [vmem:[#allocation9 + $0xc8] sm:$0xff]
          %v568 = vld [vmem:[#allocation9 + $0xd0] sm:$0xff]
          %v569 = vld [vmem:[#allocation9 + $0xd8] sm:$0xff]
          %v570 = vld [vmem:[#allocation9 + $0xe0] sm:$0xff]
          %v571 = vld [vmem:[#allocation9 + $0xe8] sm:$0xff]
          %v572 = vld [vmem:[#allocation9 + $0xf0] sm:$0xff]
          %v573 = vld [vmem:[#allocation9 + $0xf8] sm:$0xff]
          %v574 = vld [vmem:[%s5] sm:$0x3]
          %v576 = vperm.slane %v574, 0
          %v577 = vperm.slane %v574, 1
          %580 = vmatpush.msra.mxu0 %v572
          %581 = vmatpush.msra.mxu0 %v570
          %582 = vmatpush.msra.mxu0 %v568
          %583 = vmatpush.msra.mxu0 %v566
          %584 = vmatpush.msra.mxu0 %v564
          %585 = vmatpush.msra.mxu0 %v562
          %586 = vmatpush.msra.mxu0 %v560
          %587 = vmatpush.msra.mxu0 %v558
          %588 = vmatpush.msra.mxu0 %v556
          %589 = vmatpush.msra.mxu0 %v554
          %590 = vmatpush.msra.mxu0 %v552
          %591 = vmatpush.msra.mxu0 %v550
          %592 = vmatpush.msra.mxu0 %v548
          %593 = vmatpush.msra.mxu0 %v546
          %594 = vmatpush.msra.mxu0 %v544
          %595 = vmatpush.msra.mxu0 %v542
          %596 = vmatmul.f32.gmra.mxu0 %v526
          %v597 = vpop.f32.mrf.mxu0
          %v598 = vadd.f32 %v576, %v597
          %599 = vmatmul.f32.gmra.mxu0 %v527
          %v600 = vpop.f32.mrf.mxu0
          %v601 = vadd.f32 %v576, %v600
          %602 = vmatmul.f32.gmra.mxu0 %v528
          %v603 = vpop.f32.mrf.mxu0
          %v604 = vadd.f32 %v576, %v603
          %605 = vmatmul.f32.gmra.mxu0 %v529
          %v606 = vpop.f32.mrf.mxu0
          %v607 = vadd.f32 %v576, %v606
          %608 = vmatmul.f32.gmra.mxu0 %v530
          %v609 = vpop.f32.mrf.mxu0
          %v610 = vadd.f32 %v576, %v609
          %611 = vmatmul.f32.gmra.mxu0 %v531
          %v612 = vpop.f32.mrf.mxu0
          %v613 = vadd.f32 %v576, %v612
          %614 = vmatmul.f32.gmra.mxu0 %v532
          %v615 = vpop.f32.mrf.mxu0
          %v616 = vadd.f32 %v576, %v615
          %617 = vmatmul.f32.gmra.mxu0 %v533
          %v618 = vpop.f32.mrf.mxu0
          %v619 = vadd.f32 %v576, %v618
          %620 = vmatmul.f32.gmra.mxu0 %v534
          %v621 = vpop.f32.mrf.mxu0
          %v622 = vadd.f32 %v576, %v621
          %623 = vmatmul.f32.gmra.mxu0 %v535
          %v624 = vpop.f32.mrf.mxu0
          %v625 = vadd.f32 %v576, %v624
          %626 = vmatmul.f32.gmra.mxu0 %v536
          %v627 = vpop.f32.mrf.mxu0
          %v628 = vadd.f32 %v576, %v627
          %629 = vmatmul.f32.gmra.mxu0 %v537
          %v630 = vpop.f32.mrf.mxu0
          %v631 = vadd.f32 %v576, %v630
          %632 = vmatmul.f32.gmra.mxu0 %v538
          %v633 = vpop.f32.mrf.mxu0
          %v634 = vadd.f32 %v576, %v633
          %635 = vmatmul.f32.gmra.mxu0 %v539
          %v636 = vpop.f32.mrf.mxu0
          %v637 = vadd.f32 %v576, %v636
          %638 = vmatmul.f32.gmra.mxu0 %v540
          %v639 = vpop.f32.mrf.mxu0
          %v640 = vadd.f32 %v576, %v639
          %641 = vmatmul.f32.gmra.mxu0 %v541
          %v642 = vpop.f32.mrf.mxu0
          %v643 = vadd.f32 %v576, %v642
          %644 = vdwg.mxu0
          %645 = vmatpush.msra.mxu0 %v573
          %646 = vmatpush.msra.mxu0 %v571
          %647 = vmatpush.msra.mxu0 %v569
          %648 = vmatpush.msra.mxu0 %v567
          %649 = vmatpush.msra.mxu0 %v565
          %650 = vmatpush.msra.mxu0 %v563
          %651 = vmatpush.msra.mxu0 %v561
          %652 = vmatpush.msra.mxu0 %v559
          %653 = vmatpush.msra.mxu0 %v557
          %654 = vmatpush.msra.mxu0 %v555
          %655 = vmatpush.msra.mxu0 %v553
          %656 = vmatpush.msra.mxu0 %v551
          %657 = vmatpush.msra.mxu0 %v549
          %658 = vmatpush.msra.mxu0 %v547
          %659 = vmatpush.msra.mxu0 %v545
          %660 = vmatpush.msra.mxu0 %v543
          %661 = vmatmul.f32.gmra.mxu0 %v526
          %v662 = vpop.f32.mrf.mxu0
          %v663 = vadd.f32 %v577, %v662
          %664 = vmatmul.f32.gmra.mxu0 %v527
          %v665 = vpop.f32.mrf.mxu0
          %v666 = vadd.f32 %v577, %v665
          %667 = vmatmul.f32.gmra.mxu0 %v528
          %v668 = vpop.f32.mrf.mxu0
          %v669 = vadd.f32 %v577, %v668
          %670 = vmatmul.f32.gmra.mxu0 %v529
          %v671 = vpop.f32.mrf.mxu0
          %v672 = vadd.f32 %v577, %v671
          %673 = vmatmul.f32.gmra.mxu0 %v530
          %v674 = vpop.f32.mrf.mxu0
          %v675 = vadd.f32 %v577, %v674
          %676 = vmatmul.f32.gmra.mxu0 %v531
          %v677 = vpop.f32.mrf.mxu0
          %v678 = vadd.f32 %v577, %v677
          %679 = vmatmul.f32.gmra.mxu0 %v532
          %v680 = vpop.f32.mrf.mxu0
          %v681 = vadd.f32 %v577, %v680
          %682 = vmatmul.f32.gmra.mxu0 %v533
          %v683 = vpop.f32.mrf.mxu0
          %v684 = vadd.f32 %v577, %v683
          %685 = vmatmul.f32.gmra.mxu0 %v534
          %v686 = vpop.f32.mrf.mxu0
          %v687 = vadd.f32 %v577, %v686
          %688 = vmatmul.f32.gmra.mxu0 %v535
          %v689 = vpop.f32.mrf.mxu0
          %v690 = vadd.f32 %v577, %v689
          %691 = vmatmul.f32.gmra.mxu0 %v536
          %v692 = vpop.f32.mrf.mxu0
          %v693 = vadd.f32 %v577, %v692
          %694 = vmatmul.f32.gmra.mxu0 %v537
          %v695 = vpop.f32.mrf.mxu0
          %v696 = vadd.f32 %v577, %v695
          %697 = vmatmul.f32.gmra.mxu0 %v538
          %v698 = vpop.f32.mrf.mxu0
          %v699 = vadd.f32 %v577, %v698
          %700 = vmatmul.f32.gmra.mxu0 %v539
          %v701 = vpop.f32.mrf.mxu0
          %v702 = vadd.f32 %v577, %v701
          %703 = vmatmul.f32.gmra.mxu0 %v540
          %v704 = vpop.f32.mrf.mxu0
          %v705 = vadd.f32 %v577, %v704
          %706 = vmatmul.f32.gmra.mxu0 %v541
          %v707 = vpop.f32.mrf.mxu0
          %v708 = vadd.f32 %v577, %v707
          %709 = vdwg.mxu0
          %v710 = vld [vmem:[#allocation10] sm:$0xff]
          %v711 = vld [vmem:[#allocation10 + $0x8] sm:$0xff]
          %v712 = vld [vmem:[#allocation10 + $0x10] sm:$0xff]
          %v713 = vld [vmem:[#allocation10 + $0x18] sm:$0xff]
          %v714 = vld [vmem:[#allocation10 + $0x20] sm:$0xff]
          %v715 = vld [vmem:[#allocation10 + $0x28] sm:$0xff]
          %v716 = vld [vmem:[#allocation10 + $0x30] sm:$0xff]
          %v717 = vld [vmem:[#allocation10 + $0x38] sm:$0xff]
          %v718 = vld [vmem:[#allocation10 + $0x40] sm:$0xff]
          %v719 = vld [vmem:[#allocation10 + $0x48] sm:$0xff]
          %v720 = vld [vmem:[#allocation10 + $0x50] sm:$0xff]
          %v721 = vld [vmem:[#allocation10 + $0x58] sm:$0xff]
          %v722 = vld [vmem:[#allocation10 + $0x60] sm:$0xff]
          %v723 = vld [vmem:[#allocation10 + $0x68] sm:$0xff]
          %v724 = vld [vmem:[#allocation10 + $0x70] sm:$0xff]
          %v725 = vld [vmem:[#allocation10 + $0x78] sm:$0xff]
          %726 = vmatpush.msra.mxu0 %v643
          %727 = vmatpush.msra.mxu0 %v640
          %728 = vmatpush.msra.mxu0 %v637
          %729 = vmatpush.msra.mxu0 %v634
          %730 = vmatpush.msra.mxu0 %v631
          %731 = vmatpush.msra.mxu0 %v628
          %732 = vmatpush.msra.mxu0 %v625
          %733 = vmatpush.msra.mxu0 %v622
          %734 = vmatpush.msra.mxu0 %v619
          %735 = vmatpush.msra.mxu0 %v616
          %736 = vmatpush.msra.mxu0 %v613
          %737 = vmatpush.msra.mxu0 %v610
          %738 = vmatpush.msra.mxu0 %v607
          %739 = vmatpush.msra.mxu0 %v604
          %740 = vmatpush.msra.mxu0 %v601
          %741 = vmatpush.msra.mxu0 %v598
          %742 = vmatmul.f32.gmra.mxu0 %v710
          %v743 = vpop.f32.mrf.mxu0
          %v744 = vadd.f32 0.0, %v743
          %745 = vmatmul.f32.gmra.mxu0 %v711
          %v746 = vpop.f32.mrf.mxu0
          %v747 = vadd.f32 0.0, %v746
          %748 = vmatmul.f32.gmra.mxu0 %v712
          %v749 = vpop.f32.mrf.mxu0
          %v750 = vadd.f32 0.0, %v749
          %751 = vmatmul.f32.gmra.mxu0 %v713
          %v752 = vpop.f32.mrf.mxu0
          %v753 = vadd.f32 0.0, %v752
          %754 = vmatmul.f32.gmra.mxu0 %v714
          %v755 = vpop.f32.mrf.mxu0
          %v756 = vadd.f32 0.0, %v755
          %757 = vmatmul.f32.gmra.mxu0 %v715
          %v758 = vpop.f32.mrf.mxu0
          %v759 = vadd.f32 0.0, %v758
          %760 = vmatmul.f32.gmra.mxu0 %v716
          %v761 = vpop.f32.mrf.mxu0
          %v762 = vadd.f32 0.0, %v761
          %763 = vmatmul.f32.gmra.mxu0 %v717
          %v764 = vpop.f32.mrf.mxu0
          %v765 = vadd.f32 0.0, %v764
          %766 = vmatmul.f32.gmra.mxu0 %v718
          %v767 = vpop.f32.mrf.mxu0
          %v768 = vadd.f32 0.0, %v767
          %769 = vmatmul.f32.gmra.mxu0 %v719
          %v770 = vpop.f32.mrf.mxu0
          %v771 = vadd.f32 0.0, %v770
          %772 = vmatmul.f32.gmra.mxu0 %v720
          %v773 = vpop.f32.mrf.mxu0
          %v774 = vadd.f32 0.0, %v773
          %775 = vmatmul.f32.gmra.mxu0 %v721
          %v776 = vpop.f32.mrf.mxu0
          %v777 = vadd.f32 0.0, %v776
          %778 = vmatmul.f32.gmra.mxu0 %v722
          %v779 = vpop.f32.mrf.mxu0
          %v780 = vadd.f32 0.0, %v779
          %781 = vmatmul.f32.gmra.mxu0 %v723
          %v782 = vpop.f32.mrf.mxu0
          %v783 = vadd.f32 0.0, %v782
          %784 = vmatmul.f32.gmra.mxu0 %v724
          %v785 = vpop.f32.mrf.mxu0
          %v786 = vadd.f32 0.0, %v785
          %787 = vmatmul.f32.gmra.mxu0 %v725
          %v788 = vpop.f32.mrf.mxu0
          %v789 = vadd.f32 0.0, %v788
          %790 = vdwg.mxu0
          %v791 = vld [vmem:[#allocation12] sm:$0xff]
          %v792 = vld [vmem:[#allocation12 + $0x8] sm:$0xff]
          %v793 = vld [vmem:[#allocation12 + $0x10] sm:$0xff]
          %v794 = vld [vmem:[#allocation12 + $0x18] sm:$0xff]
          %v795 = vld [vmem:[#allocation12 + $0x20] sm:$0xff]
          %v796 = vld [vmem:[#allocation12 + $0x28] sm:$0xff]
          %v797 = vld [vmem:[#allocation12 + $0x30] sm:$0xff]
          %v798 = vld [vmem:[#allocation12 + $0x38] sm:$0xff]
          %v799 = vld [vmem:[#allocation12 + $0x40] sm:$0xff]
          %v800 = vld [vmem:[#allocation12 + $0x48] sm:$0xff]
          %v801 = vld [vmem:[#allocation12 + $0x50] sm:$0xff]
          %v802 = vld [vmem:[#allocation12 + $0x58] sm:$0xff]
          %v803 = vld [vmem:[#allocation12 + $0x60] sm:$0xff]
          %v804 = vld [vmem:[#allocation12 + $0x68] sm:$0xff]
          %v805 = vld [vmem:[#allocation12 + $0x70] sm:$0xff]
          %v806 = vld [vmem:[#allocation12 + $0x78] sm:$0xff]
          %807 = vmatpush.msra.mxu0 %v708
          %808 = vmatpush.msra.mxu0 %v705
          %809 = vmatpush.msra.mxu0 %v702
          %810 = vmatpush.msra.mxu0 %v699
          %811 = vmatpush.msra.mxu0 %v696
          %812 = vmatpush.msra.mxu0 %v693
          %813 = vmatpush.msra.mxu0 %v690
          %814 = vmatpush.msra.mxu0 %v687
          %815 = vmatpush.msra.mxu0 %v684
          %816 = vmatpush.msra.mxu0 %v681
          %817 = vmatpush.msra.mxu0 %v678
          %818 = vmatpush.msra.mxu0 %v675
          %819 = vmatpush.msra.mxu0 %v672
          %820 = vmatpush.msra.mxu0 %v669
          %821 = vmatpush.msra.mxu0 %v666
          %822 = vmatpush.msra.mxu0 %v663
          %823 = vmatmul.f32.gmra.mxu0 %v791
          %v824 = vpop.f32.mrf.mxu0
          %v825 = vadd.f32 0.0, %v824
          %826 = vmatmul.f32.gmra.mxu0 %v792
          %v827 = vpop.f32.mrf.mxu0
          %v828 = vadd.f32 0.0, %v827
          %829 = vmatmul.f32.gmra.mxu0 %v793
          %v830 = vpop.f32.mrf.mxu0
          %v831 = vadd.f32 0.0, %v830
          %832 = vmatmul.f32.gmra.mxu0 %v794
          %v833 = vpop.f32.mrf.mxu0
          %v834 = vadd.f32 0.0, %v833
          %835 = vmatmul.f32.gmra.mxu0 %v795
          %v836 = vpop.f32.mrf.mxu0
          %v837 = vadd.f32 0.0, %v836
          %838 = vmatmul.f32.gmra.mxu0 %v796
          %v839 = vpop.f32.mrf.mxu0
          %v840 = vadd.f32 0.0, %v839
          %841 = vmatmul.f32.gmra.mxu0 %v797
          %v842 = vpop.f32.mrf.mxu0
          %v843 = vadd.f32 0.0, %v842
          %844 = vmatmul.f32.gmra.mxu0 %v798
          %v845 = vpop.f32.mrf.mxu0
          %v846 = vadd.f32 0.0, %v845
          %847 = vmatmul.f32.gmra.mxu0 %v799
          %v848 = vpop.f32.mrf.mxu0
          %v849 = vadd.f32 0.0, %v848
          %850 = vmatmul.f32.gmra.mxu0 %v800
          %v851 = vpop.f32.mrf.mxu0
          %v852 = vadd.f32 0.0, %v851
          %853 = vmatmul.f32.gmra.mxu0 %v801
          %v854 = vpop.f32.mrf.mxu0
          %v855 = vadd.f32 0.0, %v854
          %856 = vmatmul.f32.gmra.mxu0 %v802
          %v857 = vpop.f32.mrf.mxu0
          %v858 = vadd.f32 0.0, %v857
          %859 = vmatmul.f32.gmra.mxu0 %v803
          %v860 = vpop.f32.mrf.mxu0
          %v861 = vadd.f32 0.0, %v860
          %862 = vmatmul.f32.gmra.mxu0 %v804
          %v863 = vpop.f32.mrf.mxu0
          %v864 = vadd.f32 0.0, %v863
          %865 = vmatmul.f32.gmra.mxu0 %v805
          %v866 = vpop.f32.mrf.mxu0
          %v867 = vadd.f32 0.0, %v866
          %868 = vmatmul.f32.gmra.mxu0 %v806
          %v869 = vpop.f32.mrf.mxu0
          %v870 = vadd.f32 0.0, %v869
          %871 = vdwg.mxu0
          %872 = vst [vmem:[#allocation2] sm:$0xff] %v744
          %873 = vst [vmem:[#allocation2 + $0x8] sm:$0xff] %v747
          %874 = vst [vmem:[#allocation2 + $0x10] sm:$0xff] %v750
          %875 = vst [vmem:[#allocation2 + $0x18] sm:$0xff] %v753
          %876 = vst [vmem:[#allocation2 + $0x20] sm:$0xff] %v756
          %877 = vst [vmem:[#allocation2 + $0x28] sm:$0xff] %v759
          %878 = vst [vmem:[#allocation2 + $0x30] sm:$0xff] %v762
          %879 = vst [vmem:[#allocation2 + $0x38] sm:$0xff] %v765
          %880 = vst [vmem:[#allocation2 + $0x40] sm:$0xff] %v768
          %881 = vst [vmem:[#allocation2 + $0x48] sm:$0xff] %v771
          %882 = vst [vmem:[#allocation2 + $0x50] sm:$0xff] %v774
          %883 = vst [vmem:[#allocation2 + $0x58] sm:$0xff] %v777
          %884 = vst [vmem:[#allocation2 + $0x60] sm:$0xff] %v780
          %885 = vst [vmem:[#allocation2 + $0x68] sm:$0xff] %v783
          %886 = vst [vmem:[#allocation2 + $0x70] sm:$0xff] %v786
          %887 = vst [vmem:[#allocation2 + $0x78] sm:$0xff] %v789
          %888 = vst [vmem:[#allocation3] sm:$0xff] %v825
          %889 = vst [vmem:[#allocation3 + $0x8] sm:$0xff] %v828
          %890 = vst [vmem:[#allocation3 + $0x10] sm:$0xff] %v831
          %891 = vst [vmem:[#allocation3 + $0x18] sm:$0xff] %v834
          %892 = vst [vmem:[#allocation3 + $0x20] sm:$0xff] %v837
          %893 = vst [vmem:[#allocation3 + $0x28] sm:$0xff] %v840
          %894 = vst [vmem:[#allocation3 + $0x30] sm:$0xff] %v843
          %895 = vst [vmem:[#allocation3 + $0x38] sm:$0xff] %v846
          %896 = vst [vmem:[#allocation3 + $0x40] sm:$0xff] %v849
          %897 = vst [vmem:[#allocation3 + $0x48] sm:$0xff] %v852
          %898 = vst [vmem:[#allocation3 + $0x50] sm:$0xff] %v855
          %899 = vst [vmem:[#allocation3 + $0x58] sm:$0xff] %v858
          %900 = vst [vmem:[#allocation3 + $0x60] sm:$0xff] %v861
          %901 = vst [vmem:[#allocation3 + $0x68] sm:$0xff] %v864
          %902 = vst [vmem:[#allocation3 + $0x70] sm:$0xff] %v867
          %903 = vst [vmem:[#allocation3 + $0x78] sm:$0xff] %v870
        $region84: #{tpu_custom_call.1} parent=59 // pred_fallthru
          _
        %v904 = vld [vmem:[%s435] sm:$0xff]
        %v905 = vld [vmem:[%s435 + $0x8] sm:$0xff]
        %v906 = vld [vmem:[%s435 + $0x10] sm:$0xff]
        %v907 = vld [vmem:[%s435 + $0x18] sm:$0xff]
        %v908 = vld [vmem:[%s435 + $0x20] sm:$0xff]
        %v909 = vld [vmem:[%s435 + $0x28] sm:$0xff]
        %v910 = vld [vmem:[%s435 + $0x30] sm:$0xff]
        %v911 = vld [vmem:[%s435 + $0x38] sm:$0xff]
        %v912 = vld [vmem:[#allocation7] sm:$0xff]
        %v913 = vld [vmem:[#allocation7 + $0x8] sm:$0xff]
        %v914 = vld [vmem:[#allocation7 + $0x10] sm:$0xff]
        %v915 = vld [vmem:[#allocation7 + $0x18] sm:$0xff]
        %v916 = vld [vmem:[#allocation7 + $0x20] sm:$0xff]
        %v917 = vld [vmem:[#allocation7 + $0x28] sm:$0xff]
        %v918 = vld [vmem:[#allocation7 + $0x30] sm:$0xff]
        %v919 = vld [vmem:[#allocation7 + $0x38] sm:$0xff]
        %v920 = vld [vmem:[#allocation7 + $0x40] sm:$0xff]
        %v921 = vld [vmem:[#allocation7 + $0x48] sm:$0xff]
        %v922 = vld [vmem:[#allocation7 + $0x50] sm:$0xff]
        %v923 = vld [vmem:[#allocation7 + $0x58] sm:$0xff]
        %v924 = vld [vmem:[#allocation7 + $0x60] sm:$0xff]
        %v925 = vld [vmem:[#allocation7 + $0x68] sm:$0xff]
        %v926 = vld [vmem:[#allocation7 + $0x70] sm:$0xff]
        %v927 = vld [vmem:[#allocation7 + $0x78] sm:$0xff]
        %v928 = vld [vmem:[%s3] sm:$0x1]
        %v930 = vperm.slane %v928, 0
        %932 = vmatpush.msra.mxu0 %v927
        %933 = vmatpush.msra.mxu0 %v926
        %934 = vmatpush.msra.mxu0 %v925
        %935 = vmatpush.msra.mxu0 %v924
        %936 = vmatpush.msra.mxu0 %v923
        %937 = vmatpush.msra.mxu0 %v922
        %938 = vmatpush.msra.mxu0 %v921
        %939 = vmatpush.msra.mxu0 %v920
        %940 = vmatpush.msra.mxu0 %v919
        %941 = vmatpush.msra.mxu0 %v918
        %942 = vmatpush.msra.mxu0 %v917
        %943 = vmatpush.msra.mxu0 %v916
        %944 = vmatpush.msra.mxu0 %v915
        %945 = vmatpush.msra.mxu0 %v914
        %946 = vmatpush.msra.mxu0 %v913
        %947 = vmatpush.msra.mxu0 %v912
        %948 = vmatmul.f32.gmra.mxu0 %v904
        %v949 = vpop.f32.mrf.mxu0
        %v950 = vadd.f32 %v930, %v949
        %951 = vmatmul.f32.gmra.mxu0 %v905
        %v952 = vpop.f32.mrf.mxu0
        %v953 = vadd.f32 %v930, %v952
        %954 = vmatmul.f32.gmra.mxu0 %v906
        %v955 = vpop.f32.mrf.mxu0
        %v956 = vadd.f32 %v930, %v955
        %957 = vmatmul.f32.gmra.mxu0 %v907
        %v958 = vpop.f32.mrf.mxu0
        %v959 = vadd.f32 %v930, %v958
        %960 = vmatmul.f32.gmra.mxu0 %v908
        %v961 = vpop.f32.mrf.mxu0
        %v962 = vadd.f32 %v930, %v961
        %963 = vmatmul.f32.gmra.mxu0 %v909
        %v964 = vpop.f32.mrf.mxu0
        %v965 = vadd.f32 %v930, %v964
        %966 = vmatmul.f32.gmra.mxu0 %v910
        %v967 = vpop.f32.mrf.mxu0
        %v968 = vadd.f32 %v930, %v967
        %969 = vmatmul.f32.gmra.mxu0 %v911
        %v970 = vpop.f32.mrf.mxu0
        %v971 = vadd.f32 %v930, %v970
        %972 = vdwg.mxu0
        %v973 = vmul.f32 %v950, 0.088388346
        %v974 = vmul.f32 %v953, 0.088388346
        %v975 = vmul.f32 %v956, 0.088388346
        %v976 = vmul.f32 %v959, 0.088388346
        %v977 = vmul.f32 %v962, 0.088388346
        %v978 = vmul.f32 %v965, 0.088388346
        %v979 = vmul.f32 %v968, 0.088388346
        %v980 = vmul.f32 %v971, 0.088388346
        %v981 = vld [vmem:[#allocation2] sm:$0xff]
        %v982 = vld [vmem:[#allocation2 + $0x8] sm:$0xff]
        %v983 = vld [vmem:[#allocation2 + $0x10] sm:$0xff]
        %v984 = vld [vmem:[#allocation2 + $0x18] sm:$0xff]
        %v985 = vld [vmem:[#allocation2 + $0x20] sm:$0xff]
        %v986 = vld [vmem:[#allocation2 + $0x28] sm:$0xff]
        %v987 = vld [vmem:[#allocation2 + $0x30] sm:$0xff]
        %v988 = vld [vmem:[#allocation2 + $0x38] sm:$0xff]
        %v989 = vld [vmem:[#allocation2 + $0x40] sm:$0xff]
        %v990 = vld [vmem:[#allocation2 + $0x48] sm:$0xff]
        %v991 = vld [vmem:[#allocation2 + $0x50] sm:$0xff]
        %v992 = vld [vmem:[#allocation2 + $0x58] sm:$0xff]
        %v993 = vld [vmem:[#allocation2 + $0x60] sm:$0xff]
        %v994 = vld [vmem:[#allocation2 + $0x68] sm:$0xff]
        %v995 = vld [vmem:[#allocation2 + $0x70] sm:$0xff]
        %v996 = vld [vmem:[#allocation2 + $0x78] sm:$0xff]
        %v997 = vld [vmem:[%s520] sm:$0x1]
        %v999 = vperm.slane %v997, 0
        %1001 = vmatpush.xpose.msra.mxu0 %v996
        %1002 = vmatpush.xpose.msra.mxu0 %v995
        %1003 = vmatpush.xpose.msra.mxu0 %v994
        %1004 = vmatpush.xpose.msra.mxu0 %v993
        %1005 = vmatpush.xpose.msra.mxu0 %v992
        %1006 = vmatpush.xpose.msra.mxu0 %v991
        %1007 = vmatpush.xpose.msra.mxu0 %v990
        %1008 = vmatpush.xpose.msra.mxu0 %v989
        %1009 = vmatpush.xpose.msra.mxu0 %v988
        %1010 = vmatpush.xpose.msra.mxu0 %v987
        %1011 = vmatpush.xpose.msra.mxu0 %v986
        %1012 = vmatpush.xpose.msra.mxu0 %v985
        %1013 = vmatpush.xpose.msra.mxu0 %v984
        %1014 = vmatpush.xpose.msra.mxu0 %v983
        %1015 = vmatpush.xpose.msra.mxu0 %v982
        %1016 = vmatpush.xpose.msra.mxu0 %v981
        %1017 = vmatmul.f32.gmra.mxu0 %v973
        %v1018 = vpop.f32.mrf.mxu0
        %v1019 = vadd.f32 %v999, %v1018
        %1020 = vmatmul.f32.gmra.mxu0 %v974
        %v1021 = vpop.f32.mrf.mxu0
        %v1022 = vadd.f32 %v999, %v1021
        %1023 = vmatmul.f32.gmra.mxu0 %v975
        %v1024 = vpop.f32.mrf.mxu0
        %v1025 = vadd.f32 %v999, %v1024
        %1026 = vmatmul.f32.gmra.mxu0 %v976
        %v1027 = vpop.f32.mrf.mxu0
        %v1028 = vadd.f32 %v999, %v1027
        %1029 = vmatmul.f32.gmra.mxu0 %v977
        %v1030 = vpop.f32.mrf.mxu0
        %v1031 = vadd.f32 %v999, %v1030
        %1032 = vmatmul.f32.gmra.mxu0 %v978
        %v1033 = vpop.f32.mrf.mxu0
        %v1034 = vadd.f32 %v999, %v1033
        %1035 = vmatmul.f32.gmra.mxu0 %v979
        %v1036 = vpop.f32.mrf.mxu0
        %v1037 = vadd.f32 %v999, %v1036
        %1038 = vmatmul.f32.gmra.mxu0 %v980
        %v1039 = vpop.f32.mrf.mxu0
        %v1040 = vadd.f32 %v999, %v1039
        %1041 = vdwg.mxu0
        %1042 = vmax.xlane.f32.xlu0 %v1019
        %v1043 = vpop.xlane.xlu0 %1042
        %1044 = vmax.xlane.f32.xlu0 %v1022
        %v1045 = vpop.xlane.xlu0 %1044
        %1046 = vmax.xlane.f32.xlu0 %v1025
        %v1047 = vpop.xlane.xlu0 %1046
        %1048 = vmax.xlane.f32.xlu0 %v1028
        %v1049 = vpop.xlane.xlu0 %1048
        %1050 = vmax.xlane.f32.xlu0 %v1031
        %v1051 = vpop.xlane.xlu0 %1050
        %1052 = vmax.xlane.f32.xlu0 %v1034
        %v1053 = vpop.xlane.xlu0 %1052
        %1054 = vmax.xlane.f32.xlu0 %v1037
        %v1055 = vpop.xlane.xlu0 %1054
        %1056 = vmax.xlane.f32.xlu0 %v1040
        %v1057 = vpop.xlane.xlu0 %1056
        %v1058 = vsub.f32 %v1019, %v1043
        %v1059 = vsub.f32 %v1022, %v1045
        %v1060 = vsub.f32 %v1025, %v1047
        %v1061 = vsub.f32 %v1028, %v1049
        %v1062 = vsub.f32 %v1031, %v1051
        %v1063 = vsub.f32 %v1034, %v1053
        %v1064 = vsub.f32 %v1037, %v1055
        %v1065 = vsub.f32 %v1040, %v1057
        %v1066 = vmul.f32 %v1058, 1.442695
        %v1067 = vpow.pop %v1066
        %v1068 = vmul.f32 %v1059, 1.442695
        %v1069 = vpow.pop %v1068
        %v1070 = vmul.f32 %v1060, 1.442695
        %v1071 = vpow.pop %v1070
        %v1072 = vmul.f32 %v1061, 1.442695
        %v1073 = vpow.pop %v1072
        %v1074 = vmul.f32 %v1062, 1.442695
        %v1075 = vpow.pop %v1074
        %v1076 = vmul.f32 %v1063, 1.442695
        %v1077 = vpow.pop %v1076
        %v1078 = vmul.f32 %v1064, 1.442695
        %v1079 = vpow.pop %v1078
        %v1080 = vmul.f32 %v1065, 1.442695
        %v1081 = vpow.pop %v1080
        %1082 = vadd.xlane.f32.xlu0 %v1067
        %v1083 = vpop.xlane.xlu0 %1082
        %1084 = vadd.xlane.f32.xlu0 %v1069
        %v1085 = vpop.xlane.xlu0 %1084
        %1086 = vadd.xlane.f32.xlu0 %v1071
        %v1087 = vpop.xlane.xlu0 %1086
        %1088 = vadd.xlane.f32.xlu0 %v1073
        %v1089 = vpop.xlane.xlu0 %1088
        %1090 = vadd.xlane.f32.xlu0 %v1075
        %v1091 = vpop.xlane.xlu0 %1090
        %1092 = vadd.xlane.f32.xlu0 %v1077
        %v1093 = vpop.xlane.xlu0 %1092
        %1094 = vadd.xlane.f32.xlu0 %v1079
        %v1095 = vpop.xlane.xlu0 %1094
        %1096 = vadd.xlane.f32.xlu0 %v1081
        %v1097 = vpop.xlane.xlu0 %1096
        %v1098 = vrcp.pop %v1083
        %v1099 = vrcp.pop %v1085
        %v1100 = vrcp.pop %v1087
        %v1101 = vrcp.pop %v1089
        %v1102 = vrcp.pop %v1091
        %v1103 = vrcp.pop %v1093
        %v1104 = vrcp.pop %v1095
        %v1105 = vrcp.pop %v1097
        %v1106 = vmul.f32 %v1067, %v1098
        %v1107 = vmul.f32 %v1069, %v1099
        %v1108 = vmul.f32 %v1071, %v1100
        %v1109 = vmul.f32 %v1073, %v1101
        %v1110 = vmul.f32 %v1075, %v1102
        %v1111 = vmul.f32 %v1077, %v1103
        %v1112 = vmul.f32 %v1079, %v1104
        %v1113 = vmul.f32 %v1081, %v1105
        %v1114 = vld [vmem:[#allocation3] sm:$0xff]
        %v1115 = vld [vmem:[#allocation3 + $0x8] sm:$0xff]
        %v1116 = vld [vmem:[#allocation3 + $0x10] sm:$0xff]
        %v1117 = vld [vmem:[#allocation3 + $0x18] sm:$0xff]
        %v1118 = vld [vmem:[#allocation3 + $0x20] sm:$0xff]
        %v1119 = vld [vmem:[#allocation3 + $0x28] sm:$0xff]
        %v1120 = vld [vmem:[#allocation3 + $0x30] sm:$0xff]
        %v1121 = vld [vmem:[#allocation3 + $0x38] sm:$0xff]
        %v1122 = vld [vmem:[#allocation3 + $0x40] sm:$0xff]
        %v1123 = vld [vmem:[#allocation3 + $0x48] sm:$0xff]
        %v1124 = vld [vmem:[#allocation3 + $0x50] sm:$0xff]
        %v1125 = vld [vmem:[#allocation3 + $0x58] sm:$0xff]
        %v1126 = vld [vmem:[#allocation3 + $0x60] sm:$0xff]
        %v1127 = vld [vmem:[#allocation3 + $0x68] sm:$0xff]
        %v1128 = vld [vmem:[#allocation3 + $0x70] sm:$0xff]
        %v1129 = vld [vmem:[#allocation3 + $0x78] sm:$0xff]
        %1130 = vmatpush.msra.mxu0 %v1129
        %1131 = vmatpush.msra.mxu0 %v1128
        %1132 = vmatpush.msra.mxu0 %v1127
        %1133 = vmatpush.msra.mxu0 %v1126
        %1134 = vmatpush.msra.mxu0 %v1125
        %1135 = vmatpush.msra.mxu0 %v1124
        %1136 = vmatpush.msra.mxu0 %v1123
        %1137 = vmatpush.msra.mxu0 %v1122
        %1138 = vmatpush.msra.mxu0 %v1121
        %1139 = vmatpush.msra.mxu0 %v1120
        %1140 = vmatpush.msra.mxu0 %v1119
        %1141 = vmatpush.msra.mxu0 %v1118
        %1142 = vmatpush.msra.mxu0 %v1117
        %1143 = vmatpush.msra.mxu0 %v1116
        %1144 = vmatpush.msra.mxu0 %v1115
        %1145 = vmatpush.msra.mxu0 %v1114
        %1146 = vmatmul.f32.gmra.mxu0 %v1106
        %v1147 = vpop.f32.mrf.mxu0
        %v1148 = vadd.f32 0.0, %v1147
        %1149 = vmatmul.f32.gmra.mxu0 %v1107
        %v1150 = vpop.f32.mrf.mxu0
        %v1151 = vadd.f32 0.0, %v1150
        %1152 = vmatmul.f32.gmra.mxu0 %v1108
        %v1153 = vpop.f32.mrf.mxu0
        %v1154 = vadd.f32 0.0, %v1153
        %1155 = vmatmul.f32.gmra.mxu0 %v1109
        %v1156 = vpop.f32.mrf.mxu0
        %v1157 = vadd.f32 0.0, %v1156
        %1158 = vmatmul.f32.gmra.mxu0 %v1110
        %v1159 = vpop.f32.mrf.mxu0
        %v1160 = vadd.f32 0.0, %v1159
        %1161 = vmatmul.f32.gmra.mxu0 %v1111
        %v1162 = vpop.f32.mrf.mxu0
        %v1163 = vadd.f32 0.0, %v1162
        %1164 = vmatmul.f32.gmra.mxu0 %v1112
        %v1165 = vpop.f32.mrf.mxu0
        %v1166 = vadd.f32 0.0, %v1165
        %1167 = vmatmul.f32.gmra.mxu0 %v1113
        %v1168 = vpop.f32.mrf.mxu0
        %v1169 = vadd.f32 0.0, %v1168
        %1170 = vdwg.mxu0
        %v1171 = vld [vmem:[%s516] sm:$0xff]
        %v1172 = vld [vmem:[%s516 + $0x8] sm:$0xff]
        %v1173 = vld [vmem:[%s516 + $0x10] sm:$0xff]
        %v1174 = vld [vmem:[%s516 + $0x18] sm:$0xff]
        %v1175 = vld [vmem:[%s516 + $0x20] sm:$0xff]
        %v1176 = vld [vmem:[%s516 + $0x28] sm:$0xff]
        %v1177 = vld [vmem:[%s516 + $0x30] sm:$0xff]
        %v1178 = vld [vmem:[%s516 + $0x38] sm:$0xff]
        %1180 = vset.pattern.permute.xlu0 0
        %1181 = vperm.xlu0 %1180, %v1171
        %v1182 = vpop.permute.xlu0 %1181
        %1185 = vset.pattern.permute.xlu0 0
        %1186 = vperm.xlu0 %1185, %v1172
        %v1187 = vpop.permute.xlu0 %1186
        %1190 = vset.pattern.permute.xlu0 0
        %1191 = vperm.xlu0 %1190, %v1173
        %v1192 = vpop.permute.xlu0 %1191
        %1195 = vset.pattern.permute.xlu0 0
        %1196 = vperm.xlu0 %1195, %v1174
        %v1197 = vpop.permute.xlu0 %1196
        %1200 = vset.pattern.permute.xlu0 0
        %1201 = vperm.xlu0 %1200, %v1175
        %v1202 = vpop.permute.xlu0 %1201
        %1205 = vset.pattern.permute.xlu0 0
        %1206 = vperm.xlu0 %1205, %v1176
        %v1207 = vpop.permute.xlu0 %1206
        %1210 = vset.pattern.permute.xlu0 0
        %1211 = vperm.xlu0 %1210, %v1177
        %v1212 = vpop.permute.xlu0 %1211
        %1215 = vset.pattern.permute.xlu0 0
        %1216 = vperm.xlu0 %1215, %v1178
        %v1217 = vpop.permute.xlu0 %1216
        %v1219 = vmul.f32 %v1182, %v1148
        %v1220 = vmul.f32 %v1187, %v1151
        %v1221 = vmul.f32 %v1192, %v1154
        %v1222 = vmul.f32 %v1197, %v1157
        %v1223 = vmul.f32 %v1202, %v1160
        %v1224 = vmul.f32 %v1207, %v1163
        %v1225 = vmul.f32 %v1212, %v1166
        %v1226 = vmul.f32 %v1217, %v1169
        %1227 = vst [vmem:[%s505] sm:$0xff] %v1219
        %1228 = vst [vmem:[%s505 + $0x8] sm:$0xff] %v1220
        %1229 = vst [vmem:[%s505 + $0x10] sm:$0xff] %v1221
        %1230 = vst [vmem:[%s505 + $0x18] sm:$0xff] %v1222
        %1231 = vst [vmem:[%s505 + $0x20] sm:$0xff] %v1223
        %1232 = vst [vmem:[%s505 + $0x28] sm:$0xff] %v1224
        %1233 = vst [vmem:[%s505 + $0x30] sm:$0xff] %v1225
        %1234 = vst [vmem:[%s505 + $0x38] sm:$0xff] %v1226
        %s1235 = sand.u32 %s283, 1
        %s1236 = scalar_lea.sflag [#allocation6], %s1235
        %s1237 = sand.u32 %s283, 1
        %s1238 = smul.addr %s1237, 64
        %s1239 = scalar_lea.vmem [#allocation13], %s1238
        // Predicated region
        $region85: #{tpu_custom_call.1} parent=59 // pred_check
          %p1240 = pneg %p293
        $region86: #{tpu_custom_call.1} parent=59 // pred_check_branch
          %1242 = sbr.rel (%p1240) target = $region88
        $region87: #{tpu_custom_call.1} parent=59 // pred_region
          %s1243 = smul.u32 8, %s34
          %1245 = vsyncadd %s1236, 0
          %s1246 = smul.addr %s33, 16
          %s1247 = sadd.s32 %s1243, %s1246
          %s1248 = smul.addr %s1247, 8
          %s1249 = scalar_lea.hbm %s10, %s1248
          %s1250 = sshll.u32 %s1239, 4
          %s1251 = int_to_ptr.vmem [resolvable:$true] %s1250
          %s1252 = sshll.u32 %s1249, 4
          %s1253 = int_to_ptr.hbm [resolvable:$true] %s1252
          %1258 = dma.vmem_to_hbm [thread:$0]  %s1251, 1024, %s1253, %s1236, 128, 128, 8
        $region88: #{tpu_custom_call.1} parent=59 // pred_fallthru
          _
      $region60: #{tpu_custom_call.1} parent=5 // pred_fallthru
        _
      %p1259 = scmp.le.s32.totalorder 2, %s24
      // Predicated region
      $region89: #{tpu_custom_call.1} parent=5 // pred_check
        %p1260 = pneg %p1259
      $region90: #{tpu_custom_call.1} parent=5 // pred_check_branch
        %1262 = sbr.rel (%p1260) target = $region92
      $region91: #{tpu_custom_call.1} parent=5 // pred_region
        %s1263 = ssub.s32 %s24, 2
        // Predicated region
        $region93: #{tpu_custom_call.1} parent=91 // pred_check
          %p1264 = pneg %p299
        $region94: #{tpu_custom_call.1} parent=91 // pred_check_branch
          %1266 = sbr.rel (%p1264) target = $region96
        $region95: #{tpu_custom_call.1} parent=91 // pred_region
          %s1267 = sand.u32 %s284, 1
          %s1268 = scalar_lea.sflag [#allocation6], %s1267
          %s1269 = sand.u32 %s284, 1
          %s1270 = smul.addr %s1269, 64
          %s1271 = scalar_lea.vmem [#allocation13], %s1270
          %1273 = dma.done %s1268, 1024
        $region96: #{tpu_custom_call.1} parent=91 // pred_fallthru
          _
      $region92: #{tpu_custom_call.1} parent=5 // pred_fallthru
        _
    $region6: #{tpu_custom_call.1} parent=1 // loop_footer
      %s28 = sadd.s32 1, %s24
    $region7: #{tpu_custom_call.1} parent=1 // loop_footer_branch
      %23 = sbr.rel target = $region3
    $region8: #{tpu_custom_call.1} parent=1 // loop_exit
      _
    %1274 = vsyncpa [#allocation5], 1
    %s1275 = scalar_lea.sflag [#allocation5], 1
    %1276 = vsyncpa %s1275, 1
    %1277 = vsyncpa [#allocation8], 1
    %1278 = vsyncpa [#allocation11], 1
    %1279 = vsyncpa [#allocation6], 1
    %s1280 = scalar_lea.sflag [#allocation6], 1
    %1281 = vsyncpa %s1280, 1

</llo_original>
